<compile_context>
chip_gen: v7x
topology: tpu7x:2x2x1
jax: 0.10.0
libtpu: 0.0.40
codegen_flags: <defaults>
</compile_context>

<pallas_src>
import jax
import jax.numpy as jnp
import numpy as np
from jax import lax
from jax.experimental import pallas as pl
from jax.experimental.pallas import tpu as pltpu

EPS = 1e-5


# ----------------------------- Pallas kernels ------------------------------

def _conv_bn_relu_kernel(x_ref, w_ref, b_ref, g_ref, beta_ref, o_ref):
    """out = relu(BN_train(x @ w + b)), per-output-channel batch statistics.

    The full M = N*Ho*Wo rows are resident in this single block, so the row
    reduction gives exact BatchNorm2d training-mode stats (biased var, eps).
    """
    acc = jnp.dot(x_ref[...], w_ref[...], preferred_element_type=jnp.float32)
    acc = acc + b_ref[...]
    mean = jnp.mean(acc, axis=0, keepdims=True)
    var = jnp.mean(jnp.square(acc - mean), axis=0, keepdims=True)
    scale = g_ref[...] * lax.rsqrt(var + EPS)
    shift = beta_ref[...] - mean * scale
    o_ref[...] = jnp.maximum(acc * scale + shift, 0.0)


def conv_bn_relu_mm(patches, wmat, bias, gamma, beta):
    """Fused conv-as-matmul + bias + BN(train) + ReLU on [M,K]@[K,Cout]."""
    M, K = patches.shape
    Cout = wmat.shape[1]
    return pl.pallas_call(
        _conv_bn_relu_kernel,
        out_shape=jax.ShapeDtypeStruct((M, Cout), jnp.float32),
        grid_spec=pltpu.PrefetchScalarGridSpec(
            num_scalar_prefetch=0,
            grid=(1,),
            in_specs=[
                pl.BlockSpec((M, K), lambda i: (0, 0)),
                pl.BlockSpec((K, Cout), lambda i: (0, 0)),
                pl.BlockSpec((1, Cout), lambda i: (0, 0)),
                pl.BlockSpec((1, Cout), lambda i: (0, 0)),
                pl.BlockSpec((1, Cout), lambda i: (0, 0)),
            ],
            out_specs=pl.BlockSpec((M, Cout), lambda i: (0, 0)),
        ),
    )(patches, wmat, bias, gamma, beta)


def _fc_fused_kernel(x_ref, w1_ref, b1_ref, w2_ref, b2_ref, w3_ref, b3_ref,
                     o_ref, acc_ref):
    """fc3(fc2(fc1(x))) with the fc1/fc2 intermediate kept in VMEM.

    Grid axis j tiles the 4096-wide fc1-output (= fc2-contraction) dimension.
    """
    j = pl.program_id(0)

    @pl.when(j == 0)
    def _():
        acc_ref[...] = jnp.zeros_like(acc_ref)

    # fc1 column tile: h1_j = x @ W1T[:, tile_j] + b1[tile_j]
    h1 = jnp.dot(x_ref[...], w1_ref[...],
                 preferred_element_type=jnp.float32) + b1_ref[...]
    # fc2 partial contraction over the same tile of the 4096 axis.
    acc_ref[...] += jnp.dot(h1.astype(jnp.bfloat16), w2_ref[...],
                            preferred_element_type=jnp.float32)

    @pl.when(j == pl.num_programs(0) - 1)
    def _():
        h2 = acc_ref[...] + b2_ref[...]
        o_ref[...] = (jnp.dot(h2.astype(jnp.bfloat16), w3_ref[...],
                              preferred_element_type=jnp.float32)
                      + b3_ref[...])


def fc_fused(x, w1, b1, w2, b2, w3, b3, *, tk=512):
    """Single pallas_call for the whole FC head.  Weights streamed as bf16."""
    M, K1 = x.shape            # [N, lin]
    H1 = w1.shape[1]           # 4096
    H2 = w2.shape[1]           # 1024
    NO = w3.shape[1]           # outputs
    if H1 % tk != 0:           # fallback for odd hidden sizes
        tk = H1
    grid = (H1 // tk,)
    return pl.pallas_call(
        _fc_fused_kernel,
        out_shape=jax.ShapeDtypeStruct((M, NO), jnp.float32),
        grid_spec=pltpu.PrefetchScalarGridSpec(
            num_scalar_prefetch=0,
            grid=grid,
            in_specs=[
                pl.BlockSpec((M, K1), lambda j: (0, 0)),    # x (resident)
                pl.BlockSpec((K1, tk), lambda j: (0, j)),   # W1T column tile
                pl.BlockSpec((1, tk), lambda j: (0, j)),    # b1 tile
                pl.BlockSpec((tk, H2), lambda j: (j, 0)),   # W2T row tile
                pl.BlockSpec((1, H2), lambda j: (0, 0)),    # b2 (resident)
                pl.BlockSpec((H2, NO), lambda j: (0, 0)),   # W3T (resident)
                pl.BlockSpec((1, NO), lambda j: (0, 0)),    # b3 (resident)
            ],
            out_specs=pl.BlockSpec((M, NO), lambda j: (0, 0)),
            scratch_shapes=[pltpu.VMEM((M, H2), jnp.float32)],
        ),
        compiler_params=pltpu.CompilerParams(
            dimension_semantics=("arbitrary",)),
    )(x, w1, b1, w2, b2, w3, b3)


# ------------------------------- JAX glue -----------------------------------

def im2col(x_nhwc, k=3, stride=2, pad=1):
    """Extract conv patches; K ordering is (kh, kw, Cin)."""
    N, H, W, C = x_nhwc.shape
    Ho = (H + 2 * pad - k) // stride + 1
    Wo = (W + 2 * pad - k) // stride + 1
    xp = jnp.pad(x_nhwc, ((0, 0), (pad, pad), (pad, pad), (0, 0)))
    pieces = []
    for di in range(k):
        for dj in range(k):
            pieces.append(xp[:, di:di + stride * Ho:stride,
                             dj:dj + stride * Wo:stride, :])
    patches = jnp.stack(pieces, axis=3)                  # [N,Ho,Wo,k*k,C]
    return patches.reshape(N * Ho * Wo, k * k * C), (N, Ho, Wo)


def dqn_forward(x_nchw, q):
    x = jnp.transpose(x_nchw, (0, 2, 3, 1)).astype(jnp.float32)   # NHWC
    for i in (1, 2, 3):
        patches, (N, Ho, Wo) = im2col(x)
        y = conv_bn_relu_mm(patches, q[f'conv{i}_wm'], q[f'conv{i}_b'],
                            q[f'bn{i}_g'], q[f'bn{i}_b'])
        x = y.reshape(N, Ho, Wo, -1)
    # torch's NCHW flatten order was folded into fc1's weight rows at prep
    # time, so this is a pure reshape (no transpose in the hot path).
    flat = x.reshape(x.shape[0], -1).astype(jnp.bfloat16)
    return fc_fused(flat, q['fc1_wt'], q['fc1_b'],
                    q['fc2_wt'], q['fc2_b'],
                    q['fc3_wt'], q['fc3_b'])


# ---------------------- parameter prep (one-time, off hot path) --------------

def prepare_params(p, h, w):
    """Convert PyTorch-layout params to kernel layouts once, outside the jit:
    conv weights as [kh*kw*Cin, Cout] f32 matrices, FC weights pre-transposed
    to [K, Nout] bf16 with torch's NCHW-flatten permutation folded into fc1."""
    q = {}
    for i in (1, 2, 3):
        wi = p[f'conv{i}_w']                              # [Cout,Cin,kh,kw]
        Cout = wi.shape[0]
        q[f'conv{i}_wm'] = jnp.transpose(wi, (2, 3, 1, 0)).reshape(-1, Cout)
        q[f'conv{i}_b'] = p[f'conv{i}_b'].reshape(1, Cout).astype(jnp.float32)
        q[f'bn{i}_g'] = p[f'bn{i}_g'].reshape(1, Cout).astype(jnp.float32)
        q[f'bn{i}_b'] = p[f'bn{i}_b'].reshape(1, Cout).astype(jnp.float32)

    def conv2d_size_out(s, kernel_size=3, stride=2, padding=1):
        return (s + 2 * padding - (kernel_size - 1) - 1) // stride + 1
    ch, cw = h, w
    for _ in range(3):
        ch, cw = conv2d_size_out(ch), conv2d_size_out(cw)
    C3 = 128
    lin = ch * cw * C3
    # NHWC flat index r = hh*cw*C3 + ww*C3 + c  ->  torch index c*ch*cw + hh*cw + ww
    perm = np.arange(lin).reshape(C3, ch, cw).transpose(1, 2, 0).reshape(-1)

    q['fc1_wt'] = jnp.transpose(p['fc1_w'])[perm].astype(jnp.bfloat16)  # [lin,4096]
    q['fc1_b'] = p['fc1_b'].reshape(1, -1).astype(jnp.float32)
    q['fc2_wt'] = jnp.transpose(p['fc2_w']).astype(jnp.bfloat16)        # [4096,1024]
    q['fc2_b'] = p['fc2_b'].reshape(1, -1).astype(jnp.float32)
    q['fc3_wt'] = jnp.transpose(p['fc3_w']).astype(jnp.bfloat16)        # [1024,out]
    q['fc3_b'] = p['fc3_b'].reshape(1, -1).astype(jnp.float32)
    return q


# ------------------------- deterministic parameters -------------------------

def init_params(key, h, w, outputs):
    def conv2d_size_out(s, kernel_size=3, stride=2, padding=1):
        return (s + 2 * padding - (kernel_size - 1) - 1) // stride + 1
    cw, ch = w, h
    for _ in range(3):
        cw, ch = conv2d_size_out(cw), conv2d_size_out(ch)
    lin = cw * ch * 128

    keys = jax.random.split(key, 12)

    def u(k, shape, fan_in):
        bound = 1.0 / np.sqrt(fan_in)
        return jax.random.uniform(k, shape, jnp.float32, -bound, bound)

    p = {}
    p['conv1_w'] = u(keys[0], (32, 3, 3, 3), 3 * 9)
    p['conv1_b'] = u(keys[1], (32,), 3 * 9)
    p['conv2_w'] = u(keys[2], (64, 32, 3, 3), 32 * 9)
    p['conv2_b'] = u(keys[3], (64,), 32 * 9)
    p['conv3_w'] = u(keys[4], (128, 64, 3, 3), 64 * 9)
    p['conv3_b'] = u(keys[5], (128,), 64 * 9)
    p['bn1_g'] = jnp.ones((32,), jnp.float32)
    p['bn1_b'] = jnp.zeros((32,), jnp.float32)
    p['bn2_g'] = jnp.ones((64,), jnp.float32)
    p['bn2_b'] = jnp.zeros((64,), jnp.float32)
    p['bn3_g'] = jnp.ones((128,), jnp.float32)
    p['bn3_b'] = jnp.zeros((128,), jnp.float32)
    p['fc1_w'] = u(keys[6], (4096, lin), lin)
    p['fc1_b'] = u(keys[7], (4096,), lin)
    p['fc2_w'] = u(keys[8], (1024, 4096), 4096)
    p['fc2_b'] = u(keys[9], (1024,), 4096)
    p['fc3_w'] = u(keys[10], (outputs, 1024), 1024)
    p['fc3_b'] = u(keys[11], (outputs,), 1024)
    return p


# --------------------------- pure-JAX reference ------------------------------

def ref_forward(x_nchw, p):
    def conv_bn_relu_ref(x, w, b, g, bb):
        y = lax.conv_general_dilated(
            x, w, window_strides=(2, 2), padding=((1, 1), (1, 1)),
            dimension_numbers=('NCHW', 'OIHW', 'NCHW'),
            precision=lax.Precision.HIGHEST)
        y = y + b[None, :, None, None]
        mean = jnp.mean(y, axis=(0, 2, 3), keepdims=True)
        var = jnp.var(y, axis=(0, 2, 3), keepdims=True)
        y = (g[None, :, None, None] * (y - mean) / jnp.sqrt(var + EPS)
             + bb[None, :, None, None])
        return jnp.maximum(y, 0.0)

    x = conv_bn_relu_ref(x_nchw, p['conv1_w'], p['conv1_b'], p['bn1_g'], p['bn1_b'])
    x = conv_bn_relu_ref(x, p['conv2_w'], p['conv2_b'], p['bn2_g'], p['bn2_b'])
    x = conv_bn_relu_ref(x, p['conv3_w'], p['conv3_b'], p['bn3_g'], p['bn3_b'])
    flat = x.reshape(x.shape[0], -1)

    def lin(xx, w, b):
        return jnp.dot(xx, w.T, precision=lax.Precision.HIGHEST) + b

    return lin(lin(lin(flat, p['fc1_w'], p['fc1_b']),
                   p['fc2_w'], p['fc2_b']), p['fc3_w'], p['fc3_b'])


# ---------------------------------- main -------------------------------------

if __name__ == "__main__":
    H = W = 16
    OUTPUTS = 4
    key = jax.random.PRNGKey(0)
    kx, kp = jax.random.split(key)
    x = jax.random.normal(kx, (2, 3, H, W), jnp.float32)   # NCHW, like PyTorch
    params = init_params(kp, H, W, OUTPUTS)
    kparams = prepare_params(params, H, W)                 # one-time layout prep

    fwd = jax.jit(dqn_forward)
    out = jax.block_until_ready(fwd(x, kparams))
    ref = jax.block_until_ready(ref_forward(x, params))
    np.testing.assert_allclose(np.asarray(out), np.asarray(ref),
                               rtol=2e-2, atol=2e-2)
    print("KERNEL_OK")
</pallas_src>

<mosaic_0001>
module attributes {stable_mosaic.version = 11 : i64} {
  func.func @_conv_bn_relu_kernel(%arg0: i32, %arg1: memref<128x27xf32, #tpu.memory_space<vmem>>, %arg2: memref<27x32xf32, #tpu.memory_space<vmem>>, %arg3: memref<1x32xf32, #tpu.memory_space<vmem>>, %arg4: memref<1x32xf32, #tpu.memory_space<vmem>>, %arg5: memref<1x32xf32, #tpu.memory_space<vmem>>, %arg6: memref<128x32xf32, #tpu.memory_space<vmem>>) attributes {dimension_semantics = [#tpu.dimension_semantics<arbitrary>], iteration_bounds = array<i64: 1>, scalar_prefetch = 0 : i64, scratch_operands = 0 : i64, tpu.core_type = #tpu.core_type<tc>, window_params = [{pipeline_mode = #tpu.pipeline_mode<synchronous>, transform_indices = @transform_0, window_bounds = array<i64: 128, 27>}, {pipeline_mode = #tpu.pipeline_mode<synchronous>, transform_indices = @transform_1, window_bounds = array<i64: 27, 32>}, {pipeline_mode = #tpu.pipeline_mode<synchronous>, transform_indices = @transform_2, window_bounds = array<i64: 1, 32>}, {pipeline_mode = #tpu.pipeline_mode<synchronous>, transform_indices = @transform_3, window_bounds = array<i64: 1, 32>}, {pipeline_mode = #tpu.pipeline_mode<synchronous>, transform_indices = @transform_4, window_bounds = array<i64: 1, 32>}, {pipeline_mode = #tpu.pipeline_mode<synchronous>, transform_indices = @transform_5, window_bounds = array<i64: 128, 32>}]} {
    %c0 = arith.constant 0 : index
    %c0_0 = arith.constant 0 : index
    %0 = vector.load %arg1[%c0, %c0_0] : memref<128x27xf32, #tpu.memory_space<vmem>>, vector<128x27xf32>
    %c0_1 = arith.constant 0 : index
    %c0_2 = arith.constant 0 : index
    %1 = vector.load %arg2[%c0_1, %c0_2] : memref<27x32xf32, #tpu.memory_space<vmem>>, vector<27x32xf32>
    %cst = arith.constant dense<0.000000e+00> : vector<128x32xf32>
    %2 = tpu.matmul %0, %1, %cst {dimension_numbers = #tpu.dot_dimension_numbers<[1], [0], [0], [1], [0, 0, 1, 1], [], []>} : vector<128x27xf32>, vector<27x32xf32>, vector<128x32xf32> -> vector<128x32xf32>
    %c0_3 = arith.constant 0 : index
    %c0_4 = arith.constant 0 : index
    %3 = vector.load %arg3[%c0_3, %c0_4] : memref<1x32xf32, #tpu.memory_space<vmem>>, vector<1x32xf32>
    %4 = vector.broadcast %3 : vector<1x32xf32> to vector<128x32xf32>
    %5 = arith.addf %2, %4 : vector<128x32xf32>
    %cst_5 = arith.constant dense<0.000000e+00> : vector<32xf32>
    %6 = vector.multi_reduction <add>, %5, %cst_5 [0] : vector<128x32xf32> to vector<32xf32>
    %7 = vector.shape_cast %6 : vector<32xf32> to vector<1x32xf32>
    %cst_6 = arith.constant 1.280000e+02 : f32
    %8 = vector.broadcast %cst_6 : f32 to vector<1x32xf32>
    %9 = arith.divf %7, %8 : vector<1x32xf32>
    %10 = vector.broadcast %9 : vector<1x32xf32> to vector<128x32xf32>
    %11 = arith.subf %5, %10 : vector<128x32xf32>
    %12 = arith.mulf %11, %11 : vector<128x32xf32>
    %cst_7 = arith.constant dense<0.000000e+00> : vector<32xf32>
    %13 = vector.multi_reduction <add>, %12, %cst_7 [0] : vector<128x32xf32> to vector<32xf32>
    %14 = vector.shape_cast %13 : vector<32xf32> to vector<1x32xf32>
    %cst_8 = arith.constant 1.280000e+02 : f32
    %15 = vector.broadcast %cst_8 : f32 to vector<1x32xf32>
    %16 = arith.divf %14, %15 : vector<1x32xf32>
    %c0_9 = arith.constant 0 : index
    %c0_10 = arith.constant 0 : index
    %17 = vector.load %arg4[%c0_9, %c0_10] : memref<1x32xf32, #tpu.memory_space<vmem>>, vector<1x32xf32>
    %cst_11 = arith.constant 9.99999974E-6 : f32
    %18 = vector.broadcast %cst_11 : f32 to vector<1x32xf32>
    %19 = arith.addf %16, %18 : vector<1x32xf32>
    %20 = math.rsqrt %19 : vector<1x32xf32>
    %21 = arith.mulf %17, %20 : vector<1x32xf32>
    %c0_12 = arith.constant 0 : index
    %c0_13 = arith.constant 0 : index
    %22 = vector.load %arg5[%c0_12, %c0_13] : memref<1x32xf32, #tpu.memory_space<vmem>>, vector<1x32xf32>
    %23 = arith.mulf %9, %21 : vector<1x32xf32>
    %24 = arith.subf %22, %23 : vector<1x32xf32>
    %25 = vector.broadcast %21 : vector<1x32xf32> to vector<128x32xf32>
    %26 = arith.mulf %5, %25 : vector<128x32xf32>
    %27 = vector.broadcast %24 : vector<1x32xf32> to vector<128x32xf32>
    %28 = arith.addf %26, %27 : vector<128x32xf32>
    %cst_14 = arith.constant 0.000000e+00 : f32
    %29 = vector.broadcast %cst_14 : f32 to vector<128x32xf32>
    %30 = arith.maximumf %28, %29 : vector<128x32xf32>
    %c0_15 = arith.constant 0 : index
    %c0_16 = arith.constant 0 : index
    %31 = vector.load %arg6[%c0_15, %c0_16] : memref<128x32xf32, #tpu.memory_space<vmem>>, vector<128x32xf32>
    tpu.vector_store %arg6[%c0_15, %c0_16], %30 {strides = array<i32>} : memref<128x32xf32, #tpu.memory_space<vmem>>, vector<128x32xf32>,
    return
  }
  func.func @transform_0(%arg0: i32) -> (i32, i32) {
    %c0_i32 = arith.constant 0 : i32
    %c0_i32_0 = arith.constant 0 : i32
    %c0_i32_1 = arith.constant 0 : i32
    return %c0_i32, %c0_i32_0 : i32, i32
  }
  func.func @transform_1(%arg0: i32) -> (i32, i32) {
    %c0_i32 = arith.constant 0 : i32
    %c0_i32_0 = arith.constant 0 : i32
    %c0_i32_1 = arith.constant 0 : i32
    return %c0_i32, %c0_i32_0 : i32, i32
  }
  func.func @transform_2(%arg0: i32) -> (i32, i32) {
    %c0_i32 = arith.constant 0 : i32
    %c0_i32_0 = arith.constant 0 : i32
    %c0_i32_1 = arith.constant 0 : i32
    return %c0_i32, %c0_i32_0 : i32, i32
  }
  func.func @transform_3(%arg0: i32) -> (i32, i32) {
    %c0_i32 = arith.constant 0 : i32
    %c0_i32_0 = arith.constant 0 : i32
    %c0_i32_1 = arith.constant 0 : i32
    return %c0_i32, %c0_i32_0 : i32, i32
  }
  func.func @transform_4(%arg0: i32) -> (i32, i32) {
    %c0_i32 = arith.constant 0 : i32
    %c0_i32_0 = arith.constant 0 : i32
    %c0_i32_1 = arith.constant 0 : i32
    return %c0_i32, %c0_i32_0 : i32, i32
  }
  func.func @transform_5(%arg0: i32) -> (i32, i32) {
    %c0_i32 = arith.constant 0 : i32
    %c0_i32_0 = arith.constant 0 : i32
    %c0_i32_1 = arith.constant 0 : i32
    return %c0_i32, %c0_i32_0 : i32, i32
  }
}

module attributes {stable_mosaic.version = 11 : i64} {
  func.func @_conv_bn_relu_kernel(%arg0: i32, %arg1: memref<32x288xf32, #tpu.memory_space<vmem>>, %arg2: memref<288x64xf32, #tpu.memory_space<vmem>>, %arg3: memref<1x64xf32, #tpu.memory_space<vmem>>, %arg4: memref<1x64xf32, #tpu.memory_space<vmem>>, %arg5: memref<1x64xf32, #tpu.memory_space<vmem>>, %arg6: memref<32x64xf32, #tpu.memory_space<vmem>>) attributes {dimension_semantics = [#tpu.dimension_semantics<arbitrary>], iteration_bounds = array<i64: 1>, scalar_prefetch = 0 : i64, scratch_operands = 0 : i64, tpu.core_type = #tpu.core_type<tc>, window_params = [{pipeline_mode = #tpu.pipeline_mode<synchronous>, transform_indices = @transform_0, window_bounds = array<i64: 32, 288>}, {pipeline_mode = #tpu.pipeline_mode<synchronous>, transform_indices = @transform_1, window_bounds = array<i64: 288, 64>}, {pipeline_mode = #tpu.pipeline_mode<synchronous>, transform_indices = @transform_2, window_bounds = array<i64: 1, 64>}, {pipeline_mode = #tpu.pipeline_mode<synchronous>, transform_indices = @transform_3, window_bounds = array<i64: 1, 64>}, {pipeline_mode = #tpu.pipeline_mode<synchronous>, transform_indices = @transform_4, window_bounds = array<i64: 1, 64>}, {pipeline_mode = #tpu.pipeline_mode<synchronous>, transform_indices = @transform_5, window_bounds = array<i64: 32, 64>}]} {
    %c0 = arith.constant 0 : index
    %c0_0 = arith.constant 0 : index
    %0 = vector.load %arg1[%c0, %c0_0] : memref<32x288xf32, #tpu.memory_space<vmem>>, vector<32x288xf32>
    %c0_1 = arith.constant 0 : index
    %c0_2 = arith.constant 0 : index
    %1 = vector.load %arg2[%c0_1, %c0_2] : memref<288x64xf32, #tpu.memory_space<vmem>>, vector<288x64xf32>
    %cst = arith.constant dense<0.000000e+00> : vector<32x64xf32>
    %2 = tpu.matmul %0, %1, %cst {dimension_numbers = #tpu.dot_dimension_numbers<[1], [0], [0], [1], [0, 0, 1, 1], [], []>} : vector<32x288xf32>, vector<288x64xf32>, vector<32x64xf32> -> vector<32x64xf32>
    %c0_3 = arith.constant 0 : index
    %c0_4 = arith.constant 0 : index
    %3 = vector.load %arg3[%c0_3, %c0_4] : memref<1x64xf32, #tpu.memory_space<vmem>>, vector<1x64xf32>
    %4 = vector.broadcast %3 : vector<1x64xf32> to vector<32x64xf32>
    %5 = arith.addf %2, %4 : vector<32x64xf32>
    %cst_5 = arith.constant dense<0.000000e+00> : vector<64xf32>
    %6 = vector.multi_reduction <add>, %5, %cst_5 [0] : vector<32x64xf32> to vector<64xf32>
    %7 = vector.shape_cast %6 : vector<64xf32> to vector<1x64xf32>
    %cst_6 = arith.constant 3.200000e+01 : f32
    %8 = vector.broadcast %cst_6 : f32 to vector<1x64xf32>
    %9 = arith.divf %7, %8 : vector<1x64xf32>
    %10 = vector.broadcast %9 : vector<1x64xf32> to vector<32x64xf32>
    %11 = arith.subf %5, %10 : vector<32x64xf32>
    %12 = arith.mulf %11, %11 : vector<32x64xf32>
    %cst_7 = arith.constant dense<0.000000e+00> : vector<64xf32>
    %13 = vector.multi_reduction <add>, %12, %cst_7 [0] : vector<32x64xf32> to vector<64xf32>
    %14 = vector.shape_cast %13 : vector<64xf32> to vector<1x64xf32>
    %cst_8 = arith.constant 3.200000e+01 : f32
    %15 = vector.broadcast %cst_8 : f32 to vector<1x64xf32>
    %16 = arith.divf %14, %15 : vector<1x64xf32>
    %c0_9 = arith.constant 0 : index
    %c0_10 = arith.constant 0 : index
    %17 = vector.load %arg4[%c0_9, %c0_10] : memref<1x64xf32, #tpu.memory_space<vmem>>, vector<1x64xf32>
    %cst_11 = arith.constant 9.99999974E-6 : f32
    %18 = vector.broadcast %cst_11 : f32 to vector<1x64xf32>
    %19 = arith.addf %16, %18 : vector<1x64xf32>
    %20 = math.rsqrt %19 : vector<1x64xf32>
    %21 = arith.mulf %17, %20 : vector<1x64xf32>
    %c0_12 = arith.constant 0 : index
    %c0_13 = arith.constant 0 : index
    %22 = vector.load %arg5[%c0_12, %c0_13] : memref<1x64xf32, #tpu.memory_space<vmem>>, vector<1x64xf32>
    %23 = arith.mulf %9, %21 : vector<1x64xf32>
    %24 = arith.subf %22, %23 : vector<1x64xf32>
    %25 = vector.broadcast %21 : vector<1x64xf32> to vector<32x64xf32>
    %26 = arith.mulf %5, %25 : vector<32x64xf32>
    %27 = vector.broadcast %24 : vector<1x64xf32> to vector<32x64xf32>
    %28 = arith.addf %26, %27 : vector<32x64xf32>
    %cst_14 = arith.constant 0.000000e+00 : f32
    %29 = vector.broadcast %cst_14 : f32 to vector<32x64xf32>
    %30 = arith.maximumf %28, %29 : vector<32x64xf32>
    %c0_15 = arith.constant 0 : index
    %c0_16 = arith.constant 0 : index
    %31 = vector.load %arg6[%c0_15, %c0_16] : memref<32x64xf32, #tpu.memory_space<vmem>>, vector<32x64xf32>
    tpu.vector_store %arg6[%c0_15, %c0_16], %30 {strides = array<i32>} : memref<32x64xf32, #tpu.memory_space<vmem>>, vector<32x64xf32>,
    return
  }
  func.func @transform_0(%arg0: i32) -> (i32, i32) {
    %c0_i32 = arith.constant 0 : i32
    %c0_i32_0 = arith.constant 0 : i32
    %c0_i32_1 = arith.constant 0 : i32
    return %c0_i32, %c0_i32_0 : i32, i32
  }
  func.func @transform_1(%arg0: i32) -> (i32, i32) {
    %c0_i32 = arith.constant 0 : i32
    %c0_i32_0 = arith.constant 0 : i32
    %c0_i32_1 = arith.constant 0 : i32
    return %c0_i32, %c0_i32_0 : i32, i32
  }
  func.func @transform_2(%arg0: i32) -> (i32, i32) {
    %c0_i32 = arith.constant 0 : i32
    %c0_i32_0 = arith.constant 0 : i32
    %c0_i32_1 = arith.constant 0 : i32
    return %c0_i32, %c0_i32_0 : i32, i32
  }
  func.func @transform_3(%arg0: i32) -> (i32, i32) {
    %c0_i32 = arith.constant 0 : i32
    %c0_i32_0 = arith.constant 0 : i32
    %c0_i32_1 = arith.constant 0 : i32
    return %c0_i32, %c0_i32_0 : i32, i32
  }
  func.func @transform_4(%arg0: i32) -> (i32, i32) {
    %c0_i32 = arith.constant 0 : i32
    %c0_i32_0 = arith.constant 0 : i32
    %c0_i32_1 = arith.constant 0 : i32
    return %c0_i32, %c0_i32_0 : i32, i32
  }
  func.func @transform_5(%arg0: i32) -> (i32, i32) {
    %c0_i32 = arith.constant 0 : i32
    %c0_i32_0 = arith.constant 0 : i32
    %c0_i32_1 = arith.constant 0 : i32
    return %c0_i32, %c0_i32_0 : i32, i32
  }
}

module attributes {stable_mosaic.version = 11 : i64} {
  func.func @_conv_bn_relu_kernel(%arg0: i32, %arg1: memref<8x576xf32, #tpu.memory_space<vmem>>, %arg2: memref<576x128xf32, #tpu.memory_space<vmem>>, %arg3: memref<1x128xf32, #tpu.memory_space<vmem>>, %arg4: memref<1x128xf32, #tpu.memory_space<vmem>>, %arg5: memref<1x128xf32, #tpu.memory_space<vmem>>, %arg6: memref<8x128xf32, #tpu.memory_space<vmem>>) attributes {dimension_semantics = [#tpu.dimension_semantics<arbitrary>], iteration_bounds = array<i64: 1>, scalar_prefetch = 0 : i64, scratch_operands = 0 : i64, tpu.core_type = #tpu.core_type<tc>, window_params = [{pipeline_mode = #tpu.pipeline_mode<synchronous>, transform_indices = @transform_0, window_bounds = array<i64: 8, 576>}, {pipeline_mode = #tpu.pipeline_mode<synchronous>, transform_indices = @transform_1, window_bounds = array<i64: 576, 128>}, {pipeline_mode = #tpu.pipeline_mode<synchronous>, transform_indices = @transform_2, window_bounds = array<i64: 1, 128>}, {pipeline_mode = #tpu.pipeline_mode<synchronous>, transform_indices = @transform_3, window_bounds = array<i64: 1, 128>}, {pipeline_mode = #tpu.pipeline_mode<synchronous>, transform_indices = @transform_4, window_bounds = array<i64: 1, 128>}, {pipeline_mode = #tpu.pipeline_mode<synchronous>, transform_indices = @transform_5, window_bounds = array<i64: 8, 128>}]} {
    %c0 = arith.constant 0 : index
    %c0_0 = arith.constant 0 : index
    %0 = vector.load %arg1[%c0, %c0_0] : memref<8x576xf32, #tpu.memory_space<vmem>>, vector<8x576xf32>
    %c0_1 = arith.constant 0 : index
    %c0_2 = arith.constant 0 : index
    %1 = vector.load %arg2[%c0_1, %c0_2] : memref<576x128xf32, #tpu.memory_space<vmem>>, vector<576x128xf32>
    %cst = arith.constant dense<0.000000e+00> : vector<8x128xf32>
    %2 = tpu.matmul %0, %1, %cst {dimension_numbers = #tpu.dot_dimension_numbers<[1], [0], [0], [1], [0, 0, 1, 1], [], []>} : vector<8x576xf32>, vector<576x128xf32>, vector<8x128xf32> -> vector<8x128xf32>
    %c0_3 = arith.constant 0 : index
    %c0_4 = arith.constant 0 : index
    %3 = vector.load %arg3[%c0_3, %c0_4] : memref<1x128xf32, #tpu.memory_space<vmem>>, vector<1x128xf32>
    %4 = vector.broadcast %3 : vector<1x128xf32> to vector<8x128xf32>
    %5 = arith.addf %2, %4 : vector<8x128xf32>
    %cst_5 = arith.constant dense<0.000000e+00> : vector<128xf32>
    %6 = vector.multi_reduction <add>, %5, %cst_5 [0] : vector<8x128xf32> to vector<128xf32>
    %7 = vector.shape_cast %6 : vector<128xf32> to vector<1x128xf32>
    %cst_6 = arith.constant 8.000000e+00 : f32
    %8 = vector.broadcast %cst_6 : f32 to vector<1x128xf32>
    %9 = arith.divf %7, %8 : vector<1x128xf32>
    %10 = vector.broadcast %9 : vector<1x128xf32> to vector<8x128xf32>
    %11 = arith.subf %5, %10 : vector<8x128xf32>
    %12 = arith.mulf %11, %11 : vector<8x128xf32>
    %cst_7 = arith.constant dense<0.000000e+00> : vector<128xf32>
    %13 = vector.multi_reduction <add>, %12, %cst_7 [0] : vector<8x128xf32> to vector<128xf32>
    %14 = vector.shape_cast %13 : vector<128xf32> to vector<1x128xf32>
    %cst_8 = arith.constant 8.000000e+00 : f32
    %15 = vector.broadcast %cst_8 : f32 to vector<1x128xf32>
    %16 = arith.divf %14, %15 : vector<1x128xf32>
    %c0_9 = arith.constant 0 : index
    %c0_10 = arith.constant 0 : index
    %17 = vector.load %arg4[%c0_9, %c0_10] : memref<1x128xf32, #tpu.memory_space<vmem>>, vector<1x128xf32>
    %cst_11 = arith.constant 9.99999974E-6 : f32
    %18 = vector.broadcast %cst_11 : f32 to vector<1x128xf32>
    %19 = arith.addf %16, %18 : vector<1x128xf32>
    %20 = math.rsqrt %19 : vector<1x128xf32>
    %21 = arith.mulf %17, %20 : vector<1x128xf32>
    %c0_12 = arith.constant 0 : index
    %c0_13 = arith.constant 0 : index
    %22 = vector.load %arg5[%c0_12, %c0_13] : memref<1x128xf32, #tpu.memory_space<vmem>>, vector<1x128xf32>
    %23 = arith.mulf %9, %21 : vector<1x128xf32>
    %24 = arith.subf %22, %23 : vector<1x128xf32>
    %25 = vector.broadcast %21 : vector<1x128xf32> to vector<8x128xf32>
    %26 = arith.mulf %5, %25 : vector<8x128xf32>
    %27 = vector.broadcast %24 : vector<1x128xf32> to vector<8x128xf32>
    %28 = arith.addf %26, %27 : vector<8x128xf32>
    %cst_14 = arith.constant 0.000000e+00 : f32
    %29 = vector.broadcast %cst_14 : f32 to vector<8x128xf32>
    %30 = arith.maximumf %28, %29 : vector<8x128xf32>
    %c0_15 = arith.constant 0 : index
    %c0_16 = arith.constant 0 : index
    %31 = vector.load %arg6[%c0_15, %c0_16] : memref<8x128xf32, #tpu.memory_space<vmem>>, vector<8x128xf32>
    tpu.vector_store %arg6[%c0_15, %c0_16], %30 {strides = array<i32>} : memref<8x128xf32, #tpu.memory_space<vmem>>, vector<8x128xf32>,
    return
  }
  func.func @transform_0(%arg0: i32) -> (i32, i32) {
    %c0_i32 = arith.constant 0 : i32
    %c0_i32_0 = arith.constant 0 : i32
    %c0_i32_1 = arith.constant 0 : i32
    return %c0_i32, %c0_i32_0 : i32, i32
  }
  func.func @transform_1(%arg0: i32) -> (i32, i32) {
    %c0_i32 = arith.constant 0 : i32
    %c0_i32_0 = arith.constant 0 : i32
    %c0_i32_1 = arith.constant 0 : i32
    return %c0_i32, %c0_i32_0 : i32, i32
  }
  func.func @transform_2(%arg0: i32) -> (i32, i32) {
    %c0_i32 = arith.constant 0 : i32
    %c0_i32_0 = arith.constant 0 : i32
    %c0_i32_1 = arith.constant 0 : i32
    return %c0_i32, %c0_i32_0 : i32, i32
  }
  func.func @transform_3(%arg0: i32) -> (i32, i32) {
    %c0_i32 = arith.constant 0 : i32
    %c0_i32_0 = arith.constant 0 : i32
    %c0_i32_1 = arith.constant 0 : i32
    return %c0_i32, %c0_i32_0 : i32, i32
  }
  func.func @transform_4(%arg0: i32) -> (i32, i32) {
    %c0_i32 = arith.constant 0 : i32
    %c0_i32_0 = arith.constant 0 : i32
    %c0_i32_1 = arith.constant 0 : i32
    return %c0_i32, %c0_i32_0 : i32, i32
  }
  func.func @transform_5(%arg0: i32) -> (i32, i32) {
    %c0_i32 = arith.constant 0 : i32
    %c0_i32_0 = arith.constant 0 : i32
    %c0_i32_1 = arith.constant 0 : i32
    return %c0_i32, %c0_i32_0 : i32, i32
  }
}

module attributes {stable_mosaic.version = 11 : i64} {
  func.func @_fc_fused_kernel(%arg0: i32, %arg1: memref<2x512xbf16, #tpu.memory_space<vmem>>, %arg2: memref<512x512xbf16, #tpu.memory_space<vmem>>, %arg3: memref<1x512xf32, #tpu.memory_space<vmem>>, %arg4: memref<512x1024xbf16, #tpu.memory_space<vmem>>, %arg5: memref<1x1024xf32, #tpu.memory_space<vmem>>, %arg6: memref<1024x4xbf16, #tpu.memory_space<vmem>>, %arg7: memref<1x4xf32, #tpu.memory_space<vmem>>, %arg8: memref<2x4xf32, #tpu.memory_space<vmem>>, %arg9: memref<2x1024xf32, #tpu.memory_space<vmem>>) attributes {dimension_semantics = [#tpu.dimension_semantics<arbitrary>], iteration_bounds = array<i64: 8>, scalar_prefetch = 0 : i64, scratch_operands = 1 : i64, tpu.core_type = #tpu.core_type<tc>, window_params = [{pipeline_mode = #tpu.pipeline_mode<synchronous>, transform_indices = @transform_0, window_bounds = array<i64: 2, 512>}, {transform_indices = @transform_1, window_bounds = array<i64: 512, 512>}, {transform_indices = @transform_2, window_bounds = array<i64: 1, 512>}, {transform_indices = @transform_3, window_bounds = array<i64: 512, 1024>}, {pipeline_mode = #tpu.pipeline_mode<synchronous>, transform_indices = @transform_4, window_bounds = array<i64: 1, 1024>}, {pipeline_mode = #tpu.pipeline_mode<synchronous>, transform_indices = @transform_5, window_bounds = array<i64: 1024, 4>}, {pipeline_mode = #tpu.pipeline_mode<synchronous>, transform_indices = @transform_6, window_bounds = array<i64: 1, 4>}, {pipeline_mode = #tpu.pipeline_mode<synchronous>, transform_indices = @transform_7, window_bounds = array<i64: 2, 4>}]} {
    %c0_i32 = arith.constant 0 : i32
    %0 = arith.cmpi eq, %arg0, %c0_i32 : i32
    %1 = arith.extui %0 : i1 to i32
    %c0_i32_0 = arith.constant 0 : i32
    %2 = arith.cmpi ne, %1, %c0_i32_0 : i32
    scf.if %2 {
      %cst_14 = arith.constant 0.000000e+00 : f32
      %18 = vector.broadcast %cst_14 : f32 to vector<2x1024xf32>
      %c0_15 = arith.constant 0 : index
      %c0_16 = arith.constant 0 : index
      %19 = vector.load %arg9[%c0_15, %c0_16] : memref<2x1024xf32, #tpu.memory_space<vmem>>, vector<2x1024xf32>
      tpu.vector_store %arg9[%c0_15, %c0_16], %18 {strides = array<i32>} : memref<2x1024xf32, #tpu.memory_space<vmem>>, vector<2x1024xf32>,
    } else {
    }
    %c0 = arith.constant 0 : index
    %c0_1 = arith.constant 0 : index
    %3 = vector.load %arg1[%c0, %c0_1] : memref<2x512xbf16, #tpu.memory_space<vmem>>, vector<2x512xbf16>
    %c0_2 = arith.constant 0 : index
    %c0_3 = arith.constant 0 : index
    %4 = vector.load %arg2[%c0_2, %c0_3] : memref<512x512xbf16, #tpu.memory_space<vmem>>, vector<512x512xbf16>
    %cst = arith.constant dense<0.000000e+00> : vector<2x512xf32>
    %5 = tpu.matmul %3, %4, %cst {dimension_numbers = #tpu.dot_dimension_numbers<[1], [0], [0], [1], [0, 0, 1, 1], [], []>} : vector<2x512xbf16>, vector<512x512xbf16>, vector<2x512xf32> -> vector<2x512xf32>
    %c0_4 = arith.constant 0 : index
    %c0_5 = arith.constant 0 : index
    %6 = vector.load %arg3[%c0_4, %c0_5] : memref<1x512xf32, #tpu.memory_space<vmem>>, vector<1x512xf32>
    %7 = vector.broadcast %6 : vector<1x512xf32> to vector<2x512xf32>
    %8 = arith.addf %5, %7 : vector<2x512xf32>
    %c0_6 = arith.constant 0 : index
    %c0_7 = arith.constant 0 : index
    %9 = vector.load %arg9[%c0_6, %c0_7] : memref<2x1024xf32, #tpu.memory_space<vmem>>, vector<2x1024xf32>
    %10 = arith.truncf %8 : vector<2x512xf32> to vector<2x512xbf16>
    %c0_8 = arith.constant 0 : index
    %c0_9 = arith.constant 0 : index
    %11 = vector.load %arg4[%c0_8, %c0_9] : memref<512x1024xbf16, #tpu.memory_space<vmem>>, vector<512x1024xbf16>
    %cst_10 = arith.constant dense<0.000000e+00> : vector<2x1024xf32>
    %12 = tpu.matmul %10, %11, %cst_10 {dimension_numbers = #tpu.dot_dimension_numbers<[1], [0], [0], [1], [0, 0, 1, 1], [], []>} : vector<2x512xbf16>, vector<512x1024xbf16>, vector<2x1024xf32> -> vector<2x1024xf32>
    %13 = arith.addf %9, %12 : vector<2x1024xf32>
    %c0_11 = arith.constant 0 : index
    %c0_12 = arith.constant 0 : index
    %14 = vector.load %arg9[%c0_11, %c0_12] : memref<2x1024xf32, #tpu.memory_space<vmem>>, vector<2x1024xf32>
    tpu.vector_store %arg9[%c0_11, %c0_12], %13 {strides = array<i32>} : memref<2x1024xf32, #tpu.memory_space<vmem>>, vector<2x1024xf32>,
    %c7_i32 = arith.constant 7 : i32
    %15 = arith.cmpi eq, %arg0, %c7_i32 : i32
    %16 = arith.extui %15 : i1 to i32
    %c0_i32_13 = arith.constant 0 : i32
    %17 = arith.cmpi ne, %16, %c0_i32_13 : i32
    scf.if %17 {
      %c0_14 = arith.constant 0 : index
      %c0_15 = arith.constant 0 : index
      %18 = vector.load %arg9[%c0_14, %c0_15] : memref<2x1024xf32, #tpu.memory_space<vmem>>, vector<2x1024xf32>
      %c0_16 = arith.constant 0 : index
      %c0_17 = arith.constant 0 : index
      %19 = vector.load %arg5[%c0_16, %c0_17] : memref<1x1024xf32, #tpu.memory_space<vmem>>, vector<1x1024xf32>
      %20 = vector.broadcast %19 : vector<1x1024xf32> to vector<2x1024xf32>
      %21 = arith.addf %18, %20 : vector<2x1024xf32>
      %22 = arith.truncf %21 : vector<2x1024xf32> to vector<2x1024xbf16>
      %c0_18 = arith.constant 0 : index
      %c0_19 = arith.constant 0 : index
      %23 = vector.load %arg6[%c0_18, %c0_19] : memref<1024x4xbf16, #tpu.memory_space<vmem>>, vector<1024x4xbf16>
      %cst_20 = arith.constant dense<0.000000e+00> : vector<2x4xf32>
      %24 = tpu.matmul %22, %23, %cst_20 {dimension_numbers = #tpu.dot_dimension_numbers<[1], [0], [0], [1], [0, 0, 1, 1], [], []>} : vector<2x1024xbf16>, vector<1024x4xbf16>, vector<2x4xf32> -> vector<2x4xf32>
      %c0_21 = arith.constant 0 : index
      %c0_22 = arith.constant 0 : index
      %25 = vector.load %arg7[%c0_21, %c0_22] : memref<1x4xf32, #tpu.memory_space<vmem>>, vector<1x4xf32>
      %26 = vector.broadcast %25 : vector<1x4xf32> to vector<2x4xf32>
      %27 = arith.addf %24, %26 : vector<2x4xf32>
      %c0_23 = arith.constant 0 : index
      %c0_24 = arith.constant 0 : index
      %28 = vector.load %arg8[%c0_23, %c0_24] : memref<2x4xf32, #tpu.memory_space<vmem>>, vector<2x4xf32>
      tpu.vector_store %arg8[%c0_23, %c0_24], %27 {strides = array<i32>} : memref<2x4xf32, #tpu.memory_space<vmem>>, vector<2x4xf32>,
    } else {
    }
    return
  }
  func.func @transform_0(%arg0: i32) -> (i32, i32) {
    %c0_i32 = arith.constant 0 : i32
    %c0_i32_0 = arith.constant 0 : i32
    %c0_i32_1 = arith.constant 0 : i32
    return %c0_i32, %c0_i32_0 : i32, i32
  }
  func.func @transform_1(%arg0: i32) -> (i32, i32) {
    %c0_i32 = arith.constant 0 : i32
    %c0_i32_0 = arith.constant 0 : i32
    return %c0_i32, %arg0 : i32, i32
  }
  func.func @transform_2(%arg0: i32) -> (i32, i32) {
    %c0_i32 = arith.constant 0 : i32
    %c0_i32_0 = arith.constant 0 : i32
    return %c0_i32, %arg0 : i32, i32
  }
  func.func @transform_3(%arg0: i32) -> (i32, i32) {
    %c0_i32 = arith.constant 0 : i32
    %c0_i32_0 = arith.constant 0 : i32
    return %arg0, %c0_i32 : i32, i32
  }
  func.func @transform_4(%arg0: i32) -> (i32, i32) {
    %c0_i32 = arith.constant 0 : i32
    %c0_i32_0 = arith.constant 0 : i32
    %c0_i32_1 = arith.constant 0 : i32
    return %c0_i32, %c0_i32_0 : i32, i32
  }
  func.func @transform_5(%arg0: i32) -> (i32, i32) {
    %c0_i32 = arith.constant 0 : i32
    %c0_i32_0 = arith.constant 0 : i32
    %c0_i32_1 = arith.constant 0 : i32
    return %c0_i32, %c0_i32_0 : i32, i32
  }
  func.func @transform_6(%arg0: i32) -> (i32, i32) {
    %c0_i32 = arith.constant 0 : i32
    %c0_i32_0 = arith.constant 0 : i32
    %c0_i32_1 = arith.constant 0 : i32
    return %c0_i32, %c0_i32_0 : i32, i32
  }
  func.func @transform_7(%arg0: i32) -> (i32, i32) {
    %c0_i32 = arith.constant 0 : i32
    %c0_i32_0 = arith.constant 0 : i32
    %c0_i32_1 = arith.constant 0 : i32
    return %c0_i32, %c0_i32_0 : i32, i32
  }
}

</mosaic_0001>

<llo_original>
// kernel: dqn_forward.4
$region0: #{dqn_forward.4}
  #allocation0 [shape = 'u32[]', space=smem, size = 0x4, offset = 0x4, fixed_abs, tag = 'smem constant byte address 0x4 - core index']
  #allocation1 [shape = 'u32[144,128]{1,0:T(1,128)}', space=vmem, size = 0x12000, scoped, tag = 'internal scratch']
  %s0 = inlined_call_operand.vmem [shape: f32[128,27], index: 0, kind: input, shape index: {}]
  %s1 = inlined_call_operand.hbm [shape: f32[27,32], index: 1, kind: input, shape index: {}]
  %s2 = inlined_call_operand.hbm [shape: f32[1,32], index: 2, kind: input, shape index: {}]
  %s3 = inlined_call_operand.hbm [shape: f32[1,32], index: 3, kind: input, shape index: {}]
  %s4 = inlined_call_operand.hbm [shape: f32[1,32], index: 4, kind: input, shape index: {}]
  %s5 = inlined_call_operand.vmem [shape: f32[128,32], index: 5, kind: output, shape index: {}]
  %s6 = sld [smem:[#allocation0]]
  $region46: #{dqn_forward.4} parent=0
    _
  %s8 = ssub.s32 1, %s6
  %s9 = scalar_select 0, %s8, %s6
  $region1: #{dqn_forward.4} parent=0
    #allocation2 [shape = 'u8[16384]{0}', space=vmem, size = 0x4000, scoped, tag = 'input window, operand 1, single buffered']
    #allocation3 [shape = 's32[1]{0}', space=sflag, size = 0x4, scoped, tag = 'scoped memory for dqn_forward.4']
    #allocation4 [shape = 'u8[512]{0}', space=vmem, size = 0x400, scoped, tag = 'input window, operand 2, single buffered']
    #allocation5 [shape = 's32[1]{0}', space=sflag, size = 0x4, scoped, tag = 'scoped memory for dqn_forward.4']
    #allocation6 [shape = 'u8[512]{0}', space=vmem, size = 0x400, scoped, tag = 'input window, operand 3, single buffered']
    #allocation7 [shape = 'u8[512]{0}', space=vmem, size = 0x400, scoped, tag = 'input window, operand 4, single buffered']
    #allocation8 [shape = 's32[1]{0}', space=sflag, size = 0x4, scoped, tag = 'scoped memory for dqn_forward.4']
    %10 = vsyncpa [#allocation3], 0
    %11 = vsyncpa [#allocation5], 0
    %12 = vsyncpa [#allocation8], 0
    // Predicated region
    $region2: #{dqn_forward.4} parent=1 // pred_check
      _
    $region3: #{dqn_forward.4} parent=1 // pred_check_branch
      %14 = sbr.rel (0) target = $region5
    $region4: #{dqn_forward.4} parent=1 // pred_region
      _
    $region5: #{dqn_forward.4} parent=1 // pred_fallthru
      _
    // Predicated region
    $region6: #{dqn_forward.4} parent=1 // pred_check
      _
    $region7: #{dqn_forward.4} parent=1 // pred_check_branch
      %16 = sbr.rel (0) target = $region9
    $region8: #{dqn_forward.4} parent=1 // pred_region
      %s18 = ssub.s32 512, 512
      %19 = vsyncadd [#allocation3], %s18
      %s20 = sshll.u32 [#allocation2], 4
      %s21 = int_to_ptr.vmem [resolvable:$true] %s20
      %26 = dma.hbm_to_vmem [thread:$0]  %s1, 512, %s21, [#allocation3], 128, 128, 8
    $region9: #{dqn_forward.4} parent=1 // pred_fallthru
      _
    // Predicated region
    $region10: #{dqn_forward.4} parent=1 // pred_check
      _
    $region11: #{dqn_forward.4} parent=1 // pred_check_branch
      %28 = sbr.rel (0) target = $region13
    $region12: #{dqn_forward.4} parent=1 // pred_region
      %s30 = ssub.s32 16, 16
      %31 = vsyncadd [#allocation5], %s30
      %s33 = sshll.u32 [#allocation4], 4
      %s34 = int_to_ptr.vmem [resolvable:$true] %s33
      %36 = dma.hbm_to_vmem [thread:$0]  %s2, 16, %s34, [#allocation5]
    $region13: #{dqn_forward.4} parent=1 // pred_fallthru
      _
    // Predicated region
    $region14: #{dqn_forward.4} parent=1 // pred_check
      _
    $region15: #{dqn_forward.4} parent=1 // pred_check_branch
      %38 = sbr.rel (0) target = $region17
    $region16: #{dqn_forward.4} parent=1 // pred_region
      %s40 = ssub.s32 16, 16
      %41 = vsyncadd [#allocation5], %s40
      %s43 = sshll.u32 [#allocation6], 4
      %s44 = int_to_ptr.vmem [resolvable:$true] %s43
      %46 = dma.hbm_to_vmem [thread:$0]  %s3, 16, %s44, [#allocation5]
    $region17: #{dqn_forward.4} parent=1 // pred_fallthru
      _
    // Predicated region
    $region18: #{dqn_forward.4} parent=1 // pred_check
      _
    $region19: #{dqn_forward.4} parent=1 // pred_check_branch
      %48 = sbr.rel (0) target = $region21
    $region20: #{dqn_forward.4} parent=1 // pred_region
      %s50 = ssub.s32 16, 16
      %51 = vsyncadd [#allocation8], %s50
      %s53 = sshll.u32 [#allocation7], 4
      %s54 = int_to_ptr.vmem [resolvable:$true] %s53
      %56 = dma.hbm_to_vmem [thread:$0]  %s4, 16, %s54, [#allocation8]
    $region21: #{dqn_forward.4} parent=1 // pred_fallthru
      _
    // Predicated region
    $region22: #{dqn_forward.4} parent=1 // pred_check
      _
    $region23: #{dqn_forward.4} parent=1 // pred_check_branch
      %58 = sbr.rel (0) target = $region25
    $region24: #{dqn_forward.4} parent=1 // pred_region
      %59 = dma.done [#allocation3], 512
    $region25: #{dqn_forward.4} parent=1 // pred_fallthru
      _
    // Predicated region
    $region26: #{dqn_forward.4} parent=1 // pred_check
      _
    $region27: #{dqn_forward.4} parent=1 // pred_check_branch
      %61 = sbr.rel (0) target = $region29
    $region28: #{dqn_forward.4} parent=1 // pred_region
      %62 = dma.done [#allocation5], 16
    $region29: #{dqn_forward.4} parent=1 // pred_fallthru
      _
    // Predicated region
    $region30: #{dqn_forward.4} parent=1 // pred_check
      _
    $region31: #{dqn_forward.4} parent=1 // pred_check_branch
      %64 = sbr.rel (0) target = $region33
    $region32: #{dqn_forward.4} parent=1 // pred_region
      %65 = dma.done [#allocation5], 16
    $region33: #{dqn_forward.4} parent=1 // pred_fallthru
      _
    // Predicated region
    $region34: #{dqn_forward.4} parent=1 // pred_check
      _
    $region35: #{dqn_forward.4} parent=1 // pred_check_branch
      %67 = sbr.rel (0) target = $region37
    $region36: #{dqn_forward.4} parent=1 // pred_region
      %68 = dma.done [#allocation8], 16
    $region37: #{dqn_forward.4} parent=1 // pred_fallthru
      _
    %v69 = vld [vmem:[%s0] sm:$0xff]
    %v70 = vld [vmem:[%s0 + $0x8] sm:$0xff]
    %v71 = vld [vmem:[%s0 + $0x10] sm:$0xff]
    %v72 = vld [vmem:[%s0 + $0x18] sm:$0xff]
    %v73 = vld [vmem:[%s0 + $0x20] sm:$0xff]
    %v74 = vld [vmem:[%s0 + $0x28] sm:$0xff]
    %v75 = vld [vmem:[%s0 + $0x30] sm:$0xff]
    %v76 = vld [vmem:[%s0 + $0x38] sm:$0xff]
    %v77 = vld [vmem:[%s0 + $0x40] sm:$0xff]
    %v78 = vld [vmem:[%s0 + $0x48] sm:$0xff]
    %v79 = vld [vmem:[%s0 + $0x50] sm:$0xff]
    %v80 = vld [vmem:[%s0 + $0x58] sm:$0xff]
    %v81 = vld [vmem:[%s0 + $0x60] sm:$0xff]
    %v82 = vld [vmem:[%s0 + $0x68] sm:$0xff]
    %v83 = vld [vmem:[%s0 + $0x70] sm:$0xff]
    %v84 = vld [vmem:[%s0 + $0x78] sm:$0xff]
    %v85 = vld [vmem:[#allocation2] sm:$0xff]
    %v86 = vld [vmem:[#allocation2 + $0x8] sm:$0xff]
    %v87 = vld [vmem:[#allocation2 + $0x10] sm:$0xff]
    %v88 = vld [vmem:[#allocation2 + $0x18] sm:$0x7]
    %v89 = vld [vmem:[#allocation4] sm:$0x1]
    %v91 = vlaneseq
    %v92 = vshrl.u32 %v91, 7
    %v93 = vsub.s32 0, %v92
    %v94 = vrot.slane %v89, %v93
    %vm96 = vcmask 220160
    %v98 = vsel %vm96, %v69, 0
    %v101 = vsel %vm96, %v70, 0
    %v104 = vsel %vm96, %v71, 0
    %v107 = vsel %vm96, %v72, 0
    %v110 = vsel %vm96, %v73, 0
    %v113 = vsel %vm96, %v74, 0
    %v116 = vsel %vm96, %v75, 0
    %v119 = vsel %vm96, %v76, 0
    %v122 = vsel %vm96, %v77, 0
    %v125 = vsel %vm96, %v78, 0
    %v128 = vsel %vm96, %v79, 0
    %v131 = vsel %vm96, %v80, 0
    %v134 = vsel %vm96, %v81, 0
    %v137 = vsel %vm96, %v82, 0
    %v140 = vsel %vm96, %v83, 0
    %v143 = vsel %vm96, %v84, 0
    %vm145 = vcmask 1042432
    %v147 = vsel %vm145, %v88, 0
    %149 = vmatprep.subr.mxu0 0.0
    %150 = vmatpush1.msra.mxu0 %v85
    %151 = vmatprep.subr.mxu0 0.0
    %152 = vmatpush1.msra.mxu0 %v86
    %153 = vmatprep.subr.mxu0 0.0
    %154 = vmatpush1.msra.mxu0 %v87
    %155 = vmatprep.subr.mxu0 0.0
    %156 = vmatpush1.msra.mxu0 %v147
    %157 = vmatprep.subr.mxu0 0.0
    %158 = vmatpush1.msra.mxu0 0.0
    %159 = vmatprep.subr.mxu0 0.0
    %160 = vmatpush1.msra.mxu0 0.0
    %161 = vmatprep.subr.mxu0 0.0
    %162 = vmatpush1.msra.mxu0 0.0
    %163 = vmatprep.subr.mxu0 0.0
    %164 = vmatpush1.msra.mxu0 0.0
    %165 = vmatprep.subr.mxu0 0.0
    %166 = vmatpush1.msra.mxu0 0.0
    %167 = vmatprep.subr.mxu0 0.0
    %168 = vmatpush1.msra.mxu0 0.0
    %169 = vmatprep.subr.mxu0 0.0
    %170 = vmatpush1.msra.mxu0 0.0
    %171 = vmatprep.subr.mxu0 0.0
    %172 = vmatpush1.msra.mxu0 0.0
    %173 = vmatprep.subr.mxu0 0.0
    %174 = vmatpush1.msra.mxu0 0.0
    %175 = vmatprep.subr.mxu0 0.0
    %176 = vmatpush1.msra.mxu0 0.0
    %177 = vmatprep.subr.mxu0 0.0
    %178 = vmatpush1.msra.mxu0 0.0
    %179 = vmatprep.subr.mxu0 0.0
    %180 = vmatpush1.msra.mxu0 0.0
    %181 = vmatprep.subr.mxu0 0.0
    %182 = vmatpush1.msra.mxu0 0.0
    %183 = vmatprep.subr.mxu0 0.0
    %184 = vmatpush1.msra.mxu0 0.0
    %185 = vmatprep.subr.mxu0 0.0
    %186 = vmatpush1.msra.mxu0 0.0
    %187 = vmatprep.subr.mxu0 0.0
    %188 = vmatpush1.msra.mxu0 0.0
    %189 = vmatprep.subr.mxu0 0.0
    %190 = vmatpush1.msra.mxu0 0.0
    %191 = vmatprep.subr.mxu0 0.0
    %192 = vmatpush1.msra.mxu0 0.0
    %193 = vmatprep.subr.mxu0 0.0
    %194 = vmatpush1.msra.mxu0 0.0
    %195 = vmatprep.subr.mxu0 0.0
    %196 = vmatpush1.msra.mxu0 0.0
    %197 = vmatprep.subr.mxu0 0.0
    %198 = vmatpush1.msra.mxu0 0.0
    %199 = vmatprep.subr.mxu0 0.0
    %200 = vmatpush1.msra.mxu0 0.0
    %201 = vmatprep.subr.mxu0 0.0
    %202 = vmatpush1.msra.mxu0 0.0
    %203 = vmatprep.subr.mxu0 0.0
    %204 = vmatpush1.msra.mxu0 0.0
    %205 = vmatprep.subr.mxu0 0.0
    %206 = vmatpush1.msra.mxu0 0.0
    %207 = vmatprep.subr.mxu0 0.0
    %208 = vmatpush1.msra.mxu0 0.0
    %209 = vmatprep.subr.mxu0 0.0
    %210 = vmatpush1.msra.mxu0 0.0
    %211 = vmatprep.subr.mxu0 0.0
    %212 = vmatpush1.msra.mxu0 0.0
    %213 = vmatprep.mubr.f32.mxu0 0.0
    %214 = vmatmul.mubr.f32.gmra.mrb[0].mxu0 %v98
    %v215 = vpop.f32.mrb[0].mxu0
    %v216 = vadd.f32 %v94, %v215
    %v217 = vpop.f32.mrb[0].mxu0
    %218 = vmatprep.mubr.f32.mxu0 0.0
    %219 = vmatmul.mubr.f32.gmra.mrb[0].mxu0 %v101
    %v220 = vpop.f32.mrb[0].mxu0
    %v221 = vadd.f32 %v94, %v220
    %v222 = vpop.f32.mrb[0].mxu0
    %223 = vmatprep.mubr.f32.mxu0 0.0
    %224 = vmatmul.mubr.f32.gmra.mrb[0].mxu0 %v104
    %v225 = vpop.f32.mrb[0].mxu0
    %v226 = vadd.f32 %v94, %v225
    %v227 = vpop.f32.mrb[0].mxu0
    %228 = vmatprep.mubr.f32.mxu0 0.0
    %229 = vmatmul.mubr.f32.gmra.mrb[0].mxu0 %v107
    %v230 = vpop.f32.mrb[0].mxu0
    %v231 = vadd.f32 %v94, %v230
    %v232 = vpop.f32.mrb[0].mxu0
    %233 = vmatprep.mubr.f32.mxu0 0.0
    %234 = vmatmul.mubr.f32.gmra.mrb[0].mxu0 %v110
    %v235 = vpop.f32.mrb[0].mxu0
    %v236 = vadd.f32 %v94, %v235
    %v237 = vpop.f32.mrb[0].mxu0
    %238 = vmatprep.mubr.f32.mxu0 0.0
    %239 = vmatmul.mubr.f32.gmra.mrb[0].mxu0 %v113
    %v240 = vpop.f32.mrb[0].mxu0
    %v241 = vadd.f32 %v94, %v240
    %v242 = vpop.f32.mrb[0].mxu0
    %243 = vmatprep.mubr.f32.mxu0 0.0
    %244 = vmatmul.mubr.f32.gmra.mrb[0].mxu0 %v116
    %v245 = vpop.f32.mrb[0].mxu0
    %v246 = vadd.f32 %v94, %v245
    %v247 = vpop.f32.mrb[0].mxu0
    %248 = vmatprep.mubr.f32.mxu0 0.0
    %249 = vmatmul.mubr.f32.gmra.mrb[0].mxu0 %v119
    %v250 = vpop.f32.mrb[0].mxu0
    %v251 = vadd.f32 %v94, %v250
    %v252 = vpop.f32.mrb[0].mxu0
    %253 = vmatprep.mubr.f32.mxu0 0.0
    %254 = vmatmul.mubr.f32.gmra.mrb[0].mxu0 %v122
    %v255 = vpop.f32.mrb[0].mxu0
    %v256 = vadd.f32 %v94, %v255
    %v257 = vpop.f32.mrb[0].mxu0
    %258 = vmatprep.mubr.f32.mxu0 0.0
    %259 = vmatmul.mubr.f32.gmra.mrb[0].mxu0 %v125
    %v260 = vpop.f32.mrb[0].mxu0
    %v261 = vadd.f32 %v94, %v260
    %v262 = vpop.f32.mrb[0].mxu0
    %263 = vmatprep.mubr.f32.mxu0 0.0
    %264 = vmatmul.mubr.f32.gmra.mrb[0].mxu0 %v128
    %v265 = vpop.f32.mrb[0].mxu0
    %v266 = vadd.f32 %v94, %v265
    %v267 = vpop.f32.mrb[0].mxu0
    %268 = vmatprep.mubr.f32.mxu0 0.0
    %269 = vmatmul.mubr.f32.gmra.mrb[0].mxu0 %v131
    %v270 = vpop.f32.mrb[0].mxu0
    %v271 = vadd.f32 %v94, %v270
    %v272 = vpop.f32.mrb[0].mxu0
    %273 = vmatprep.mubr.f32.mxu0 0.0
    %274 = vmatmul.mubr.f32.gmra.mrb[0].mxu0 %v134
    %v275 = vpop.f32.mrb[0].mxu0
    %v276 = vadd.f32 %v94, %v275
    %v277 = vpop.f32.mrb[0].mxu0
    %278 = vmatprep.mubr.f32.mxu0 0.0
    %279 = vmatmul.mubr.f32.gmra.mrb[0].mxu0 %v137
    %v280 = vpop.f32.mrb[0].mxu0
    %v281 = vadd.f32 %v94, %v280
    %v282 = vpop.f32.mrb[0].mxu0
    %283 = vmatprep.mubr.f32.mxu0 0.0
    %284 = vmatmul.mubr.f32.gmra.mrb[0].mxu0 %v140
    %v285 = vpop.f32.mrb[0].mxu0
    %v286 = vadd.f32 %v94, %v285
    %v287 = vpop.f32.mrb[0].mxu0
    %288 = vmatprep.mubr.f32.mxu0 0.0
    %289 = vmatmul.mubr.f32.gmra.mrb[0].mxu0 %v143
    %v290 = vpop.f32.mrb[0].mxu0
    %v291 = vadd.f32 %v94, %v290
    %v292 = vpop.f32.mrb[0].mxu0
    %293 = vdwg.mxu0
    %vm294 = vcmask 261120
    %v295 = vsel %vm294, %v216, 0.0
    %v296 = vsel %vm294, %v221, 0.0
    %v297 = vadd.f32 %v295, %v296
    %v298 = vsel %vm294, %v226, 0.0
    %v299 = vadd.f32 %v297, %v298
    %v300 = vsel %vm294, %v231, 0.0
    %v301 = vadd.f32 %v299, %v300
    %v302 = vsel %vm294, %v236, 0.0
    %v303 = vadd.f32 %v301, %v302
    %v304 = vsel %vm294, %v241, 0.0
    %v305 = vadd.f32 %v303, %v304
    %v306 = vsel %vm294, %v246, 0.0
    %v307 = vadd.f32 %v305, %v306
    %v308 = vsel %vm294, %v251, 0.0
    %v309 = vadd.f32 %v307, %v308
    %v310 = vsel %vm294, %v256, 0.0
    %v311 = vadd.f32 %v309, %v310
    %v312 = vsel %vm294, %v261, 0.0
    %v313 = vadd.f32 %v311, %v312
    %v314 = vsel %vm294, %v266, 0.0
    %v315 = vadd.f32 %v313, %v314
    %v316 = vsel %vm294, %v271, 0.0
    %v317 = vadd.f32 %v315, %v316
    %v318 = vsel %vm294, %v276, 0.0
    %v319 = vadd.f32 %v317, %v318
    %v320 = vsel %vm294, %v281, 0.0
    %v321 = vadd.f32 %v319, %v320
    %v322 = vsel %vm294, %v286, 0.0
    %v323 = vadd.f32 %v321, %v322
    %v324 = vsel %vm294, %v291, 0.0
    %v325 = vadd.f32 %v323, %v324
    %v326 = vrot.slane %v325, 4
    %v327 = vadd.f32 %v325, %v326
    %v328 = vrot.slane %v327, 2
    %v329 = vadd.f32 %v327, %v328
    %v330 = vrot.slane %v329, 1
    %v331 = vadd.f32 %v329, %v330
    %v332 = vrcp.pop 128.0
    %v333 = vmul.f32 %v331, %v332
    %v334 = vsub.f32 %v216, %v333
    %v335 = vsub.f32 %v221, %v333
    %v336 = vsub.f32 %v226, %v333
    %v337 = vsub.f32 %v231, %v333
    %v338 = vsub.f32 %v236, %v333
    %v339 = vsub.f32 %v241, %v333
    %v340 = vsub.f32 %v246, %v333
    %v341 = vsub.f32 %v251, %v333
    %v342 = vsub.f32 %v256, %v333
    %v343 = vsub.f32 %v261, %v333
    %v344 = vsub.f32 %v266, %v333
    %v345 = vsub.f32 %v271, %v333
    %v346 = vsub.f32 %v276, %v333
    %v347 = vsub.f32 %v281, %v333
    %v348 = vsub.f32 %v286, %v333
    %v349 = vsub.f32 %v291, %v333
    %v350 = vmul.f32 %v334, %v334
    %v351 = vmul.f32 %v335, %v335
    %v352 = vmul.f32 %v336, %v336
    %v353 = vmul.f32 %v337, %v337
    %v354 = vmul.f32 %v338, %v338
    %v355 = vmul.f32 %v339, %v339
    %v356 = vmul.f32 %v340, %v340
    %v357 = vmul.f32 %v341, %v341
    %v358 = vmul.f32 %v342, %v342
    %v359 = vmul.f32 %v343, %v343
    %v360 = vmul.f32 %v344, %v344
    %v361 = vmul.f32 %v345, %v345
    %v362 = vmul.f32 %v346, %v346
    %v363 = vmul.f32 %v347, %v347
    %v364 = vmul.f32 %v348, %v348
    %v365 = vmul.f32 %v349, %v349
    %v366 = vsel %vm294, %v350, 0.0
    %v367 = vsel %vm294, %v351, 0.0
    %v368 = vadd.f32 %v366, %v367
    %v369 = vsel %vm294, %v352, 0.0
    %v370 = vadd.f32 %v368, %v369
    %v371 = vsel %vm294, %v353, 0.0
    %v372 = vadd.f32 %v370, %v371
    %v373 = vsel %vm294, %v354, 0.0
    %v374 = vadd.f32 %v372, %v373
    %v375 = vsel %vm294, %v355, 0.0
    %v376 = vadd.f32 %v374, %v375
    %v377 = vsel %vm294, %v356, 0.0
    %v378 = vadd.f32 %v376, %v377
    %v379 = vsel %vm294, %v357, 0.0
    %v380 = vadd.f32 %v378, %v379
    %v381 = vsel %vm294, %v358, 0.0
    %v382 = vadd.f32 %v380, %v381
    %v383 = vsel %vm294, %v359, 0.0
    %v384 = vadd.f32 %v382, %v383
    %v385 = vsel %vm294, %v360, 0.0
    %v386 = vadd.f32 %v384, %v385
    %v387 = vsel %vm294, %v361, 0.0
    %v388 = vadd.f32 %v386, %v387
    %v389 = vsel %vm294, %v362, 0.0
    %v390 = vadd.f32 %v388, %v389
    %v391 = vsel %vm294, %v363, 0.0
    %v392 = vadd.f32 %v390, %v391
    %v393 = vsel %vm294, %v364, 0.0
    %v394 = vadd.f32 %v392, %v393
    %v395 = vsel %vm294, %v365, 0.0
    %v396 = vadd.f32 %v394, %v395
    %v397 = vrot.slane %v396, 4
    %v398 = vadd.f32 %v396, %v397
    %v399 = vrot.slane %v398, 2
    %v400 = vadd.f32 %v398, %v399
    %v401 = vrot.slane %v400, 1
    %v402 = vadd.f32 %v400, %v401
    %v403 = vmul.f32 %v402, %v332
    %v404 = vld [vmem:[#allocation6] sm:$0x1]
    %v405 = vadd.f32 %v403, 1e-05
    %v406 = vrsqrt.pop %v405
    %v407 = vmul.f32 %v404, %v406
    %v408 = vld [vmem:[#allocation7] sm:$0x1]
    %v409 = vmul.f32 %v333, %v407
    %v410 = vsub.f32 %v408, %v409
    %v412 = vlaneseq
    %v413 = vshrl.u32 %v412, 7
    %v414 = vsub.s32 0, %v413
    %v415 = vrot.slane %v407, %v414
    %v417 = vmul.f32 %v216, %v415
    %v418 = vmul.f32 %v221, %v415
    %v419 = vmul.f32 %v226, %v415
    %v420 = vmul.f32 %v231, %v415
    %v421 = vmul.f32 %v236, %v415
    %v422 = vmul.f32 %v241, %v415
    %v423 = vmul.f32 %v246, %v415
    %v424 = vmul.f32 %v251, %v415
    %v425 = vmul.f32 %v256, %v415
    %v426 = vmul.f32 %v261, %v415
    %v427 = vmul.f32 %v266, %v415
    %v428 = vmul.f32 %v271, %v415
    %v429 = vmul.f32 %v276, %v415
    %v430 = vmul.f32 %v281, %v415
    %v431 = vmul.f32 %v286, %v415
    %v432 = vmul.f32 %v291, %v415
    %v434 = vlaneseq
    %v435 = vshrl.u32 %v434, 7
    %v436 = vsub.s32 0, %v435
    %v437 = vrot.slane %v410, %v436
    %v439 = vadd.f32 %v417, %v437
    %v440 = vadd.f32 %v418, %v437
    %v441 = vadd.f32 %v419, %v437
    %v442 = vadd.f32 %v420, %v437
    %v443 = vadd.f32 %v421, %v437
    %v444 = vadd.f32 %v422, %v437
    %v445 = vadd.f32 %v423, %v437
    %v446 = vadd.f32 %v424, %v437
    %v447 = vadd.f32 %v425, %v437
    %v448 = vadd.f32 %v426, %v437
    %v449 = vadd.f32 %v427, %v437
    %v450 = vadd.f32 %v428, %v437
    %v451 = vadd.f32 %v429, %v437
    %v452 = vadd.f32 %v430, %v437
    %v453 = vadd.f32 %v431, %v437
    %v454 = vadd.f32 %v432, %v437
    %v455 = vmax.f32 %v439, 0.0
    %v456 = vmax.f32 %v440, 0.0
    %v457 = vmax.f32 %v441, 0.0
    %v458 = vmax.f32 %v442, 0.0
    %v459 = vmax.f32 %v443, 0.0
    %v460 = vmax.f32 %v444, 0.0
    %v461 = vmax.f32 %v445, 0.0
    %v462 = vmax.f32 %v446, 0.0
    %v463 = vmax.f32 %v447, 0.0
    %v464 = vmax.f32 %v448, 0.0
    %v465 = vmax.f32 %v449, 0.0
    %v466 = vmax.f32 %v450, 0.0
    %v467 = vmax.f32 %v451, 0.0
    %v468 = vmax.f32 %v452, 0.0
    %v469 = vmax.f32 %v453, 0.0
    %v470 = vmax.f32 %v454, 0.0
    %471 = vst.msk [vmem:[%s5] sm:$0xff] %vm294, %v455
    %472 = vst.msk [vmem:[%s5 + $0x8] sm:$0xff] %vm294, %v456
    %473 = vst.msk [vmem:[%s5 + $0x10] sm:$0xff] %vm294, %v457
    %474 = vst.msk [vmem:[%s5 + $0x18] sm:$0xff] %vm294, %v458
    %475 = vst.msk [vmem:[%s5 + $0x20] sm:$0xff] %vm294, %v459
    %476 = vst.msk [vmem:[%s5 + $0x28] sm:$0xff] %vm294, %v460
    %477 = vst.msk [vmem:[%s5 + $0x30] sm:$0xff] %vm294, %v461
    %478 = vst.msk [vmem:[%s5 + $0x38] sm:$0xff] %vm294, %v462
    %479 = vst.msk [vmem:[%s5 + $0x40] sm:$0xff] %vm294, %v463
    %480 = vst.msk [vmem:[%s5 + $0x48] sm:$0xff] %vm294, %v464
    %481 = vst.msk [vmem:[%s5 + $0x50] sm:$0xff] %vm294, %v465
    %482 = vst.msk [vmem:[%s5 + $0x58] sm:$0xff] %vm294, %v466
    %483 = vst.msk [vmem:[%s5 + $0x60] sm:$0xff] %vm294, %v467
    %484 = vst.msk [vmem:[%s5 + $0x68] sm:$0xff] %vm294, %v468
    %485 = vst.msk [vmem:[%s5 + $0x70] sm:$0xff] %vm294, %v469
    %486 = vst.msk [vmem:[%s5 + $0x78] sm:$0xff] %vm294, %v470
    // Predicated region
    $region38: #{dqn_forward.4} parent=1 // pred_check
      _
    $region39: #{dqn_forward.4} parent=1 // pred_check_branch
      %488 = sbr.rel (0) target = $region41
    $region40: #{dqn_forward.4} parent=1 // pred_region
      _
    $region41: #{dqn_forward.4} parent=1 // pred_fallthru
      _
    // Predicated region
    $region42: #{dqn_forward.4} parent=1 // pred_check
      _
    $region43: #{dqn_forward.4} parent=1 // pred_check_branch
      %490 = sbr.rel (0) target = $region45
    $region44: #{dqn_forward.4} parent=1 // pred_region
      _
    $region45: #{dqn_forward.4} parent=1 // pred_fallthru
      _
    %491 = vsyncpa [#allocation3], 1
    %492 = vsyncpa [#allocation5], 1
    %493 = vsyncpa [#allocation8], 1

// kernel: dqn_forward.5
$region0: #{dqn_forward.5}
  #allocation0 [shape = 'u32[]', space=smem, size = 0x4, offset = 0x4, fixed_abs, tag = 'smem constant byte address 0x4 - core index']
  #allocation1 [shape = 'u32[144,128]{1,0:T(1,128)}', space=vmem, size = 0x12000, scoped, tag = 'internal scratch']
  %s0 = inlined_call_operand.vmem [shape: f32[32,288], index: 0, kind: input, shape index: {}]
  %s1 = inlined_call_operand.vmem [shape: f32[288,64], index: 1, kind: input, shape index: {}]
  %s2 = inlined_call_operand.hbm [shape: f32[1,64], index: 2, kind: input, shape index: {}]
  %s3 = inlined_call_operand.hbm [shape: f32[1,64], index: 3, kind: input, shape index: {}]
  %s4 = inlined_call_operand.hbm [shape: f32[1,64], index: 4, kind: input, shape index: {}]
  %s5 = inlined_call_operand.vmem [shape: f32[32,64], index: 5, kind: output, shape index: {}]
  %s6 = sld [smem:[#allocation0]]
  $region42: #{dqn_forward.5} parent=0
    _
  %s8 = ssub.s32 1, %s6
  %s9 = scalar_select 0, %s8, %s6
  $region1: #{dqn_forward.5} parent=0
    #allocation2 [shape = 'u8[512]{0}', space=vmem, size = 0x400, scoped, tag = 'input window, operand 2, single buffered']
    #allocation3 [shape = 's32[1]{0}', space=sflag, size = 0x4, scoped, tag = 'scoped memory for dqn_forward.5']
    #allocation4 [shape = 'u8[512]{0}', space=vmem, size = 0x400, scoped, tag = 'input window, operand 3, single buffered']
    #allocation5 [shape = 's32[1]{0}', space=sflag, size = 0x4, scoped, tag = 'scoped memory for dqn_forward.5']
    #allocation6 [shape = 'u8[512]{0}', space=vmem, size = 0x400, scoped, tag = 'input window, operand 4, single buffered']
    %10 = vsyncpa [#allocation3], 0
    %11 = vsyncpa [#allocation5], 0
    // Predicated region
    $region2: #{dqn_forward.5} parent=1 // pred_check
      _
    $region3: #{dqn_forward.5} parent=1 // pred_check_branch
      %13 = sbr.rel (0) target = $region5
    $region4: #{dqn_forward.5} parent=1 // pred_region
      _
    $region5: #{dqn_forward.5} parent=1 // pred_fallthru
      _
    // Predicated region
    $region6: #{dqn_forward.5} parent=1 // pred_check
      _
    $region7: #{dqn_forward.5} parent=1 // pred_check_branch
      %15 = sbr.rel (0) target = $region9
    $region8: #{dqn_forward.5} parent=1 // pred_region
      _
    $region9: #{dqn_forward.5} parent=1 // pred_fallthru
      _
    // Predicated region
    $region10: #{dqn_forward.5} parent=1 // pred_check
      _
    $region11: #{dqn_forward.5} parent=1 // pred_check_branch
      %17 = sbr.rel (0) target = $region13
    $region12: #{dqn_forward.5} parent=1 // pred_region
      %s19 = ssub.s32 16, 16
      %20 = vsyncadd [#allocation3], %s19
      %s22 = sshll.u32 [#allocation2], 4
      %s23 = int_to_ptr.vmem [resolvable:$true] %s22
      %25 = dma.hbm_to_vmem [thread:$0]  %s2, 16, %s23, [#allocation3]
    $region13: #{dqn_forward.5} parent=1 // pred_fallthru
      _
    // Predicated region
    $region14: #{dqn_forward.5} parent=1 // pred_check
      _
    $region15: #{dqn_forward.5} parent=1 // pred_check_branch
      %27 = sbr.rel (0) target = $region17
    $region16: #{dqn_forward.5} parent=1 // pred_region
      %s29 = ssub.s32 16, 16
      %30 = vsyncadd [#allocation5], %s29
      %s32 = sshll.u32 [#allocation4], 4
      %s33 = int_to_ptr.vmem [resolvable:$true] %s32
      %35 = dma.hbm_to_vmem [thread:$0]  %s3, 16, %s33, [#allocation5]
    $region17: #{dqn_forward.5} parent=1 // pred_fallthru
      _
    // Predicated region
    $region18: #{dqn_forward.5} parent=1 // pred_check
      _
    $region19: #{dqn_forward.5} parent=1 // pred_check_branch
      %37 = sbr.rel (0) target = $region21
    $region20: #{dqn_forward.5} parent=1 // pred_region
      %s39 = ssub.s32 16, 16
      %40 = vsyncadd [#allocation5], %s39
      %s42 = sshll.u32 [#allocation6], 4
      %s43 = int_to_ptr.vmem [resolvable:$true] %s42
      %45 = dma.hbm_to_vmem [thread:$0]  %s4, 16, %s43, [#allocation5]
    $region21: #{dqn_forward.5} parent=1 // pred_fallthru
      _
    // Predicated region
    $region22: #{dqn_forward.5} parent=1 // pred_check
      _
    $region23: #{dqn_forward.5} parent=1 // pred_check_branch
      %47 = sbr.rel (0) target = $region25
    $region24: #{dqn_forward.5} parent=1 // pred_region
      %48 = dma.done [#allocation3], 16
    $region25: #{dqn_forward.5} parent=1 // pred_fallthru
      _
    // Predicated region
    $region26: #{dqn_forward.5} parent=1 // pred_check
      _
    $region27: #{dqn_forward.5} parent=1 // pred_check_branch
      %50 = sbr.rel (0) target = $region29
    $region28: #{dqn_forward.5} parent=1 // pred_region
      %51 = dma.done [#allocation5], 16
    $region29: #{dqn_forward.5} parent=1 // pred_fallthru
      _
    // Predicated region
    $region30: #{dqn_forward.5} parent=1 // pred_check
      _
    $region31: #{dqn_forward.5} parent=1 // pred_check_branch
      %53 = sbr.rel (0) target = $region33
    $region32: #{dqn_forward.5} parent=1 // pred_region
      %54 = dma.done [#allocation5], 16
    $region33: #{dqn_forward.5} parent=1 // pred_fallthru
      _
    %v55 = vld [vmem:[%s0] sm:$0xff]
    %v56 = vld [vmem:[%s0 + $0x8] sm:$0xff]
    %v57 = vld [vmem:[%s0 + $0x10] sm:$0xff]
    %v58 = vld [vmem:[%s0 + $0x18] sm:$0xff]
    %v59 = vld [vmem:[%s0 + $0x20] sm:$0xff]
    %v60 = vld [vmem:[%s0 + $0x28] sm:$0xff]
    %v61 = vld [vmem:[%s0 + $0x30] sm:$0xff]
    %v62 = vld [vmem:[%s0 + $0x38] sm:$0xff]
    %v63 = vld [vmem:[%s0 + $0x40] sm:$0xff]
    %v64 = vld [vmem:[%s0 + $0x48] sm:$0xff]
    %v65 = vld [vmem:[%s0 + $0x50] sm:$0xff]
    %v66 = vld [vmem:[%s0 + $0x58] sm:$0xff]
    %v67 = vld [vmem:[%s1] sm:$0xff]
    %v68 = vld [vmem:[%s1 + $0x8] sm:$0xff]
    %v69 = vld [vmem:[%s1 + $0x10] sm:$0xff]
    %v70 = vld [vmem:[%s1 + $0x18] sm:$0xff]
    %v71 = vld [vmem:[%s1 + $0x20] sm:$0xff]
    %v72 = vld [vmem:[%s1 + $0x28] sm:$0xff]
    %v73 = vld [vmem:[%s1 + $0x30] sm:$0xff]
    %v74 = vld [vmem:[%s1 + $0x38] sm:$0xff]
    %v75 = vld [vmem:[%s1 + $0x40] sm:$0xff]
    %v76 = vld [vmem:[%s1 + $0x48] sm:$0xff]
    %v77 = vld [vmem:[%s1 + $0x50] sm:$0xff]
    %v78 = vld [vmem:[%s1 + $0x58] sm:$0xff]
    %v79 = vld [vmem:[%s1 + $0x60] sm:$0xff]
    %v80 = vld [vmem:[%s1 + $0x68] sm:$0xff]
    %v81 = vld [vmem:[%s1 + $0x70] sm:$0xff]
    %v82 = vld [vmem:[%s1 + $0x78] sm:$0xff]
    %v83 = vld [vmem:[%s1 + $0x80] sm:$0xff]
    %v84 = vld [vmem:[%s1 + $0x88] sm:$0xff]
    %v85 = vld [vmem:[%s1 + $0x90] sm:$0xff]
    %v86 = vld [vmem:[%s1 + $0x98] sm:$0xff]
    %v87 = vld [vmem:[%s1 + $0xa0] sm:$0xff]
    %v88 = vld [vmem:[%s1 + $0xa8] sm:$0xff]
    %v89 = vld [vmem:[%s1 + $0xb0] sm:$0xff]
    %v90 = vld [vmem:[%s1 + $0xb8] sm:$0xff]
    %v91 = vld [vmem:[%s1 + $0xc0] sm:$0xff]
    %v92 = vld [vmem:[%s1 + $0xc8] sm:$0xff]
    %v93 = vld [vmem:[%s1 + $0xd0] sm:$0xff]
    %v94 = vld [vmem:[%s1 + $0xd8] sm:$0xff]
    %v95 = vld [vmem:[%s1 + $0xe0] sm:$0xff]
    %v96 = vld [vmem:[%s1 + $0xe8] sm:$0xff]
    %v97 = vld [vmem:[%s1 + $0xf0] sm:$0xff]
    %v98 = vld [vmem:[%s1 + $0xf8] sm:$0xff]
    %v99 = vld [vmem:[%s1 + $0x100] sm:$0xff]
    %v100 = vld [vmem:[%s1 + $0x108] sm:$0xff]
    %v101 = vld [vmem:[%s1 + $0x110] sm:$0xff]
    %v102 = vld [vmem:[%s1 + $0x118] sm:$0xff]
    %v103 = vld [vmem:[#allocation2] sm:$0x1]
    %v105 = vlaneseq
    %v106 = vshrl.u32 %v105, 7
    %v107 = vsub.s32 0, %v106
    %v108 = vrot.slane %v103, %v107
    %vm110 = vcmask 261120
    %v112 = vsel %vm110, %v57, 0
    %v115 = vsel %vm110, %v60, 0
    %v118 = vsel %vm110, %v63, 0
    %v121 = vsel %vm110, %v66, 0
    %123 = vmatprep.subr.mxu0 0.0
    %124 = vmatpush1.msra.mxu0 %v67
    %125 = vmatprep.subr.mxu0 0.0
    %126 = vmatpush1.msra.mxu0 %v68
    %127 = vmatprep.subr.mxu0 0.0
    %128 = vmatpush1.msra.mxu0 %v69
    %129 = vmatprep.subr.mxu0 0.0
    %130 = vmatpush1.msra.mxu0 %v70
    %131 = vmatprep.subr.mxu0 0.0
    %132 = vmatpush1.msra.mxu0 %v71
    %133 = vmatprep.subr.mxu0 0.0
    %134 = vmatpush1.msra.mxu0 %v72
    %135 = vmatprep.subr.mxu0 0.0
    %136 = vmatpush1.msra.mxu0 %v73
    %137 = vmatprep.subr.mxu0 0.0
    %138 = vmatpush1.msra.mxu0 %v74
    %139 = vmatprep.subr.mxu0 0.0
    %140 = vmatpush1.msra.mxu0 %v75
    %141 = vmatprep.subr.mxu0 0.0
    %142 = vmatpush1.msra.mxu0 %v76
    %143 = vmatprep.subr.mxu0 0.0
    %144 = vmatpush1.msra.mxu0 %v77
    %145 = vmatprep.subr.mxu0 0.0
    %146 = vmatpush1.msra.mxu0 %v78
    %147 = vmatprep.subr.mxu0 0.0
    %148 = vmatpush1.msra.mxu0 %v79
    %149 = vmatprep.subr.mxu0 0.0
    %150 = vmatpush1.msra.mxu0 %v80
    %151 = vmatprep.subr.mxu0 0.0
    %152 = vmatpush1.msra.mxu0 %v81
    %153 = vmatprep.subr.mxu0 0.0
    %154 = vmatpush1.msra.mxu0 %v82
    %155 = vmatprep.subr.mxu0 0.0
    %156 = vmatpush1.msra.mxu0 %v83
    %157 = vmatprep.subr.mxu0 0.0
    %158 = vmatpush1.msra.mxu0 %v84
    %159 = vmatprep.subr.mxu0 0.0
    %160 = vmatpush1.msra.mxu0 %v85
    %161 = vmatprep.subr.mxu0 0.0
    %162 = vmatpush1.msra.mxu0 %v86
    %163 = vmatprep.subr.mxu0 0.0
    %164 = vmatpush1.msra.mxu0 %v87
    %165 = vmatprep.subr.mxu0 0.0
    %166 = vmatpush1.msra.mxu0 %v88
    %167 = vmatprep.subr.mxu0 0.0
    %168 = vmatpush1.msra.mxu0 %v89
    %169 = vmatprep.subr.mxu0 0.0
    %170 = vmatpush1.msra.mxu0 %v90
    %171 = vmatprep.subr.mxu0 0.0
    %172 = vmatpush1.msra.mxu0 %v91
    %173 = vmatprep.subr.mxu0 0.0
    %174 = vmatpush1.msra.mxu0 %v92
    %175 = vmatprep.subr.mxu0 0.0
    %176 = vmatpush1.msra.mxu0 %v93
    %177 = vmatprep.subr.mxu0 0.0
    %178 = vmatpush1.msra.mxu0 %v94
    %179 = vmatprep.subr.mxu0 0.0
    %180 = vmatpush1.msra.mxu0 %v95
    %181 = vmatprep.subr.mxu0 0.0
    %182 = vmatpush1.msra.mxu0 %v96
    %183 = vmatprep.subr.mxu0 0.0
    %184 = vmatpush1.msra.mxu0 %v97
    %185 = vmatprep.subr.mxu0 0.0
    %186 = vmatpush1.msra.mxu0 %v98
    %187 = vmatprep.mubr.f32.mxu0 %v56
    %188 = vmatmul.mubr.f32.gmra.mrb[0].mxu0 %v55
    %v189 = vpop.f32.mrb[0].mxu0
    %v190 = vadd.f32 %v108, %v189
    %v191 = vpop.f32.mrb[0].mxu0
    %192 = vmatprep.mubr.f32.mxu0 %v59
    %193 = vmatmul.mubr.f32.gmra.mrb[0].mxu0 %v58
    %v194 = vpop.f32.mrb[0].mxu0
    %v195 = vadd.f32 %v108, %v194
    %v196 = vpop.f32.mrb[0].mxu0
    %197 = vmatprep.mubr.f32.mxu0 %v62
    %198 = vmatmul.mubr.f32.gmra.mrb[0].mxu0 %v61
    %v199 = vpop.f32.mrb[0].mxu0
    %v200 = vadd.f32 %v108, %v199
    %v201 = vpop.f32.mrb[0].mxu0
    %202 = vmatprep.mubr.f32.mxu0 %v65
    %203 = vmatmul.mubr.f32.gmra.mrb[0].mxu0 %v64
    %v204 = vpop.f32.mrb[0].mxu0
    %v205 = vadd.f32 %v108, %v204
    %v206 = vpop.f32.mrb[0].mxu0
    %207 = vdwg.mxu0
    %208 = vmatprep.subr.mxu0 0.0
    %209 = vmatpush1.msra.mxu0 %v99
    %210 = vmatprep.subr.mxu0 0.0
    %211 = vmatpush1.msra.mxu0 %v100
    %212 = vmatprep.subr.mxu0 0.0
    %213 = vmatpush1.msra.mxu0 %v101
    %214 = vmatprep.subr.mxu0 0.0
    %215 = vmatpush1.msra.mxu0 %v102
    %216 = vmatprep.subr.mxu0 0.0
    %217 = vmatpush1.msra.mxu0 0.0
    %218 = vmatprep.subr.mxu0 0.0
    %219 = vmatpush1.msra.mxu0 0.0
    %220 = vmatprep.subr.mxu0 0.0
    %221 = vmatpush1.msra.mxu0 0.0
    %222 = vmatprep.subr.mxu0 0.0
    %223 = vmatpush1.msra.mxu0 0.0
    %224 = vmatprep.subr.mxu0 0.0
    %225 = vmatpush1.msra.mxu0 0.0
    %226 = vmatprep.subr.mxu0 0.0
    %227 = vmatpush1.msra.mxu0 0.0
    %228 = vmatprep.subr.mxu0 0.0
    %229 = vmatpush1.msra.mxu0 0.0
    %230 = vmatprep.subr.mxu0 0.0
    %231 = vmatpush1.msra.mxu0 0.0
    %232 = vmatprep.subr.mxu0 0.0
    %233 = vmatpush1.msra.mxu0 0.0
    %234 = vmatprep.subr.mxu0 0.0
    %235 = vmatpush1.msra.mxu0 0.0
    %236 = vmatprep.subr.mxu0 0.0
    %237 = vmatpush1.msra.mxu0 0.0
    %238 = vmatprep.subr.mxu0 0.0
    %239 = vmatpush1.msra.mxu0 0.0
    %240 = vmatprep.subr.mxu0 0.0
    %241 = vmatpush1.msra.mxu0 0.0
    %242 = vmatprep.subr.mxu0 0.0
    %243 = vmatpush1.msra.mxu0 0.0
    %244 = vmatprep.subr.mxu0 0.0
    %245 = vmatpush1.msra.mxu0 0.0
    %246 = vmatprep.subr.mxu0 0.0
    %247 = vmatpush1.msra.mxu0 0.0
    %248 = vmatprep.subr.mxu0 0.0
    %249 = vmatpush1.msra.mxu0 0.0
    %250 = vmatprep.subr.mxu0 0.0
    %251 = vmatpush1.msra.mxu0 0.0
    %252 = vmatprep.subr.mxu0 0.0
    %253 = vmatpush1.msra.mxu0 0.0
    %254 = vmatprep.subr.mxu0 0.0
    %255 = vmatpush1.msra.mxu0 0.0
    %256 = vmatprep.subr.mxu0 0.0
    %257 = vmatpush1.msra.mxu0 0.0
    %258 = vmatprep.subr.mxu0 0.0
    %259 = vmatpush1.msra.mxu0 0.0
    %260 = vmatprep.subr.mxu0 0.0
    %261 = vmatpush1.msra.mxu0 0.0
    %262 = vmatprep.subr.mxu0 0.0
    %263 = vmatpush1.msra.mxu0 0.0
    %264 = vmatprep.subr.mxu0 0.0
    %265 = vmatpush1.msra.mxu0 0.0
    %266 = vmatprep.subr.mxu0 0.0
    %267 = vmatpush1.msra.mxu0 0.0
    %268 = vmatprep.subr.mxu0 0.0
    %269 = vmatpush1.msra.mxu0 0.0
    %270 = vmatprep.subr.mxu0 0.0
    %271 = vmatpush1.msra.mxu0 0.0
    %272 = vmatprep.mubr.f32.mxu0 0.0
    %273 = vmatmul.mubr.f32.gmra.mrb[0].mxu0 %v112
    %v274 = vpop.f32.mrb[0].mxu0
    %v275 = vadd.f32 %v190, %v274
    %v276 = vpop.f32.mrb[0].mxu0
    %277 = vmatprep.mubr.f32.mxu0 0.0
    %278 = vmatmul.mubr.f32.gmra.mrb[0].mxu0 %v115
    %v279 = vpop.f32.mrb[0].mxu0
    %v280 = vadd.f32 %v195, %v279
    %v281 = vpop.f32.mrb[0].mxu0
    %282 = vmatprep.mubr.f32.mxu0 0.0
    %283 = vmatmul.mubr.f32.gmra.mrb[0].mxu0 %v118
    %v284 = vpop.f32.mrb[0].mxu0
    %v285 = vadd.f32 %v200, %v284
    %v286 = vpop.f32.mrb[0].mxu0
    %287 = vmatprep.mubr.f32.mxu0 0.0
    %288 = vmatmul.mubr.f32.gmra.mrb[0].mxu0 %v121
    %v289 = vpop.f32.mrb[0].mxu0
    %v290 = vadd.f32 %v205, %v289
    %v291 = vpop.f32.mrb[0].mxu0
    %292 = vdwg.mxu0
    %vm293 = vcmask 523264
    %v294 = vsel %vm293, %v275, 0.0
    %v295 = vsel %vm293, %v280, 0.0
    %v296 = vadd.f32 %v294, %v295
    %v297 = vsel %vm293, %v285, 0.0
    %v298 = vadd.f32 %v296, %v297
    %v299 = vsel %vm293, %v290, 0.0
    %v300 = vadd.f32 %v298, %v299
    %v301 = vrot.slane %v300, 4
    %v302 = vadd.f32 %v300, %v301
    %v303 = vrot.slane %v302, 2
    %v304 = vadd.f32 %v302, %v303
    %v305 = vrot.slane %v304, 1
    %v306 = vadd.f32 %v304, %v305
    %v307 = vrcp.pop 32.0
    %v308 = vmul.f32 %v306, %v307
    %v309 = vsub.f32 %v275, %v308
    %v310 = vsub.f32 %v280, %v308
    %v311 = vsub.f32 %v285, %v308
    %v312 = vsub.f32 %v290, %v308
    %v313 = vmul.f32 %v309, %v309
    %v314 = vmul.f32 %v310, %v310
    %v315 = vmul.f32 %v311, %v311
    %v316 = vmul.f32 %v312, %v312
    %v317 = vsel %vm293, %v313, 0.0
    %v318 = vsel %vm293, %v314, 0.0
    %v319 = vadd.f32 %v317, %v318
    %v320 = vsel %vm293, %v315, 0.0
    %v321 = vadd.f32 %v319, %v320
    %v322 = vsel %vm293, %v316, 0.0
    %v323 = vadd.f32 %v321, %v322
    %v324 = vrot.slane %v323, 4
    %v325 = vadd.f32 %v323, %v324
    %v326 = vrot.slane %v325, 2
    %v327 = vadd.f32 %v325, %v326
    %v328 = vrot.slane %v327, 1
    %v329 = vadd.f32 %v327, %v328
    %v330 = vmul.f32 %v329, %v307
    %v331 = vld [vmem:[#allocation4] sm:$0x1]
    %v332 = vadd.f32 %v330, 1e-05
    %v333 = vrsqrt.pop %v332
    %v334 = vmul.f32 %v331, %v333
    %v335 = vld [vmem:[#allocation6] sm:$0x1]
    %v336 = vmul.f32 %v308, %v334
    %v337 = vsub.f32 %v335, %v336
    %v339 = vlaneseq
    %v340 = vshrl.u32 %v339, 7
    %v341 = vsub.s32 0, %v340
    %v342 = vrot.slane %v334, %v341
    %v344 = vmul.f32 %v275, %v342
    %v345 = vmul.f32 %v280, %v342
    %v346 = vmul.f32 %v285, %v342
    %v347 = vmul.f32 %v290, %v342
    %v349 = vlaneseq
    %v350 = vshrl.u32 %v349, 7
    %v351 = vsub.s32 0, %v350
    %v352 = vrot.slane %v337, %v351
    %v354 = vadd.f32 %v344, %v352
    %v355 = vadd.f32 %v345, %v352
    %v356 = vadd.f32 %v346, %v352
    %v357 = vadd.f32 %v347, %v352
    %v358 = vmax.f32 %v354, 0.0
    %v359 = vmax.f32 %v355, 0.0
    %v360 = vmax.f32 %v356, 0.0
    %v361 = vmax.f32 %v357, 0.0
    %362 = vst.msk [vmem:[%s5] sm:$0xff] %vm293, %v358
    %363 = vst.msk [vmem:[%s5 + $0x8] sm:$0xff] %vm293, %v359
    %364 = vst.msk [vmem:[%s5 + $0x10] sm:$0xff] %vm293, %v360
    %365 = vst.msk [vmem:[%s5 + $0x18] sm:$0xff] %vm293, %v361
    // Predicated region
    $region34: #{dqn_forward.5} parent=1 // pred_check
      _
    $region35: #{dqn_forward.5} parent=1 // pred_check_branch
      %367 = sbr.rel (0) target = $region37
    $region36: #{dqn_forward.5} parent=1 // pred_region
      _
    $region37: #{dqn_forward.5} parent=1 // pred_fallthru
      _
    // Predicated region
    $region38: #{dqn_forward.5} parent=1 // pred_check
      _
    $region39: #{dqn_forward.5} parent=1 // pred_check_branch
      %369 = sbr.rel (0) target = $region41
    $region40: #{dqn_forward.5} parent=1 // pred_region
      _
    $region41: #{dqn_forward.5} parent=1 // pred_fallthru
      _
    %370 = vsyncpa [#allocation3], 1
    %371 = vsyncpa [#allocation5], 1

// kernel: dqn_forward.6
$region0: #{dqn_forward.6}
  #allocation0 [shape = 'u32[]', space=smem, size = 0x4, offset = 0x4, fixed_abs, tag = 'smem constant byte address 0x4 - core index']
  #allocation1 [shape = 'u32[144,128]{1,0:T(1,128)}', space=vmem, size = 0x12000, scoped, tag = 'internal scratch']
  %s0 = inlined_call_operand.vmem [shape: f32[8,576], index: 0, kind: input, shape index: {}]
  %s1 = inlined_call_operand.hbm [shape: f32[576,128], index: 1, kind: input, shape index: {}]
  %s2 = inlined_call_operand.hbm [shape: f32[1,128], index: 2, kind: input, shape index: {}]
  %s3 = inlined_call_operand.hbm [shape: f32[1,128], index: 3, kind: input, shape index: {}]
  %s4 = inlined_call_operand.hbm [shape: f32[1,128], index: 4, kind: input, shape index: {}]
  %s5 = inlined_call_operand.vmem [shape: f32[8,128], index: 5, kind: output, shape index: {}]
  %s6 = sld [smem:[#allocation0]]
  $region46: #{dqn_forward.6} parent=0
    _
  %s8 = ssub.s32 1, %s6
  %s9 = scalar_select 0, %s8, %s6
  $region1: #{dqn_forward.6} parent=0
    #allocation2 [shape = 'u8[294912]{0}', space=vmem, size = 0x48000, scoped, tag = 'input window, operand 1, single buffered']
    #allocation3 [shape = 's32[1]{0}', space=sflag, size = 0x4, scoped, tag = 'scoped memory for dqn_forward.6']
    #allocation4 [shape = 'u8[512]{0}', space=vmem, size = 0x400, scoped, tag = 'input window, operand 2, single buffered']
    #allocation5 [shape = 's32[1]{0}', space=sflag, size = 0x4, scoped, tag = 'scoped memory for dqn_forward.6']
    #allocation6 [shape = 'u8[512]{0}', space=vmem, size = 0x400, scoped, tag = 'input window, operand 3, single buffered']
    #allocation7 [shape = 'u8[512]{0}', space=vmem, size = 0x400, scoped, tag = 'input window, operand 4, single buffered']
    #allocation8 [shape = 's32[1]{0}', space=sflag, size = 0x4, scoped, tag = 'scoped memory for dqn_forward.6']
    %10 = vsyncpa [#allocation3], 0
    %11 = vsyncpa [#allocation5], 0
    %12 = vsyncpa [#allocation8], 0
    // Predicated region
    $region2: #{dqn_forward.6} parent=1 // pred_check
      _
    $region3: #{dqn_forward.6} parent=1 // pred_check_branch
      %14 = sbr.rel (0) target = $region5
    $region4: #{dqn_forward.6} parent=1 // pred_region
      _
    $region5: #{dqn_forward.6} parent=1 // pred_fallthru
      _
    // Predicated region
    $region6: #{dqn_forward.6} parent=1 // pred_check
      _
    $region7: #{dqn_forward.6} parent=1 // pred_check_branch
      %16 = sbr.rel (0) target = $region9
    $region8: #{dqn_forward.6} parent=1 // pred_region
      %s18 = ssub.s32 9216, 9216
      %19 = vsyncadd [#allocation3], %s18
      %s20 = sshll.u32 [#allocation2], 4
      %s21 = int_to_ptr.vmem [resolvable:$true] %s20
      %26 = dma.hbm_to_vmem [thread:$0]  %s1, 9216, %s21, [#allocation3], 128, 128, 8
    $region9: #{dqn_forward.6} parent=1 // pred_fallthru
      _
    // Predicated region
    $region10: #{dqn_forward.6} parent=1 // pred_check
      _
    $region11: #{dqn_forward.6} parent=1 // pred_check_branch
      %28 = sbr.rel (0) target = $region13
    $region12: #{dqn_forward.6} parent=1 // pred_region
      %s30 = ssub.s32 16, 16
      %31 = vsyncadd [#allocation5], %s30
      %s33 = sshll.u32 [#allocation4], 4
      %s34 = int_to_ptr.vmem [resolvable:$true] %s33
      %36 = dma.hbm_to_vmem [thread:$0]  %s2, 16, %s34, [#allocation5]
    $region13: #{dqn_forward.6} parent=1 // pred_fallthru
      _
    // Predicated region
    $region14: #{dqn_forward.6} parent=1 // pred_check
      _
    $region15: #{dqn_forward.6} parent=1 // pred_check_branch
      %38 = sbr.rel (0) target = $region17
    $region16: #{dqn_forward.6} parent=1 // pred_region
      %s40 = ssub.s32 16, 16
      %41 = vsyncadd [#allocation5], %s40
      %s43 = sshll.u32 [#allocation6], 4
      %s44 = int_to_ptr.vmem [resolvable:$true] %s43
      %46 = dma.hbm_to_vmem [thread:$0]  %s3, 16, %s44, [#allocation5]
    $region17: #{dqn_forward.6} parent=1 // pred_fallthru
      _
    // Predicated region
    $region18: #{dqn_forward.6} parent=1 // pred_check
      _
    $region19: #{dqn_forward.6} parent=1 // pred_check_branch
      %48 = sbr.rel (0) target = $region21
    $region20: #{dqn_forward.6} parent=1 // pred_region
      %s50 = ssub.s32 16, 16
      %51 = vsyncadd [#allocation8], %s50
      %s53 = sshll.u32 [#allocation7], 4
      %s54 = int_to_ptr.vmem [resolvable:$true] %s53
      %56 = dma.hbm_to_vmem [thread:$0]  %s4, 16, %s54, [#allocation8]
    $region21: #{dqn_forward.6} parent=1 // pred_fallthru
      _
    // Predicated region
    $region22: #{dqn_forward.6} parent=1 // pred_check
      _
    $region23: #{dqn_forward.6} parent=1 // pred_check_branch
      %58 = sbr.rel (0) target = $region25
    $region24: #{dqn_forward.6} parent=1 // pred_region
      %59 = dma.done [#allocation3], 9216
    $region25: #{dqn_forward.6} parent=1 // pred_fallthru
      _
    // Predicated region
    $region26: #{dqn_forward.6} parent=1 // pred_check
      _
    $region27: #{dqn_forward.6} parent=1 // pred_check_branch
      %61 = sbr.rel (0) target = $region29
    $region28: #{dqn_forward.6} parent=1 // pred_region
      %62 = dma.done [#allocation5], 16
    $region29: #{dqn_forward.6} parent=1 // pred_fallthru
      _
    // Predicated region
    $region30: #{dqn_forward.6} parent=1 // pred_check
      _
    $region31: #{dqn_forward.6} parent=1 // pred_check_branch
      %64 = sbr.rel (0) target = $region33
    $region32: #{dqn_forward.6} parent=1 // pred_region
      %65 = dma.done [#allocation5], 16
    $region33: #{dqn_forward.6} parent=1 // pred_fallthru
      _
    // Predicated region
    $region34: #{dqn_forward.6} parent=1 // pred_check
      _
    $region35: #{dqn_forward.6} parent=1 // pred_check_branch
      %67 = sbr.rel (0) target = $region37
    $region36: #{dqn_forward.6} parent=1 // pred_region
      %68 = dma.done [#allocation8], 16
    $region37: #{dqn_forward.6} parent=1 // pred_fallthru
      _
    %v69 = vld [vmem:[%s0] sm:$0xff]
    %v70 = vld [vmem:[%s0 + $0x8] sm:$0xff]
    %v71 = vld [vmem:[%s0 + $0x10] sm:$0xff]
    %v72 = vld [vmem:[%s0 + $0x18] sm:$0xff]
    %v73 = vld [vmem:[%s0 + $0x20] sm:$0xff]
    %v74 = vld [vmem:[#allocation2] sm:$0xff]
    %v75 = vld [vmem:[#allocation2 + $0x8] sm:$0xff]
    %v76 = vld [vmem:[#allocation2 + $0x10] sm:$0xff]
    %v77 = vld [vmem:[#allocation2 + $0x18] sm:$0xff]
    %v78 = vld [vmem:[#allocation2 + $0x20] sm:$0xff]
    %v79 = vld [vmem:[#allocation2 + $0x28] sm:$0xff]
    %v80 = vld [vmem:[#allocation2 + $0x30] sm:$0xff]
    %v81 = vld [vmem:[#allocation2 + $0x38] sm:$0xff]
    %v82 = vld [vmem:[#allocation2 + $0x40] sm:$0xff]
    %v83 = vld [vmem:[#allocation2 + $0x48] sm:$0xff]
    %v84 = vld [vmem:[#allocation2 + $0x50] sm:$0xff]
    %v85 = vld [vmem:[#allocation2 + $0x58] sm:$0xff]
    %v86 = vld [vmem:[#allocation2 + $0x60] sm:$0xff]
    %v87 = vld [vmem:[#allocation2 + $0x68] sm:$0xff]
    %v88 = vld [vmem:[#allocation2 + $0x70] sm:$0xff]
    %v89 = vld [vmem:[#allocation2 + $0x78] sm:$0xff]
    %v90 = vld [vmem:[#allocation2 + $0x80] sm:$0xff]
    %v91 = vld [vmem:[#allocation2 + $0x88] sm:$0xff]
    %v92 = vld [vmem:[#allocation2 + $0x90] sm:$0xff]
    %v93 = vld [vmem:[#allocation2 + $0x98] sm:$0xff]
    %v94 = vld [vmem:[#allocation2 + $0xa0] sm:$0xff]
    %v95 = vld [vmem:[#allocation2 + $0xa8] sm:$0xff]
    %v96 = vld [vmem:[#allocation2 + $0xb0] sm:$0xff]
    %v97 = vld [vmem:[#allocation2 + $0xb8] sm:$0xff]
    %v98 = vld [vmem:[#allocation2 + $0xc0] sm:$0xff]
    %v99 = vld [vmem:[#allocation2 + $0xc8] sm:$0xff]
    %v100 = vld [vmem:[#allocation2 + $0xd0] sm:$0xff]
    %v101 = vld [vmem:[#allocation2 + $0xd8] sm:$0xff]
    %v102 = vld [vmem:[#allocation2 + $0xe0] sm:$0xff]
    %v103 = vld [vmem:[#allocation2 + $0xe8] sm:$0xff]
    %v104 = vld [vmem:[#allocation2 + $0xf0] sm:$0xff]
    %v105 = vld [vmem:[#allocation2 + $0xf8] sm:$0xff]
    %v106 = vld [vmem:[#allocation2 + $0x100] sm:$0xff]
    %v107 = vld [vmem:[#allocation2 + $0x108] sm:$0xff]
    %v108 = vld [vmem:[#allocation2 + $0x110] sm:$0xff]
    %v109 = vld [vmem:[#allocation2 + $0x118] sm:$0xff]
    %v110 = vld [vmem:[#allocation2 + $0x120] sm:$0xff]
    %v111 = vld [vmem:[#allocation2 + $0x128] sm:$0xff]
    %v112 = vld [vmem:[#allocation2 + $0x130] sm:$0xff]
    %v113 = vld [vmem:[#allocation2 + $0x138] sm:$0xff]
    %v114 = vld [vmem:[#allocation2 + $0x140] sm:$0xff]
    %v115 = vld [vmem:[#allocation2 + $0x148] sm:$0xff]
    %v116 = vld [vmem:[#allocation2 + $0x150] sm:$0xff]
    %v117 = vld [vmem:[#allocation2 + $0x158] sm:$0xff]
    %v118 = vld [vmem:[#allocation2 + $0x160] sm:$0xff]
    %v119 = vld [vmem:[#allocation2 + $0x168] sm:$0xff]
    %v120 = vld [vmem:[#allocation2 + $0x170] sm:$0xff]
    %v121 = vld [vmem:[#allocation2 + $0x178] sm:$0xff]
    %v122 = vld [vmem:[#allocation2 + $0x180] sm:$0xff]
    %v123 = vld [vmem:[#allocation2 + $0x188] sm:$0xff]
    %v124 = vld [vmem:[#allocation2 + $0x190] sm:$0xff]
    %v125 = vld [vmem:[#allocation2 + $0x198] sm:$0xff]
    %v126 = vld [vmem:[#allocation2 + $0x1a0] sm:$0xff]
    %v127 = vld [vmem:[#allocation2 + $0x1a8] sm:$0xff]
    %v128 = vld [vmem:[#allocation2 + $0x1b0] sm:$0xff]
    %v129 = vld [vmem:[#allocation2 + $0x1b8] sm:$0xff]
    %v130 = vld [vmem:[#allocation2 + $0x1c0] sm:$0xff]
    %v131 = vld [vmem:[#allocation2 + $0x1c8] sm:$0xff]
    %v132 = vld [vmem:[#allocation2 + $0x1d0] sm:$0xff]
    %v133 = vld [vmem:[#allocation2 + $0x1d8] sm:$0xff]
    %v134 = vld [vmem:[#allocation2 + $0x1e0] sm:$0xff]
    %v135 = vld [vmem:[#allocation2 + $0x1e8] sm:$0xff]
    %v136 = vld [vmem:[#allocation2 + $0x1f0] sm:$0xff]
    %v137 = vld [vmem:[#allocation2 + $0x1f8] sm:$0xff]
    %v138 = vld [vmem:[#allocation2 + $0x200] sm:$0xff]
    %v139 = vld [vmem:[#allocation2 + $0x208] sm:$0xff]
    %v140 = vld [vmem:[#allocation2 + $0x210] sm:$0xff]
    %v141 = vld [vmem:[#allocation2 + $0x218] sm:$0xff]
    %v142 = vld [vmem:[#allocation2 + $0x220] sm:$0xff]
    %v143 = vld [vmem:[#allocation2 + $0x228] sm:$0xff]
    %v144 = vld [vmem:[#allocation2 + $0x230] sm:$0xff]
    %v145 = vld [vmem:[#allocation2 + $0x238] sm:$0xff]
    %v146 = vld [vmem:[#allocation4] sm:$0x1]
    %v148 = vlaneseq
    %v149 = vshrl.u32 %v148, 7
    %v150 = vsub.s32 0, %v149
    %v151 = vrot.slane %v146, %v150
    %vm153 = vcmask 523264
    %v155 = vsel %vm153, %v73, 0
    %157 = vmatprep.subr.mxu0 0.0
    %158 = vmatpush1.msra.mxu0 %v74
    %159 = vmatprep.subr.mxu0 0.0
    %160 = vmatpush1.msra.mxu0 %v75
    %161 = vmatprep.subr.mxu0 0.0
    %162 = vmatpush1.msra.mxu0 %v76
    %163 = vmatprep.subr.mxu0 0.0
    %164 = vmatpush1.msra.mxu0 %v77
    %165 = vmatprep.subr.mxu0 0.0
    %166 = vmatpush1.msra.mxu0 %v78
    %167 = vmatprep.subr.mxu0 0.0
    %168 = vmatpush1.msra.mxu0 %v79
    %169 = vmatprep.subr.mxu0 0.0
    %170 = vmatpush1.msra.mxu0 %v80
    %171 = vmatprep.subr.mxu0 0.0
    %172 = vmatpush1.msra.mxu0 %v81
    %173 = vmatprep.subr.mxu0 0.0
    %174 = vmatpush1.msra.mxu0 %v82
    %175 = vmatprep.subr.mxu0 0.0
    %176 = vmatpush1.msra.mxu0 %v83
    %177 = vmatprep.subr.mxu0 0.0
    %178 = vmatpush1.msra.mxu0 %v84
    %179 = vmatprep.subr.mxu0 0.0
    %180 = vmatpush1.msra.mxu0 %v85
    %181 = vmatprep.subr.mxu0 0.0
    %182 = vmatpush1.msra.mxu0 %v86
    %183 = vmatprep.subr.mxu0 0.0
    %184 = vmatpush1.msra.mxu0 %v87
    %185 = vmatprep.subr.mxu0 0.0
    %186 = vmatpush1.msra.mxu0 %v88
    %187 = vmatprep.subr.mxu0 0.0
    %188 = vmatpush1.msra.mxu0 %v89
    %189 = vmatprep.subr.mxu0 0.0
    %190 = vmatpush1.msra.mxu0 %v90
    %191 = vmatprep.subr.mxu0 0.0
    %192 = vmatpush1.msra.mxu0 %v91
    %193 = vmatprep.subr.mxu0 0.0
    %194 = vmatpush1.msra.mxu0 %v92
    %195 = vmatprep.subr.mxu0 0.0
    %196 = vmatpush1.msra.mxu0 %v93
    %197 = vmatprep.subr.mxu0 0.0
    %198 = vmatpush1.msra.mxu0 %v94
    %199 = vmatprep.subr.mxu0 0.0
    %200 = vmatpush1.msra.mxu0 %v95
    %201 = vmatprep.subr.mxu0 0.0
    %202 = vmatpush1.msra.mxu0 %v96
    %203 = vmatprep.subr.mxu0 0.0
    %204 = vmatpush1.msra.mxu0 %v97
    %205 = vmatprep.subr.mxu0 0.0
    %206 = vmatpush1.msra.mxu0 %v98
    %207 = vmatprep.subr.mxu0 0.0
    %208 = vmatpush1.msra.mxu0 %v99
    %209 = vmatprep.subr.mxu0 0.0
    %210 = vmatpush1.msra.mxu0 %v100
    %211 = vmatprep.subr.mxu0 0.0
    %212 = vmatpush1.msra.mxu0 %v101
    %213 = vmatprep.subr.mxu0 0.0
    %214 = vmatpush1.msra.mxu0 %v102
    %215 = vmatprep.subr.mxu0 0.0
    %216 = vmatpush1.msra.mxu0 %v103
    %217 = vmatprep.subr.mxu0 0.0
    %218 = vmatpush1.msra.mxu0 %v104
    %219 = vmatprep.subr.mxu0 0.0
    %220 = vmatpush1.msra.mxu0 %v105
    %221 = vmatprep.mubr.f32.mxu0 %v70
    %222 = vmatmul.mubr.f32.gmra.mrb[0].mxu0 %v69
    %v223 = vpop.f32.mrb[0].mxu0
    %v224 = vadd.f32 %v151, %v223
    %v225 = vpop.f32.mrb[0].mxu0
    %226 = vdwg.mxu0
    %227 = vmatprep.subr.mxu0 0.0
    %228 = vmatpush1.msra.mxu0 %v106
    %229 = vmatprep.subr.mxu0 0.0
    %230 = vmatpush1.msra.mxu0 %v107
    %231 = vmatprep.subr.mxu0 0.0
    %232 = vmatpush1.msra.mxu0 %v108
    %233 = vmatprep.subr.mxu0 0.0
    %234 = vmatpush1.msra.mxu0 %v109
    %235 = vmatprep.subr.mxu0 0.0
    %236 = vmatpush1.msra.mxu0 %v110
    %237 = vmatprep.subr.mxu0 0.0
    %238 = vmatpush1.msra.mxu0 %v111
    %239 = vmatprep.subr.mxu0 0.0
    %240 = vmatpush1.msra.mxu0 %v112
    %241 = vmatprep.subr.mxu0 0.0
    %242 = vmatpush1.msra.mxu0 %v113
    %243 = vmatprep.subr.mxu0 0.0
    %244 = vmatpush1.msra.mxu0 %v114
    %245 = vmatprep.subr.mxu0 0.0
    %246 = vmatpush1.msra.mxu0 %v115
    %247 = vmatprep.subr.mxu0 0.0
    %248 = vmatpush1.msra.mxu0 %v116
    %249 = vmatprep.subr.mxu0 0.0
    %250 = vmatpush1.msra.mxu0 %v117
    %251 = vmatprep.subr.mxu0 0.0
    %252 = vmatpush1.msra.mxu0 %v118
    %253 = vmatprep.subr.mxu0 0.0
    %254 = vmatpush1.msra.mxu0 %v119
    %255 = vmatprep.subr.mxu0 0.0
    %256 = vmatpush1.msra.mxu0 %v120
    %257 = vmatprep.subr.mxu0 0.0
    %258 = vmatpush1.msra.mxu0 %v121
    %259 = vmatprep.subr.mxu0 0.0
    %260 = vmatpush1.msra.mxu0 %v122
    %261 = vmatprep.subr.mxu0 0.0
    %262 = vmatpush1.msra.mxu0 %v123
    %263 = vmatprep.subr.mxu0 0.0
    %264 = vmatpush1.msra.mxu0 %v124
    %265 = vmatprep.subr.mxu0 0.0
    %266 = vmatpush1.msra.mxu0 %v125
    %267 = vmatprep.subr.mxu0 0.0
    %268 = vmatpush1.msra.mxu0 %v126
    %269 = vmatprep.subr.mxu0 0.0
    %270 = vmatpush1.msra.mxu0 %v127
    %271 = vmatprep.subr.mxu0 0.0
    %272 = vmatpush1.msra.mxu0 %v128
    %273 = vmatprep.subr.mxu0 0.0
    %274 = vmatpush1.msra.mxu0 %v129
    %275 = vmatprep.subr.mxu0 0.0
    %276 = vmatpush1.msra.mxu0 %v130
    %277 = vmatprep.subr.mxu0 0.0
    %278 = vmatpush1.msra.mxu0 %v131
    %279 = vmatprep.subr.mxu0 0.0
    %280 = vmatpush1.msra.mxu0 %v132
    %281 = vmatprep.subr.mxu0 0.0
    %282 = vmatpush1.msra.mxu0 %v133
    %283 = vmatprep.subr.mxu0 0.0
    %284 = vmatpush1.msra.mxu0 %v134
    %285 = vmatprep.subr.mxu0 0.0
    %286 = vmatpush1.msra.mxu0 %v135
    %287 = vmatprep.subr.mxu0 0.0
    %288 = vmatpush1.msra.mxu0 %v136
    %289 = vmatprep.subr.mxu0 0.0
    %290 = vmatpush1.msra.mxu0 %v137
    %291 = vmatprep.mubr.f32.mxu0 %v72
    %292 = vmatmul.mubr.f32.gmra.mrb[0].mxu0 %v71
    %v293 = vpop.f32.mrb[0].mxu0
    %v294 = vadd.f32 %v224, %v293
    %v295 = vpop.f32.mrb[0].mxu0
    %296 = vdwg.mxu0
    %297 = vmatprep.subr.mxu0 0.0
    %298 = vmatpush1.msra.mxu0 %v138
    %299 = vmatprep.subr.mxu0 0.0
    %300 = vmatpush1.msra.mxu0 %v139
    %301 = vmatprep.subr.mxu0 0.0
    %302 = vmatpush1.msra.mxu0 %v140
    %303 = vmatprep.subr.mxu0 0.0
    %304 = vmatpush1.msra.mxu0 %v141
    %305 = vmatprep.subr.mxu0 0.0
    %306 = vmatpush1.msra.mxu0 %v142
    %307 = vmatprep.subr.mxu0 0.0
    %308 = vmatpush1.msra.mxu0 %v143
    %309 = vmatprep.subr.mxu0 0.0
    %310 = vmatpush1.msra.mxu0 %v144
    %311 = vmatprep.subr.mxu0 0.0
    %312 = vmatpush1.msra.mxu0 %v145
    %313 = vmatprep.subr.mxu0 0.0
    %314 = vmatpush1.msra.mxu0 0.0
    %315 = vmatprep.subr.mxu0 0.0
    %316 = vmatpush1.msra.mxu0 0.0
    %317 = vmatprep.subr.mxu0 0.0
    %318 = vmatpush1.msra.mxu0 0.0
    %319 = vmatprep.subr.mxu0 0.0
    %320 = vmatpush1.msra.mxu0 0.0
    %321 = vmatprep.subr.mxu0 0.0
    %322 = vmatpush1.msra.mxu0 0.0
    %323 = vmatprep.subr.mxu0 0.0
    %324 = vmatpush1.msra.mxu0 0.0
    %325 = vmatprep.subr.mxu0 0.0
    %326 = vmatpush1.msra.mxu0 0.0
    %327 = vmatprep.subr.mxu0 0.0
    %328 = vmatpush1.msra.mxu0 0.0
    %329 = vmatprep.subr.mxu0 0.0
    %330 = vmatpush1.msra.mxu0 0.0
    %331 = vmatprep.subr.mxu0 0.0
    %332 = vmatpush1.msra.mxu0 0.0
    %333 = vmatprep.subr.mxu0 0.0
    %334 = vmatpush1.msra.mxu0 0.0
    %335 = vmatprep.subr.mxu0 0.0
    %336 = vmatpush1.msra.mxu0 0.0
    %337 = vmatprep.subr.mxu0 0.0
    %338 = vmatpush1.msra.mxu0 0.0
    %339 = vmatprep.subr.mxu0 0.0
    %340 = vmatpush1.msra.mxu0 0.0
    %341 = vmatprep.subr.mxu0 0.0
    %342 = vmatpush1.msra.mxu0 0.0
    %343 = vmatprep.subr.mxu0 0.0
    %344 = vmatpush1.msra.mxu0 0.0
    %345 = vmatprep.subr.mxu0 0.0
    %346 = vmatpush1.msra.mxu0 0.0
    %347 = vmatprep.subr.mxu0 0.0
    %348 = vmatpush1.msra.mxu0 0.0
    %349 = vmatprep.subr.mxu0 0.0
    %350 = vmatpush1.msra.mxu0 0.0
    %351 = vmatprep.subr.mxu0 0.0
    %352 = vmatpush1.msra.mxu0 0.0
    %353 = vmatprep.subr.mxu0 0.0
    %354 = vmatpush1.msra.mxu0 0.0
    %355 = vmatprep.subr.mxu0 0.0
    %356 = vmatpush1.msra.mxu0 0.0
    %357 = vmatprep.subr.mxu0 0.0
    %358 = vmatpush1.msra.mxu0 0.0
    %359 = vmatprep.subr.mxu0 0.0
    %360 = vmatpush1.msra.mxu0 0.0
    %361 = vmatprep.mubr.f32.mxu0 0.0
    %362 = vmatmul.mubr.f32.gmra.mrb[0].mxu0 %v155
    %v363 = vpop.f32.mrb[0].mxu0
    %v364 = vadd.f32 %v294, %v363
    %v365 = vpop.f32.mrb[0].mxu0
    %366 = vdwg.mxu0
    %v367 = vrot.slane %v364, 4
    %v368 = vadd.f32 %v364, %v367
    %v369 = vrot.slane %v368, 2
    %v370 = vadd.f32 %v368, %v369
    %v371 = vrot.slane %v370, 1
    %v372 = vadd.f32 %v370, %v371
    %v373 = vrcp.pop 8.0
    %v374 = vmul.f32 %v372, %v373
    %v375 = vsub.f32 %v364, %v374
    %v376 = vmul.f32 %v375, %v375
    %v377 = vrot.slane %v376, 4
    %v378 = vadd.f32 %v376, %v377
    %v379 = vrot.slane %v378, 2
    %v380 = vadd.f32 %v378, %v379
    %v381 = vrot.slane %v380, 1
    %v382 = vadd.f32 %v380, %v381
    %v383 = vmul.f32 %v382, %v373
    %v384 = vld [vmem:[#allocation6] sm:$0x1]
    %v385 = vadd.f32 %v383, 1e-05
    %v386 = vrsqrt.pop %v385
    %v387 = vmul.f32 %v384, %v386
    %v388 = vld [vmem:[#allocation7] sm:$0x1]
    %v389 = vmul.f32 %v374, %v387
    %v390 = vsub.f32 %v388, %v389
    %v392 = vlaneseq
    %v393 = vshrl.u32 %v392, 7
    %v394 = vsub.s32 0, %v393
    %v395 = vrot.slane %v387, %v394
    %v397 = vmul.f32 %v364, %v395
    %v399 = vlaneseq
    %v400 = vshrl.u32 %v399, 7
    %v401 = vsub.s32 0, %v400
    %v402 = vrot.slane %v390, %v401
    %v404 = vadd.f32 %v397, %v402
    %v405 = vmax.f32 %v404, 0.0
    %406 = vst [vmem:[%s5] sm:$0xff] %v405
    // Predicated region
    $region38: #{dqn_forward.6} parent=1 // pred_check
      _
    $region39: #{dqn_forward.6} parent=1 // pred_check_branch
      %408 = sbr.rel (0) target = $region41
    $region40: #{dqn_forward.6} parent=1 // pred_region
      _
    $region41: #{dqn_forward.6} parent=1 // pred_fallthru
      _
    // Predicated region
    $region42: #{dqn_forward.6} parent=1 // pred_check
      _
    $region43: #{dqn_forward.6} parent=1 // pred_check_branch
      %410 = sbr.rel (0) target = $region45
    $region44: #{dqn_forward.6} parent=1 // pred_region
      _
    $region45: #{dqn_forward.6} parent=1 // pred_fallthru
      _
    %411 = vsyncpa [#allocation3], 1
    %412 = vsyncpa [#allocation5], 1
    %413 = vsyncpa [#allocation8], 1

// kernel: dqn_forward.7
$region0: #{dqn_forward.7}
  #allocation0 [shape = 'u32[]', space=smem, size = 0x4, offset = 0x4, fixed_abs, tag = 'smem constant byte address 0x4 - core index']
  #allocation1 [shape = 'u32[144,128]{1,0:T(1,128)}', space=vmem, size = 0x12000, scoped, tag = 'internal scratch']
  #allocation2 [shape = 'f32[2,1024]{1,0:T(2,128)}', space=vmem, size = 0x2000, scoped, tag = 'scratch operand']
  %s0 = inlined_call_operand.vmem [shape: bf16[2,512], index: 0, kind: input, shape index: {}]
  %s1 = inlined_call_operand.hbm [shape: bf16[512,4096], index: 1, kind: input, shape index: {}]
  %s2 = inlined_call_operand.hbm [shape: f32[1,4096], index: 2, kind: input, shape index: {}]
  %s3 = inlined_call_operand.hbm [shape: bf16[4096,1024], index: 3, kind: input, shape index: {}]
  %s4 = inlined_call_operand.hbm [shape: f32[1,1024], index: 4, kind: input, shape index: {}]
  %s5 = inlined_call_operand.vmem [shape: bf16[1024,4], index: 5, kind: input, shape index: {}]
  %s6 = inlined_call_operand.hbm [shape: f32[1,4], index: 6, kind: input, shape index: {}]
  %s7 = inlined_call_operand.hbm [shape: f32[2,4], index: 7, kind: output, shape index: {}]
  %s8 = sld [smem:[#allocation0]]
  $region89: #{dqn_forward.7} parent=0
    _
  %s10 = ssub.s32 1, %s8
  %s11 = scalar_select 0, %s10, %s8
  $region1: #{dqn_forward.7} parent=0
    #allocation3 [shape = 'u8[1048576]{0}', space=vmem, size = 0x100000, scoped, tag = 'input window, operand 1']
    #allocation4 [shape = 's32[2]{0}', space=sflag, size = 0x8, scoped, tag = 'scoped memory for dqn_forward.7']
    #allocation5 [shape = 's32[2]{0}', space=sflag, size = 0x8, scoped, tag = 'scoped memory for dqn_forward.7']
    #allocation6 [shape = 'u8[4096]{0}', space=vmem, size = 0x1000, scoped, tag = 'input window, operand 2']
    #allocation7 [shape = 's32[2]{0}', space=sflag, size = 0x8, scoped, tag = 'scoped memory for dqn_forward.7']
    #allocation8 [shape = 'u8[2097152]{0}', space=vmem, size = 0x200000, scoped, tag = 'input window, operand 3']
    #allocation9 [shape = 'u8[4096]{0}', space=vmem, size = 0x1000, scoped, tag = 'input window, operand 4, single buffered']
    #allocation10 [shape = 's32[1]{0}', space=sflag, size = 0x4, scoped, tag = 'scoped memory for dqn_forward.7']
    #allocation11 [shape = 'u8[512]{0}', space=vmem, size = 0x400, scoped, tag = 'input window, operand 6, single buffered']
    #allocation12 [shape = 'u8[1024]{0}', space=vmem, size = 0x400, scoped, tag = 'output window, operand 0, single buffered']
    %12 = vsyncpa [#allocation4], 0
    %s13 = scalar_lea.sflag [#allocation4], 1
    %14 = vsyncpa %s13, 0
    %15 = vsyncpa [#allocation7], 0
    %s16 = scalar_lea.sflag [#allocation7], 1
    %17 = vsyncpa %s16, 0
    %18 = vsyncpa [#allocation10], 0
    %19 = vsyncpa [#allocation5], 0
    loop: start=0, step=1, limit=10
    $region2: #{dqn_forward.7} parent=1 // loop_pre_header
      _
    $region3: #{dqn_forward.7} parent=1 // loop_header
      %s21 = sphi 0, %s25
      %p22 = scmp.ge.s32.totalorder %s21, 10
      %s29 = sphi 0, %s29
      %s31 = sphi 0, %s29
      %s32 = sphi 0, %s31
      %s46 = sphi 0, %s32
      %s52 = sphi 0, %s54
      %s55 = sphi 0, %s52
      %s56 = sphi 0, %s55
      %s72 = sphi 0, %s56
      %s78 = sphi 0, %s80
      %s81 = sphi 0, %s78
      %s82 = sphi 0, %s81
      %s98 = sphi 0, %s82
      %s104 = sphi 0, %s106
      %s107 = sphi 0, %s104
      %s108 = sphi 0, %s107
      %s124 = sphi 0, %s108
      %s128 = sphi 0, %s128
      %s130 = sphi 0, %s128
      %s131 = sphi 0, %s130
      %s145 = sphi 0, %s131
      %s149 = sphi 0, %s149
      %s151 = sphi 0, %s149
      %s152 = sphi 0, %s151
      %s166 = sphi 0, %s152
      %s170 = sphi 0, %s170
      %s172 = sphi 0, %s170
      %s173 = sphi 0, %s172
      %s187 = sphi 0, %s173
      %s191 = sphi 0, %s191
      %s193 = sphi 0, %s191
      %s194 = sphi 0, %s193
      %s208 = sphi 0, %s194
    $region4: #{dqn_forward.7} parent=1 // loop_header_branch
      %24 = sbr.rel (%p22) target = $region8
    $region5: #{dqn_forward.7} parent=1 // loop_body
      %s26 = ssub.s32 %s21, 1
      %s27 = ssub.s32 %s21, 2
      %s28 = sadd.s32 %s21, 1
      %s30 = sadd.s32 %s29, 1
      %p33 = scmp.eq.s32.totalorder %s21, 7
      %p34 = scmp.ne.s32.totalorder %s29, %s31
      %p35 = scmp.eq.s32.totalorder %s21, 0
      %p36 = por %p34, %p35
      %p37 = scmp.ne.s32.totalorder %s29, %s31
      %p38 = scmp.eq.s32.totalorder %s26, 7
      %p39 = por %p37, %p38
      %p40 = scmp.ne.s32.totalorder %s31, %s32
      %p41 = scmp.eq.s32.totalorder %s26, 0
      %p42 = por %p40, %p41
      %p43 = scmp.ne.s32.totalorder %s31, %s32
      %p44 = scmp.eq.s32.totalorder %s27, 7
      %p45 = por %p43, %p44
      %p47 = scmp.ne.s32.totalorder %s32, %s46
      %p48 = scmp.eq.s32.totalorder %s27, 0
      %p49 = por %p47, %p48
      %s50 = ssub.s32 %s21, %s28
      %p51 = scmp.eq.s32.totalorder %s50, 0
      %s53 = sadd.s32 %s52, 1
      %s54 = scalar_select %p51, %s52, %s53
      %p57 = pneg %p51
      %p58 = scmp.eq.s32.totalorder %s21, 7
      %p59 = por %p57, %p58
      %p60 = scmp.ne.s32.totalorder %s52, %s55
      %p61 = scmp.eq.s32.totalorder %s21, 0
      %p62 = por %p60, %p61
      %p63 = scmp.ne.s32.totalorder %s52, %s55
      %p64 = scmp.eq.s32.totalorder %s26, 7
      %p65 = por %p63, %p64
      %p66 = scmp.ne.s32.totalorder %s55, %s56
      %p67 = scmp.eq.s32.totalorder %s26, 0
      %p68 = por %p66, %p67
      %p69 = scmp.ne.s32.totalorder %s55, %s56
      %p70 = scmp.eq.s32.totalorder %s27, 7
      %p71 = por %p69, %p70
      %p73 = scmp.ne.s32.totalorder %s56, %s72
      %p74 = scmp.eq.s32.totalorder %s27, 0
      %p75 = por %p73, %p74
      %s76 = ssub.s32 %s21, %s28
      %p77 = scmp.eq.s32.totalorder %s76, 0
      %s79 = sadd.s32 %s78, 1
      %s80 = scalar_select %p77, %s78, %s79
      %p83 = pneg %p77
      %p84 = scmp.eq.s32.totalorder %s21, 7
      %p85 = por %p83, %p84
      %p86 = scmp.ne.s32.totalorder %s78, %s81
      %p87 = scmp.eq.s32.totalorder %s21, 0
      %p88 = por %p86, %p87
      %p89 = scmp.ne.s32.totalorder %s78, %s81
      %p90 = scmp.eq.s32.totalorder %s26, 7
      %p91 = por %p89, %p90
      %p92 = scmp.ne.s32.totalorder %s81, %s82
      %p93 = scmp.eq.s32.totalorder %s26, 0
      %p94 = por %p92, %p93
      %p95 = scmp.ne.s32.totalorder %s81, %s82
      %p96 = scmp.eq.s32.totalorder %s27, 7
      %p97 = por %p95, %p96
      %p99 = scmp.ne.s32.totalorder %s82, %s98
      %p100 = scmp.eq.s32.totalorder %s27, 0
      %p101 = por %p99, %p100
      %s102 = ssub.s32 %s21, %s28
      %p103 = scmp.eq.s32.totalorder %s102, 0
      %s105 = sadd.s32 %s104, 1
      %s106 = scalar_select %p103, %s104, %s105
      %p109 = pneg %p103
      %p110 = scmp.eq.s32.totalorder %s21, 7
      %p111 = por %p109, %p110
      %p112 = scmp.ne.s32.totalorder %s104, %s107
      %p113 = scmp.eq.s32.totalorder %s21, 0
      %p114 = por %p112, %p113
      %p115 = scmp.ne.s32.totalorder %s104, %s107
      %p116 = scmp.eq.s32.totalorder %s26, 7
      %p117 = por %p115, %p116
      %p118 = scmp.ne.s32.totalorder %s107, %s108
      %p119 = scmp.eq.s32.totalorder %s26, 0
      %p120 = por %p118, %p119
      %p121 = scmp.ne.s32.totalorder %s107, %s108
      %p122 = scmp.eq.s32.totalorder %s27, 7
      %p123 = por %p121, %p122
      %p125 = scmp.ne.s32.totalorder %s108, %s124
      %p126 = scmp.eq.s32.totalorder %s27, 0
      %p127 = por %p125, %p126
      %s129 = sadd.s32 %s128, 1
      %p132 = scmp.eq.s32.totalorder %s21, 7
      %p133 = scmp.ne.s32.totalorder %s128, %s130
      %p134 = scmp.eq.s32.totalorder %s21, 0
      %p135 = por %p133, %p134
      %p136 = scmp.ne.s32.totalorder %s128, %s130
      %p137 = scmp.eq.s32.totalorder %s26, 7
      %p138 = por %p136, %p137
      %p139 = scmp.ne.s32.totalorder %s130, %s131
      %p140 = scmp.eq.s32.totalorder %s26, 0
      %p141 = por %p139, %p140
      %p142 = scmp.ne.s32.totalorder %s130, %s131
      %p143 = scmp.eq.s32.totalorder %s27, 7
      %p144 = por %p142, %p143
      %p146 = scmp.ne.s32.totalorder %s131, %s145
      %p147 = scmp.eq.s32.totalorder %s27, 0
      %p148 = por %p146, %p147
      %s150 = sadd.s32 %s149, 1
      %p153 = scmp.eq.s32.totalorder %s21, 7
      %p154 = scmp.ne.s32.totalorder %s149, %s151
      %p155 = scmp.eq.s32.totalorder %s21, 0
      %p156 = por %p154, %p155
      %p157 = scmp.ne.s32.totalorder %s149, %s151
      %p158 = scmp.eq.s32.totalorder %s26, 7
      %p159 = por %p157, %p158
      %p160 = scmp.ne.s32.totalorder %s151, %s152
      %p161 = scmp.eq.s32.totalorder %s26, 0
      %p162 = por %p160, %p161
      %p163 = scmp.ne.s32.totalorder %s151, %s152
      %p164 = scmp.eq.s32.totalorder %s27, 7
      %p165 = por %p163, %p164
      %p167 = scmp.ne.s32.totalorder %s152, %s166
      %p168 = scmp.eq.s32.totalorder %s27, 0
      %p169 = por %p167, %p168
      %s171 = sadd.s32 %s170, 1
      %p174 = scmp.eq.s32.totalorder %s21, 7
      %p175 = scmp.ne.s32.totalorder %s170, %s172
      %p176 = scmp.eq.s32.totalorder %s21, 0
      %p177 = por %p175, %p176
      %p178 = scmp.ne.s32.totalorder %s170, %s172
      %p179 = scmp.eq.s32.totalorder %s26, 7
      %p180 = por %p178, %p179
      %p181 = scmp.ne.s32.totalorder %s172, %s173
      %p182 = scmp.eq.s32.totalorder %s26, 0
      %p183 = por %p181, %p182
      %p184 = scmp.ne.s32.totalorder %s172, %s173
      %p185 = scmp.eq.s32.totalorder %s27, 7
      %p186 = por %p184, %p185
      %p188 = scmp.ne.s32.totalorder %s173, %s187
      %p189 = scmp.eq.s32.totalorder %s27, 0
      %p190 = por %p188, %p189
      %s192 = sadd.s32 %s191, 1
      %p195 = scmp.eq.s32.totalorder %s21, 7
      %p196 = scmp.ne.s32.totalorder %s191, %s193
      %p197 = scmp.eq.s32.totalorder %s21, 0
      %p198 = por %p196, %p197
      %p199 = scmp.ne.s32.totalorder %s191, %s193
      %p200 = scmp.eq.s32.totalorder %s26, 7
      %p201 = por %p199, %p200
      %p202 = scmp.ne.s32.totalorder %s193, %s194
      %p203 = scmp.eq.s32.totalorder %s26, 0
      %p204 = por %p202, %p203
      %p205 = scmp.ne.s32.totalorder %s193, %s194
      %p206 = scmp.eq.s32.totalorder %s27, 7
      %p207 = por %p205, %p206
      %p209 = scmp.ne.s32.totalorder %s194, %s208
      %p210 = scmp.eq.s32.totalorder %s27, 0
      %p211 = por %p209, %p210
      %p212 = scmp.le.s32.totalorder 1, %s21
      %p213 = scmp.lt.s32.totalorder %s21, 9
      %p214 = pnand %p212, %p213
      %p215 = pneg %p214
      // Predicated region
      $region9: #{dqn_forward.7} parent=5 // pred_check
        _
      $region10: #{dqn_forward.7} parent=5 // pred_check_branch
        %217 = sbr.rel (%p214) target = $region12
      $region11: #{dqn_forward.7} parent=5 // pred_region
        %s218 = ssub.s32 %s21, 1
        // Predicated region
        $region13: #{dqn_forward.7} parent=11 // pred_check
          %p219 = pneg %p42
        $region14: #{dqn_forward.7} parent=11 // pred_check_branch
          %221 = sbr.rel (%p219) target = $region16
        $region15: #{dqn_forward.7} parent=11 // pred_region
          _
        $region16: #{dqn_forward.7} parent=11 // pred_fallthru
          _
        // Predicated region
        $region17: #{dqn_forward.7} parent=11 // pred_check
          %p222 = pneg %p141
        $region18: #{dqn_forward.7} parent=11 // pred_check_branch
          %224 = sbr.rel (%p222) target = $region20
        $region19: #{dqn_forward.7} parent=11 // pred_region
          %s226 = ssub.s32 128, 128
          %227 = vsyncadd [#allocation10], %s226
          %s229 = sshll.u32 [#allocation9], 4
          %s230 = int_to_ptr.vmem [resolvable:$true] %s229
          %232 = dma.hbm_to_vmem [thread:$0]  %s4, 128, %s230, [#allocation10]
        $region20: #{dqn_forward.7} parent=11 // pred_fallthru
          _
        // Predicated region
        $region21: #{dqn_forward.7} parent=11 // pred_check
          %p233 = pneg %p162
        $region22: #{dqn_forward.7} parent=11 // pred_check_branch
          %235 = sbr.rel (%p233) target = $region24
        $region23: #{dqn_forward.7} parent=11 // pred_region
          _
        $region24: #{dqn_forward.7} parent=11 // pred_fallthru
          _
        // Predicated region
        $region25: #{dqn_forward.7} parent=11 // pred_check
          %p236 = pneg %p183
        $region26: #{dqn_forward.7} parent=11 // pred_check_branch
          %238 = sbr.rel (%p236) target = $region28
        $region27: #{dqn_forward.7} parent=11 // pred_region
          %s240 = ssub.s32 16, 16
          %241 = vsyncadd [#allocation10], %s240
          %s243 = sshll.u32 [#allocation11], 4
          %s244 = int_to_ptr.vmem [resolvable:$true] %s243
          %246 = dma.hbm_to_vmem [thread:$0]  %s6, 16, %s244, [#allocation10]
        $region28: #{dqn_forward.7} parent=11 // pred_fallthru
          _
      $region12: #{dqn_forward.7} parent=5 // pred_fallthru
        _
      %p247 = scmp.lt.s32.totalorder %s21, 8
      // Predicated region
      $region29: #{dqn_forward.7} parent=5 // pred_check
        %p248 = pneg %p247
      $region30: #{dqn_forward.7} parent=5 // pred_check_branch
        %250 = sbr.rel (%p248) target = $region32
      $region31: #{dqn_forward.7} parent=5 // pred_region
        // Predicated region
        $region33: #{dqn_forward.7} parent=31 // pred_check
          %p251 = pneg %p62
        $region34: #{dqn_forward.7} parent=31 // pred_check_branch
          %253 = sbr.rel (%p251) target = $region36
        $region35: #{dqn_forward.7} parent=31 // pred_region
          %s254 = sand.u32 %s52, 1
          %s255 = scalar_lea.sflag [#allocation4], %s254
          %s256 = sand.u32 %s52, 1
          %s257 = smul.addr %s256, 1024
          %s258 = scalar_lea.vmem [#allocation3], %s257
          %s259 = smul.u32 4, %s21
          %s261 = ssub.s32 16384, 16384
          %262 = vsyncadd %s255, %s261
          %s263 = smul.addr %s259, 64
          %s264 = scalar_lea.hbm %s1, %s263
          %s265 = sshll.u32 %s258, 4
          %s266 = int_to_ptr.vmem [resolvable:$true] %s265
          %271 = dma.hbm_to_vmem [thread:$0]  %s264, 16384, %s266, %s255, 2048, 256, 16
        $region36: #{dqn_forward.7} parent=31 // pred_fallthru
          _
        // Predicated region
        $region37: #{dqn_forward.7} parent=31 // pred_check
          %p272 = pneg %p88
        $region38: #{dqn_forward.7} parent=31 // pred_check_branch
          %274 = sbr.rel (%p272) target = $region40
        $region39: #{dqn_forward.7} parent=31 // pred_region
          %s275 = sand.u32 %s21, 1
          %s276 = scalar_lea.sflag [#allocation7], %s275
          %s277 = sand.u32 %s78, 1
          %s278 = smul.addr %s277, 4
          %s279 = scalar_lea.vmem [#allocation6], %s278
          %s280 = smul.u32 4, %s21
          %s282 = ssub.s32 64, 64
          %283 = vsyncadd %s276, %s282
          %s284 = smul.addr %s280, 16
          %s285 = scalar_lea.hbm %s2, %s284
          %s287 = sshll.u32 %s279, 4
          %s288 = int_to_ptr.vmem [resolvable:$true] %s287
          %290 = dma.hbm_to_vmem [thread:$0]  %s285, 64, %s288, %s276
        $region40: #{dqn_forward.7} parent=31 // pred_fallthru
          _
        // Predicated region
        $region41: #{dqn_forward.7} parent=31 // pred_check
          %p291 = pneg %p114
        $region42: #{dqn_forward.7} parent=31 // pred_check_branch
          %293 = sbr.rel (%p291) target = $region44
        $region43: #{dqn_forward.7} parent=31 // pred_region
          %s294 = sand.u32 %s21, 1
          %s295 = scalar_lea.sflag [#allocation7], %s294
          %s296 = sand.u32 %s104, 1
          %s297 = smul.addr %s296, 2048
          %s298 = scalar_lea.vmem [#allocation8], %s297
          %s299 = smul.u32 64, %s21
          %s301 = ssub.s32 32768, 32768
          %302 = vsyncadd %s295, %s301
          %s303 = smul.addr %s299, 8
          %s304 = smul.addr %s303, 64
          %s305 = scalar_lea.hbm %s3, %s304
          %s306 = sshll.u32 %s298, 4
          %s307 = int_to_ptr.vmem [resolvable:$true] %s306
          %312 = dma.hbm_to_vmem [thread:$0]  %s305, 32768, %s307, %s295, 512, 512, 32
        $region44: #{dqn_forward.7} parent=31 // pred_fallthru
          _
      $region32: #{dqn_forward.7} parent=5 // pred_fallthru
        _
      %p313 = scmp.le.s32.totalorder 1, %s21
      %p314 = scmp.lt.s32.totalorder %s21, 9
      %p315 = pnand %p313, %p314
      %p316 = pneg %p315
      // Predicated region
      $region45: #{dqn_forward.7} parent=5 // pred_check
        _
      $region46: #{dqn_forward.7} parent=5 // pred_check_branch
        %318 = sbr.rel (%p315) target = $region48
      $region47: #{dqn_forward.7} parent=5 // pred_region
        %s319 = ssub.s32 %s21, 1
        %s320 = sand.u32 %s55, 1
        %s321 = scalar_lea.sflag [#allocation4], %s320
        %s322 = sand.u32 %s55, 1
        %s323 = smul.addr %s322, 1024
        %s324 = scalar_lea.vmem [#allocation3], %s323
        // Predicated region
        $region49: #{dqn_forward.7} parent=47 // pred_check
          %p325 = pneg %p68
        $region50: #{dqn_forward.7} parent=47 // pred_check_branch
          %327 = sbr.rel (%p325) target = $region52
        $region51: #{dqn_forward.7} parent=47 // pred_region
          %328 = dma.done %s321, 16384
        $region52: #{dqn_forward.7} parent=47 // pred_fallthru
          _
        %s329 = sand.u32 %s26, 1
        %s330 = scalar_lea.sflag [#allocation7], %s329
        %s331 = sand.u32 %s81, 1
        %s332 = smul.addr %s331, 4
        %s333 = scalar_lea.vmem [#allocation6], %s332
        // Predicated region
        $region53: #{dqn_forward.7} parent=47 // pred_check
          %p334 = pneg %p94
        $region54: #{dqn_forward.7} parent=47 // pred_check_branch
          %336 = sbr.rel (%p334) target = $region56
        $region55: #{dqn_forward.7} parent=47 // pred_region
          %337 = dma.done %s330, 64
        $region56: #{dqn_forward.7} parent=47 // pred_fallthru
          _
        %s338 = sand.u32 %s26, 1
        %s339 = scalar_lea.sflag [#allocation7], %s338
        %s340 = sand.u32 %s107, 1
        %s341 = smul.addr %s340, 2048
        %s342 = scalar_lea.vmem [#allocation8], %s341
        // Predicated region
        $region57: #{dqn_forward.7} parent=47 // pred_check
          %p343 = pneg %p120
        $region58: #{dqn_forward.7} parent=47 // pred_check_branch
          %345 = sbr.rel (%p343) target = $region60
        $region59: #{dqn_forward.7} parent=47 // pred_region
          %346 = dma.done %s339, 32768
        $region60: #{dqn_forward.7} parent=47 // pred_fallthru
          _
        // Predicated region
        $region61: #{dqn_forward.7} parent=47 // pred_check
          %p347 = pneg %p141
        $region62: #{dqn_forward.7} parent=47 // pred_check_branch
          %349 = sbr.rel (%p347) target = $region64
        $region63: #{dqn_forward.7} parent=47 // pred_region
          %350 = dma.done [#allocation10], 128
        $region64: #{dqn_forward.7} parent=47 // pred_fallthru
          _
        // Predicated region
        $region65: #{dqn_forward.7} parent=47 // pred_check
          %p351 = pneg %p183
        $region66: #{dqn_forward.7} parent=47 // pred_check_branch
          %353 = sbr.rel (%p351) target = $region68
        $region67: #{dqn_forward.7} parent=47 // pred_region
          %354 = dma.done [#allocation10], 16
        $region68: #{dqn_forward.7} parent=47 // pred_fallthru
          _
        %p355 = pneg %p42
        %p356 = pneg %p39
        %s357 = sand.u32 %s55, 1
        %s358 = scalar_lea.sflag [#allocation4], %s357
        %s359 = sand.u32 %s55, 1
        %s360 = smul.addr %s359, 1024
        %s361 = scalar_lea.vmem [#allocation3], %s360
        %p362 = pneg %p68
        %p363 = pneg %p65
        %s364 = sand.u32 %s26, 1
        %s365 = scalar_lea.sflag [#allocation7], %s364
        %s366 = sand.u32 %s81, 1
        %s367 = smul.addr %s366, 4
        %s368 = scalar_lea.vmem [#allocation6], %s367
        %p369 = pneg %p94
        %p370 = pneg %p91
        %s371 = sand.u32 %s26, 1
        %s372 = scalar_lea.sflag [#allocation7], %s371
        %s373 = sand.u32 %s107, 1
        %s374 = smul.addr %s373, 2048
        %s375 = scalar_lea.vmem [#allocation8], %s374
        %p376 = pneg %p120
        %p377 = pneg %p117
        %p378 = pneg %p141
        %p379 = pneg %p138
        %p380 = pneg %p162
        %p381 = pneg %p159
        %p382 = pneg %p183
        %p383 = pneg %p180
        %p384 = pneg %p204
        %p385 = pneg %p201
        %s386 = smul.u32 4, %s26
        %s387 = smul.u32 4, %s26
        %s388 = smul.u32 64, %s26
        %p390 = scmp.eq.s32.totalorder %s26, 0
        // Predicated region
        $region69: #{dqn_forward.7} parent=47 // pred_check
          %p391 = pneg %p390
        $region70: #{dqn_forward.7} parent=47 // pred_check_branch
          %393 = sbr.rel (%p391) target = $region72
        $region71: #{dqn_forward.7} parent=47 // pred_region
          %394 = vst [vmem:[#allocation2] sm:$0xff] 0.0
          %395 = vst [vmem:[#allocation2 + $0x8] sm:$0xff] 0.0
        $region72: #{dqn_forward.7} parent=47 // pred_fallthru
          _
        %v396 = vld [vmem:[%s0] sm:$0xf]
        %v397 = vld [vmem:[%s324] sm:$0xff]
        %v398 = vld [vmem:[%s324 + $0x8] sm:$0xff]
        %v399 = vld [vmem:[%s324 + $0x10] sm:$0xff]
        %v400 = vld [vmem:[%s324 + $0x18] sm:$0xff]
        %v401 = vld [vmem:[%s324 + $0x20] sm:$0xff]
        %v402 = vld [vmem:[%s324 + $0x28] sm:$0xff]
        %v403 = vld [vmem:[%s324 + $0x30] sm:$0xff]
        %v404 = vld [vmem:[%s324 + $0x38] sm:$0xff]
        %v405 = vld [vmem:[%s324 + $0x40] sm:$0xff]
        %v406 = vld [vmem:[%s324 + $0x48] sm:$0xff]
        %v407 = vld [vmem:[%s324 + $0x50] sm:$0xff]
        %v408 = vld [vmem:[%s324 + $0x58] sm:$0xff]
        %v409 = vld [vmem:[%s324 + $0x60] sm:$0xff]
        %v410 = vld [vmem:[%s324 + $0x68] sm:$0xff]
        %v411 = vld [vmem:[%s324 + $0x70] sm:$0xff]
        %v412 = vld [vmem:[%s324 + $0x78] sm:$0xff]
        %v413 = vld [vmem:[%s324 + $0x80] sm:$0xff]
        %v414 = vld [vmem:[%s324 + $0x88] sm:$0xff]
        %v415 = vld [vmem:[%s324 + $0x90] sm:$0xff]
        %v416 = vld [vmem:[%s324 + $0x98] sm:$0xff]
        %v417 = vld [vmem:[%s324 + $0xa0] sm:$0xff]
        %v418 = vld [vmem:[%s324 + $0xa8] sm:$0xff]
        %v419 = vld [vmem:[%s324 + $0xb0] sm:$0xff]
        %v420 = vld [vmem:[%s324 + $0xb8] sm:$0xff]
        %v421 = vld [vmem:[%s324 + $0xc0] sm:$0xff]
        %v422 = vld [vmem:[%s324 + $0xc8] sm:$0xff]
        %v423 = vld [vmem:[%s324 + $0xd0] sm:$0xff]
        %v424 = vld [vmem:[%s324 + $0xd8] sm:$0xff]
        %v425 = vld [vmem:[%s324 + $0xe0] sm:$0xff]
        %v426 = vld [vmem:[%s324 + $0xe8] sm:$0xff]
        %v427 = vld [vmem:[%s324 + $0xf0] sm:$0xff]
        %v428 = vld [vmem:[%s324 + $0xf8] sm:$0xff]
        %v429 = vld [vmem:[%s324 + $0x100] sm:$0xff]
        %v430 = vld [vmem:[%s324 + $0x108] sm:$0xff]
        %v431 = vld [vmem:[%s324 + $0x110] sm:$0xff]
        %v432 = vld [vmem:[%s324 + $0x118] sm:$0xff]
        %v433 = vld [vmem:[%s324 + $0x120] sm:$0xff]
        %v434 = vld [vmem:[%s324 + $0x128] sm:$0xff]
        %v435 = vld [vmem:[%s324 + $0x130] sm:$0xff]
        %v436 = vld [vmem:[%s324 + $0x138] sm:$0xff]
        %v437 = vld [vmem:[%s324 + $0x140] sm:$0xff]
        %v438 = vld [vmem:[%s324 + $0x148] sm:$0xff]
        %v439 = vld [vmem:[%s324 + $0x150] sm:$0xff]
        %v440 = vld [vmem:[%s324 + $0x158] sm:$0xff]
        %v441 = vld [vmem:[%s324 + $0x160] sm:$0xff]
        %v442 = vld [vmem:[%s324 + $0x168] sm:$0xff]
        %v443 = vld [vmem:[%s324 + $0x170] sm:$0xff]
        %v444 = vld [vmem:[%s324 + $0x178] sm:$0xff]
        %v445 = vld [vmem:[%s324 + $0x180] sm:$0xff]
        %v446 = vld [vmem:[%s324 + $0x188] sm:$0xff]
        %v447 = vld [vmem:[%s324 + $0x190] sm:$0xff]
        %v448 = vld [vmem:[%s324 + $0x198] sm:$0xff]
        %v449 = vld [vmem:[%s324 + $0x1a0] sm:$0xff]
        %v450 = vld [vmem:[%s324 + $0x1a8] sm:$0xff]
        %v451 = vld [vmem:[%s324 + $0x1b0] sm:$0xff]
        %v452 = vld [vmem:[%s324 + $0x1b8] sm:$0xff]
        %v453 = vld [vmem:[%s324 + $0x1c0] sm:$0xff]
        %v454 = vld [vmem:[%s324 + $0x1c8] sm:$0xff]
        %v455 = vld [vmem:[%s324 + $0x1d0] sm:$0xff]
        %v456 = vld [vmem:[%s324 + $0x1d8] sm:$0xff]
        %v457 = vld [vmem:[%s324 + $0x1e0] sm:$0xff]
        %v458 = vld [vmem:[%s324 + $0x1e8] sm:$0xff]
        %v459 = vld [vmem:[%s324 + $0x1f0] sm:$0xff]
        %v460 = vld [vmem:[%s324 + $0x1f8] sm:$0xff]
        %v461 = vld [vmem:[%s324 + $0x200] sm:$0xff]
        %v462 = vld [vmem:[%s324 + $0x208] sm:$0xff]
        %v463 = vld [vmem:[%s324 + $0x210] sm:$0xff]
        %v464 = vld [vmem:[%s324 + $0x218] sm:$0xff]
        %v465 = vld [vmem:[%s324 + $0x220] sm:$0xff]
        %v466 = vld [vmem:[%s324 + $0x228] sm:$0xff]
        %v467 = vld [vmem:[%s324 + $0x230] sm:$0xff]
        %v468 = vld [vmem:[%s324 + $0x238] sm:$0xff]
        %v469 = vld [vmem:[%s324 + $0x240] sm:$0xff]
        %v470 = vld [vmem:[%s324 + $0x248] sm:$0xff]
        %v471 = vld [vmem:[%s324 + $0x250] sm:$0xff]
        %v472 = vld [vmem:[%s324 + $0x258] sm:$0xff]
        %v473 = vld [vmem:[%s324 + $0x260] sm:$0xff]
        %v474 = vld [vmem:[%s324 + $0x268] sm:$0xff]
        %v475 = vld [vmem:[%s324 + $0x270] sm:$0xff]
        %v476 = vld [vmem:[%s324 + $0x278] sm:$0xff]
        %v477 = vld [vmem:[%s324 + $0x280] sm:$0xff]
        %v478 = vld [vmem:[%s324 + $0x288] sm:$0xff]
        %v479 = vld [vmem:[%s324 + $0x290] sm:$0xff]
        %v480 = vld [vmem:[%s324 + $0x298] sm:$0xff]
        %v481 = vld [vmem:[%s324 + $0x2a0] sm:$0xff]
        %v482 = vld [vmem:[%s324 + $0x2a8] sm:$0xff]
        %v483 = vld [vmem:[%s324 + $0x2b0] sm:$0xff]
        %v484 = vld [vmem:[%s324 + $0x2b8] sm:$0xff]
        %v485 = vld [vmem:[%s324 + $0x2c0] sm:$0xff]
        %v486 = vld [vmem:[%s324 + $0x2c8] sm:$0xff]
        %v487 = vld [vmem:[%s324 + $0x2d0] sm:$0xff]
        %v488 = vld [vmem:[%s324 + $0x2d8] sm:$0xff]
        %v489 = vld [vmem:[%s324 + $0x2e0] sm:$0xff]
        %v490 = vld [vmem:[%s324 + $0x2e8] sm:$0xff]
        %v491 = vld [vmem:[%s324 + $0x2f0] sm:$0xff]
        %v492 = vld [vmem:[%s324 + $0x2f8] sm:$0xff]
        %v493 = vld [vmem:[%s324 + $0x300] sm:$0xff]
        %v494 = vld [vmem:[%s324 + $0x308] sm:$0xff]
        %v495 = vld [vmem:[%s324 + $0x310] sm:$0xff]
        %v496 = vld [vmem:[%s324 + $0x318] sm:$0xff]
        %v497 = vld [vmem:[%s324 + $0x320] sm:$0xff]
        %v498 = vld [vmem:[%s324 + $0x328] sm:$0xff]
        %v499 = vld [vmem:[%s324 + $0x330] sm:$0xff]
        %v500 = vld [vmem:[%s324 + $0x338] sm:$0xff]
        %v501 = vld [vmem:[%s324 + $0x340] sm:$0xff]
        %v502 = vld [vmem:[%s324 + $0x348] sm:$0xff]
        %v503 = vld [vmem:[%s324 + $0x350] sm:$0xff]
        %v504 = vld [vmem:[%s324 + $0x358] sm:$0xff]
        %v505 = vld [vmem:[%s324 + $0x360] sm:$0xff]
        %v506 = vld [vmem:[%s324 + $0x368] sm:$0xff]
        %v507 = vld [vmem:[%s324 + $0x370] sm:$0xff]
        %v508 = vld [vmem:[%s324 + $0x378] sm:$0xff]
        %v509 = vld [vmem:[%s324 + $0x380] sm:$0xff]
        %v510 = vld [vmem:[%s324 + $0x388] sm:$0xff]
        %v511 = vld [vmem:[%s324 + $0x390] sm:$0xff]
        %v512 = vld [vmem:[%s324 + $0x398] sm:$0xff]
        %v513 = vld [vmem:[%s324 + $0x3a0] sm:$0xff]
        %v514 = vld [vmem:[%s324 + $0x3a8] sm:$0xff]
        %v515 = vld [vmem:[%s324 + $0x3b0] sm:$0xff]
        %v516 = vld [vmem:[%s324 + $0x3b8] sm:$0xff]
        %v517 = vld [vmem:[%s324 + $0x3c0] sm:$0xff]
        %v518 = vld [vmem:[%s324 + $0x3c8] sm:$0xff]
        %v519 = vld [vmem:[%s324 + $0x3d0] sm:$0xff]
        %v520 = vld [vmem:[%s324 + $0x3d8] sm:$0xff]
        %v521 = vld [vmem:[%s324 + $0x3e0] sm:$0xff]
        %v522 = vld [vmem:[%s324 + $0x3e8] sm:$0xff]
        %v523 = vld [vmem:[%s324 + $0x3f0] sm:$0xff]
        %v524 = vld [vmem:[%s324 + $0x3f8] sm:$0xff]
        %v525 = vld [vmem:[%s333] sm:$0xf]
        %v527 = vlaneseq
        %v528 = vshrl.u32 %v527, 7
        %v529 = vsub.s32 0, %v528
        %v530 = vrot.slane %v525, %v529
        %v531 = vlaneseq
        %v532 = vshrl.u32 %v531, 7
        %v533 = vsub.s32 1, %v532
        %v534 = vrot.slane %v525, %v533
        %v535 = vlaneseq
        %v536 = vshrl.u32 %v535, 7
        %v537 = vsub.s32 2, %v536
        %v538 = vrot.slane %v525, %v537
        %v539 = vlaneseq
        %v540 = vshrl.u32 %v539, 7
        %v541 = vsub.s32 3, %v540
        %v542 = vrot.slane %v525, %v541
        %v549 = vunpack.c.l.s4 1966171168
        %v550 = vunpack.c.0.s8 %v549
        %v551 = vlaneseq
        %v552 = vshrl.u32 %v551, 7
        %v553 = vsub.s32 %v550, %v552
        %v554 = vrot.slane %v396, %v553
        %v555 = vcombine.high %v554, %v554
        %v557 = vunpack.c.l.s4 1966171168
        %v558 = vunpack.c.0.s8 %v557
        %v559 = vlaneseq
        %v560 = vshrl.u32 %v559, 7
        %v561 = vsub.s32 %v558, %v560
        %v562 = vrot.slane %v554, %v561
        %v564 = vunpack.c.l.s4 1966171168
        %v565 = vunpack.c.0.s8 %v564
        %v566 = vlaneseq
        %v567 = vshrl.u32 %v566, 7
        %v568 = vsub.s32 %v565, %v567
        %v569 = vrot.slane %v555, %v568
        %v570 = vcombine.high %v562, %v562
        %v571 = vcombine.high %v569, %v569
        %v704 = vunpack.c.l.b16 %v397
        %v705 = vunpack.c.h.b16 %v397
        %v706 = vunpack.c.l.b16 %v398
        %v707 = vunpack.c.h.b16 %v398
        %v708 = vunpack.c.l.b16 %v399
        %v709 = vunpack.c.h.b16 %v399
        %v710 = vunpack.c.l.b16 %v400
        %v711 = vunpack.c.h.b16 %v400
        %v712 = vunpack.c.l.b16 %v401
        %v713 = vunpack.c.h.b16 %v401
        %v714 = vunpack.c.l.b16 %v402
        %v715 = vunpack.c.h.b16 %v402
        %v716 = vunpack.c.l.b16 %v403
        %v717 = vunpack.c.h.b16 %v403
        %v718 = vunpack.c.l.b16 %v404
        %v719 = vunpack.c.h.b16 %v404
        %v720 = vunpack.c.l.b16 %v405
        %v721 = vunpack.c.h.b16 %v405
        %v722 = vunpack.c.l.b16 %v406
        %v723 = vunpack.c.h.b16 %v406
        %v724 = vunpack.c.l.b16 %v407
        %v725 = vunpack.c.h.b16 %v407
        %v726 = vunpack.c.l.b16 %v408
        %v727 = vunpack.c.h.b16 %v408
        %v728 = vunpack.c.l.b16 %v409
        %v729 = vunpack.c.h.b16 %v409
        %v730 = vunpack.c.l.b16 %v410
        %v731 = vunpack.c.h.b16 %v410
        %v732 = vunpack.c.l.b16 %v411
        %v733 = vunpack.c.h.b16 %v411
        %v734 = vunpack.c.l.b16 %v412
        %v735 = vunpack.c.h.b16 %v412
        %v736 = vunpack.c.l.b16 %v413
        %v737 = vunpack.c.h.b16 %v413
        %v738 = vunpack.c.l.b16 %v414
        %v739 = vunpack.c.h.b16 %v414
        %v740 = vunpack.c.l.b16 %v415
        %v741 = vunpack.c.h.b16 %v415
        %v742 = vunpack.c.l.b16 %v416
        %v743 = vunpack.c.h.b16 %v416
        %v744 = vunpack.c.l.b16 %v417
        %v745 = vunpack.c.h.b16 %v417
        %v746 = vunpack.c.l.b16 %v418
        %v747 = vunpack.c.h.b16 %v418
        %v748 = vunpack.c.l.b16 %v419
        %v749 = vunpack.c.h.b16 %v419
        %v750 = vunpack.c.l.b16 %v420
        %v751 = vunpack.c.h.b16 %v420
        %v752 = vunpack.c.l.b16 %v421
        %v753 = vunpack.c.h.b16 %v421
        %v754 = vunpack.c.l.b16 %v422
        %v755 = vunpack.c.h.b16 %v422
        %v756 = vunpack.c.l.b16 %v423
        %v757 = vunpack.c.h.b16 %v423
        %v758 = vunpack.c.l.b16 %v424
        %v759 = vunpack.c.h.b16 %v424
        %v760 = vunpack.c.l.b16 %v425
        %v761 = vunpack.c.h.b16 %v425
        %v762 = vunpack.c.l.b16 %v426
        %v763 = vunpack.c.h.b16 %v426
        %v764 = vunpack.c.l.b16 %v427
        %v765 = vunpack.c.h.b16 %v427
        %v766 = vunpack.c.l.b16 %v428
        %v767 = vunpack.c.h.b16 %v428
        %v768 = vunpack.c.l.b16 %v429
        %v769 = vunpack.c.h.b16 %v429
        %v770 = vunpack.c.l.b16 %v430
        %v771 = vunpack.c.h.b16 %v430
        %v772 = vunpack.c.l.b16 %v431
        %v773 = vunpack.c.h.b16 %v431
        %v774 = vunpack.c.l.b16 %v432
        %v775 = vunpack.c.h.b16 %v432
        %v776 = vunpack.c.l.b16 %v433
        %v777 = vunpack.c.h.b16 %v433
        %v778 = vunpack.c.l.b16 %v434
        %v779 = vunpack.c.h.b16 %v434
        %v780 = vunpack.c.l.b16 %v435
        %v781 = vunpack.c.h.b16 %v435
        %v782 = vunpack.c.l.b16 %v436
        %v783 = vunpack.c.h.b16 %v436
        %v784 = vunpack.c.l.b16 %v437
        %v785 = vunpack.c.h.b16 %v437
        %v786 = vunpack.c.l.b16 %v438
        %v787 = vunpack.c.h.b16 %v438
        %v788 = vunpack.c.l.b16 %v439
        %v789 = vunpack.c.h.b16 %v439
        %v790 = vunpack.c.l.b16 %v440
        %v791 = vunpack.c.h.b16 %v440
        %v792 = vunpack.c.l.b16 %v441
        %v793 = vunpack.c.h.b16 %v441
        %v794 = vunpack.c.l.b16 %v442
        %v795 = vunpack.c.h.b16 %v442
        %v796 = vunpack.c.l.b16 %v443
        %v797 = vunpack.c.h.b16 %v443
        %v798 = vunpack.c.l.b16 %v444
        %v799 = vunpack.c.h.b16 %v444
        %v800 = vunpack.c.l.b16 %v445
        %v801 = vunpack.c.h.b16 %v445
        %v802 = vunpack.c.l.b16 %v446
        %v803 = vunpack.c.h.b16 %v446
        %v804 = vunpack.c.l.b16 %v447
        %v805 = vunpack.c.h.b16 %v447
        %v806 = vunpack.c.l.b16 %v448
        %v807 = vunpack.c.h.b16 %v448
        %v808 = vunpack.c.l.b16 %v449
        %v809 = vunpack.c.h.b16 %v449
        %v810 = vunpack.c.l.b16 %v450
        %v811 = vunpack.c.h.b16 %v450
        %v812 = vunpack.c.l.b16 %v451
        %v813 = vunpack.c.h.b16 %v451
        %v814 = vunpack.c.l.b16 %v452
        %v815 = vunpack.c.h.b16 %v452
        %v816 = vunpack.c.l.b16 %v453
        %v817 = vunpack.c.h.b16 %v453
        %v818 = vunpack.c.l.b16 %v454
        %v819 = vunpack.c.h.b16 %v454
        %v820 = vunpack.c.l.b16 %v455
        %v821 = vunpack.c.h.b16 %v455
        %v822 = vunpack.c.l.b16 %v456
        %v823 = vunpack.c.h.b16 %v456
        %v824 = vunpack.c.l.b16 %v457
        %v825 = vunpack.c.h.b16 %v457
        %v826 = vunpack.c.l.b16 %v458
        %v827 = vunpack.c.h.b16 %v458
        %v828 = vunpack.c.l.b16 %v459
        %v829 = vunpack.c.h.b16 %v459
        %v830 = vunpack.c.l.b16 %v460
        %v831 = vunpack.c.h.b16 %v460
        %v832 = vunpack.c.l.b16 %v461
        %v833 = vunpack.c.h.b16 %v461
        %v834 = vunpack.c.l.b16 %v462
        %v835 = vunpack.c.h.b16 %v462
        %v836 = vunpack.c.l.b16 %v463
        %v837 = vunpack.c.h.b16 %v463
        %v838 = vunpack.c.l.b16 %v464
        %v839 = vunpack.c.h.b16 %v464
        %v840 = vunpack.c.l.b16 %v465
        %v841 = vunpack.c.h.b16 %v465
        %v842 = vunpack.c.l.b16 %v466
        %v843 = vunpack.c.h.b16 %v466
        %v844 = vunpack.c.l.b16 %v467
        %v845 = vunpack.c.h.b16 %v467
        %v846 = vunpack.c.l.b16 %v468
        %v847 = vunpack.c.h.b16 %v468
        %v848 = vunpack.c.l.b16 %v469
        %v849 = vunpack.c.h.b16 %v469
        %v850 = vunpack.c.l.b16 %v470
        %v851 = vunpack.c.h.b16 %v470
        %v852 = vunpack.c.l.b16 %v471
        %v853 = vunpack.c.h.b16 %v471
        %v854 = vunpack.c.l.b16 %v472
        %v855 = vunpack.c.h.b16 %v472
        %v856 = vunpack.c.l.b16 %v473
        %v857 = vunpack.c.h.b16 %v473
        %v858 = vunpack.c.l.b16 %v474
        %v859 = vunpack.c.h.b16 %v474
        %v860 = vunpack.c.l.b16 %v475
        %v861 = vunpack.c.h.b16 %v475
        %v862 = vunpack.c.l.b16 %v476
        %v863 = vunpack.c.h.b16 %v476
        %v864 = vunpack.c.l.b16 %v477
        %v865 = vunpack.c.h.b16 %v477
        %v866 = vunpack.c.l.b16 %v478
        %v867 = vunpack.c.h.b16 %v478
        %v868 = vunpack.c.l.b16 %v479
        %v869 = vunpack.c.h.b16 %v479
        %v870 = vunpack.c.l.b16 %v480
        %v871 = vunpack.c.h.b16 %v480
        %v872 = vunpack.c.l.b16 %v481
        %v873 = vunpack.c.h.b16 %v481
        %v874 = vunpack.c.l.b16 %v482
        %v875 = vunpack.c.h.b16 %v482
        %v876 = vunpack.c.l.b16 %v483
        %v877 = vunpack.c.h.b16 %v483
        %v878 = vunpack.c.l.b16 %v484
        %v879 = vunpack.c.h.b16 %v484
        %v880 = vunpack.c.l.b16 %v485
        %v881 = vunpack.c.h.b16 %v485
        %v882 = vunpack.c.l.b16 %v486
        %v883 = vunpack.c.h.b16 %v486
        %v884 = vunpack.c.l.b16 %v487
        %v885 = vunpack.c.h.b16 %v487
        %v886 = vunpack.c.l.b16 %v488
        %v887 = vunpack.c.h.b16 %v488
        %v888 = vunpack.c.l.b16 %v489
        %v889 = vunpack.c.h.b16 %v489
        %v890 = vunpack.c.l.b16 %v490
        %v891 = vunpack.c.h.b16 %v490
        %v892 = vunpack.c.l.b16 %v491
        %v893 = vunpack.c.h.b16 %v491
        %v894 = vunpack.c.l.b16 %v492
        %v895 = vunpack.c.h.b16 %v492
        %v896 = vunpack.c.l.b16 %v493
        %v897 = vunpack.c.h.b16 %v493
        %v898 = vunpack.c.l.b16 %v494
        %v899 = vunpack.c.h.b16 %v494
        %v900 = vunpack.c.l.b16 %v495
        %v901 = vunpack.c.h.b16 %v495
        %v902 = vunpack.c.l.b16 %v496
        %v903 = vunpack.c.h.b16 %v496
        %v904 = vunpack.c.l.b16 %v497
        %v905 = vunpack.c.h.b16 %v497
        %v906 = vunpack.c.l.b16 %v498
        %v907 = vunpack.c.h.b16 %v498
        %v908 = vunpack.c.l.b16 %v499
        %v909 = vunpack.c.h.b16 %v499
        %v910 = vunpack.c.l.b16 %v500
        %v911 = vunpack.c.h.b16 %v500
        %v912 = vunpack.c.l.b16 %v501
        %v913 = vunpack.c.h.b16 %v501
        %v914 = vunpack.c.l.b16 %v502
        %v915 = vunpack.c.h.b16 %v502
        %v916 = vunpack.c.l.b16 %v503
        %v917 = vunpack.c.h.b16 %v503
        %v918 = vunpack.c.l.b16 %v504
        %v919 = vunpack.c.h.b16 %v504
        %v920 = vunpack.c.l.b16 %v505
        %v921 = vunpack.c.h.b16 %v505
        %v922 = vunpack.c.l.b16 %v506
        %v923 = vunpack.c.h.b16 %v506
        %v924 = vunpack.c.l.b16 %v507
        %v925 = vunpack.c.h.b16 %v507
        %v926 = vunpack.c.l.b16 %v508
        %v927 = vunpack.c.h.b16 %v508
        %v928 = vunpack.c.l.b16 %v509
        %v929 = vunpack.c.h.b16 %v509
        %v930 = vunpack.c.l.b16 %v510
        %v931 = vunpack.c.h.b16 %v510
        %v932 = vunpack.c.l.b16 %v511
        %v933 = vunpack.c.h.b16 %v511
        %v934 = vunpack.c.l.b16 %v512
        %v935 = vunpack.c.h.b16 %v512
        %v936 = vunpack.c.l.b16 %v513
        %v937 = vunpack.c.h.b16 %v513
        %v938 = vunpack.c.l.b16 %v514
        %v939 = vunpack.c.h.b16 %v514
        %v940 = vunpack.c.l.b16 %v515
        %v941 = vunpack.c.h.b16 %v515
        %v942 = vunpack.c.l.b16 %v516
        %v943 = vunpack.c.h.b16 %v516
        %v944 = vunpack.c.l.b16 %v517
        %v945 = vunpack.c.h.b16 %v517
        %v946 = vunpack.c.l.b16 %v518
        %v947 = vunpack.c.h.b16 %v518
        %v948 = vunpack.c.l.b16 %v519
        %v949 = vunpack.c.h.b16 %v519
        %v950 = vunpack.c.l.b16 %v520
        %v951 = vunpack.c.h.b16 %v520
        %v952 = vunpack.c.l.b16 %v521
        %v953 = vunpack.c.h.b16 %v521
        %v954 = vunpack.c.l.b16 %v522
        %v955 = vunpack.c.h.b16 %v522
        %v956 = vunpack.c.l.b16 %v523
        %v957 = vunpack.c.h.b16 %v523
        %v958 = vunpack.c.l.b16 %v524
        %v959 = vunpack.c.h.b16 %v524
        %v960 = vpack.c.b16 %v708, %v704
        %v961 = vpack.c.b16 %v709, %v705
        %v962 = vpack.c.b16 %v710, %v706
        %v963 = vpack.c.b16 %v711, %v707
        %v964 = vpack.c.b16 %v716, %v712
        %v965 = vpack.c.b16 %v717, %v713
        %v966 = vpack.c.b16 %v718, %v714
        %v967 = vpack.c.b16 %v719, %v715
        %v968 = vpack.c.b16 %v724, %v720
        %v969 = vpack.c.b16 %v725, %v721
        %v970 = vpack.c.b16 %v726, %v722
        %v971 = vpack.c.b16 %v727, %v723
        %v972 = vpack.c.b16 %v732, %v728
        %v973 = vpack.c.b16 %v733, %v729
        %v974 = vpack.c.b16 %v734, %v730
        %v975 = vpack.c.b16 %v735, %v731
        %v976 = vpack.c.b16 %v740, %v736
        %v977 = vpack.c.b16 %v741, %v737
        %v978 = vpack.c.b16 %v742, %v738
        %v979 = vpack.c.b16 %v743, %v739
        %v980 = vpack.c.b16 %v748, %v744
        %v981 = vpack.c.b16 %v749, %v745
        %v982 = vpack.c.b16 %v750, %v746
        %v983 = vpack.c.b16 %v751, %v747
        %v984 = vpack.c.b16 %v756, %v752
        %v985 = vpack.c.b16 %v757, %v753
        %v986 = vpack.c.b16 %v758, %v754
        %v987 = vpack.c.b16 %v759, %v755
        %v988 = vpack.c.b16 %v764, %v760
        %v989 = vpack.c.b16 %v765, %v761
        %v990 = vpack.c.b16 %v766, %v762
        %v991 = vpack.c.b16 %v767, %v763
        %v992 = vpack.c.b16 %v772, %v768
        %v993 = vpack.c.b16 %v773, %v769
        %v994 = vpack.c.b16 %v774, %v770
        %v995 = vpack.c.b16 %v775, %v771
        %v996 = vpack.c.b16 %v780, %v776
        %v997 = vpack.c.b16 %v781, %v777
        %v998 = vpack.c.b16 %v782, %v778
        %v999 = vpack.c.b16 %v783, %v779
        %v1000 = vpack.c.b16 %v788, %v784
        %v1001 = vpack.c.b16 %v789, %v785
        %v1002 = vpack.c.b16 %v790, %v786
        %v1003 = vpack.c.b16 %v791, %v787
        %v1004 = vpack.c.b16 %v796, %v792
        %v1005 = vpack.c.b16 %v797, %v793
        %v1006 = vpack.c.b16 %v798, %v794
        %v1007 = vpack.c.b16 %v799, %v795
        %v1008 = vpack.c.b16 %v804, %v800
        %v1009 = vpack.c.b16 %v805, %v801
        %v1010 = vpack.c.b16 %v806, %v802
        %v1011 = vpack.c.b16 %v807, %v803
        %v1012 = vpack.c.b16 %v812, %v808
        %v1013 = vpack.c.b16 %v813, %v809
        %v1014 = vpack.c.b16 %v814, %v810
        %v1015 = vpack.c.b16 %v815, %v811
        %v1016 = vpack.c.b16 %v820, %v816
        %v1017 = vpack.c.b16 %v821, %v817
        %v1018 = vpack.c.b16 %v822, %v818
        %v1019 = vpack.c.b16 %v823, %v819
        %v1020 = vpack.c.b16 %v828, %v824
        %v1021 = vpack.c.b16 %v829, %v825
        %v1022 = vpack.c.b16 %v830, %v826
        %v1023 = vpack.c.b16 %v831, %v827
        %v1024 = vpack.c.b16 %v836, %v832
        %v1025 = vpack.c.b16 %v837, %v833
        %v1026 = vpack.c.b16 %v838, %v834
        %v1027 = vpack.c.b16 %v839, %v835
        %v1028 = vpack.c.b16 %v844, %v840
        %v1029 = vpack.c.b16 %v845, %v841
        %v1030 = vpack.c.b16 %v846, %v842
        %v1031 = vpack.c.b16 %v847, %v843
        %v1032 = vpack.c.b16 %v852, %v848
        %v1033 = vpack.c.b16 %v853, %v849
        %v1034 = vpack.c.b16 %v854, %v850
        %v1035 = vpack.c.b16 %v855, %v851
        %v1036 = vpack.c.b16 %v860, %v856
        %v1037 = vpack.c.b16 %v861, %v857
        %v1038 = vpack.c.b16 %v862, %v858
        %v1039 = vpack.c.b16 %v863, %v859
        %v1040 = vpack.c.b16 %v868, %v864
        %v1041 = vpack.c.b16 %v869, %v865
        %v1042 = vpack.c.b16 %v870, %v866
        %v1043 = vpack.c.b16 %v871, %v867
        %v1044 = vpack.c.b16 %v876, %v872
        %v1045 = vpack.c.b16 %v877, %v873
        %v1046 = vpack.c.b16 %v878, %v874
        %v1047 = vpack.c.b16 %v879, %v875
        %v1048 = vpack.c.b16 %v884, %v880
        %v1049 = vpack.c.b16 %v885, %v881
        %v1050 = vpack.c.b16 %v886, %v882
        %v1051 = vpack.c.b16 %v887, %v883
        %v1052 = vpack.c.b16 %v892, %v888
        %v1053 = vpack.c.b16 %v893, %v889
        %v1054 = vpack.c.b16 %v894, %v890
        %v1055 = vpack.c.b16 %v895, %v891
        %v1056 = vpack.c.b16 %v900, %v896
        %v1057 = vpack.c.b16 %v901, %v897
        %v1058 = vpack.c.b16 %v902, %v898
        %v1059 = vpack.c.b16 %v903, %v899
        %v1060 = vpack.c.b16 %v908, %v904
        %v1061 = vpack.c.b16 %v909, %v905
        %v1062 = vpack.c.b16 %v910, %v906
        %v1063 = vpack.c.b16 %v911, %v907
        %v1064 = vpack.c.b16 %v916, %v912
        %v1065 = vpack.c.b16 %v917, %v913
        %v1066 = vpack.c.b16 %v918, %v914
        %v1067 = vpack.c.b16 %v919, %v915
        %v1068 = vpack.c.b16 %v924, %v920
        %v1069 = vpack.c.b16 %v925, %v921
        %v1070 = vpack.c.b16 %v926, %v922
        %v1071 = vpack.c.b16 %v927, %v923
        %v1072 = vpack.c.b16 %v932, %v928
        %v1073 = vpack.c.b16 %v933, %v929
        %v1074 = vpack.c.b16 %v934, %v930
        %v1075 = vpack.c.b16 %v935, %v931
        %v1076 = vpack.c.b16 %v940, %v936
        %v1077 = vpack.c.b16 %v941, %v937
        %v1078 = vpack.c.b16 %v942, %v938
        %v1079 = vpack.c.b16 %v943, %v939
        %v1080 = vpack.c.b16 %v948, %v944
        %v1081 = vpack.c.b16 %v949, %v945
        %v1082 = vpack.c.b16 %v950, %v946
        %v1083 = vpack.c.b16 %v951, %v947
        %v1084 = vpack.c.b16 %v956, %v952
        %v1085 = vpack.c.b16 %v957, %v953
        %v1086 = vpack.c.b16 %v958, %v954
        %v1087 = vpack.c.b16 %v959, %v955
        %1216 = vmatprep.subr.bf16.mxu0 %v961
        %1217 = vmatpush1.bf16.msra.mxu0 %v960
        %1218 = vmatprep.subr.bf16.mxu0 %v965
        %1219 = vmatpush1.bf16.msra.mxu0 %v964
        %1220 = vmatprep.subr.bf16.mxu0 %v969
        %1221 = vmatpush1.bf16.msra.mxu0 %v968
        %1222 = vmatprep.subr.bf16.mxu0 %v973
        %1223 = vmatpush1.bf16.msra.mxu0 %v972
        %1224 = vmatprep.subr.bf16.mxu0 %v977
        %1225 = vmatpush1.bf16.msra.mxu0 %v976
        %1226 = vmatprep.subr.bf16.mxu0 %v981
        %1227 = vmatpush1.bf16.msra.mxu0 %v980
        %1228 = vmatprep.subr.bf16.mxu0 %v985
        %1229 = vmatpush1.bf16.msra.mxu0 %v984
        %1230 = vmatprep.subr.bf16.mxu0 %v989
        %1231 = vmatpush1.bf16.msra.mxu0 %v988
        %1232 = vmatprep.subr.bf16.mxu0 %v993
        %1233 = vmatpush1.bf16.msra.mxu0 %v992
        %1234 = vmatprep.subr.bf16.mxu0 %v997
        %1235 = vmatpush1.bf16.msra.mxu0 %v996
        %1236 = vmatprep.subr.bf16.mxu0 %v1001
        %1237 = vmatpush1.bf16.msra.mxu0 %v1000
        %1238 = vmatprep.subr.bf16.mxu0 %v1005
        %1239 = vmatpush1.bf16.msra.mxu0 %v1004
        %1240 = vmatprep.subr.bf16.mxu0 %v1009
        %1241 = vmatpush1.bf16.msra.mxu0 %v1008
        %1242 = vmatprep.subr.bf16.mxu0 %v1013
        %1243 = vmatpush1.bf16.msra.mxu0 %v1012
        %1244 = vmatprep.subr.bf16.mxu0 %v1017
        %1245 = vmatpush1.bf16.msra.mxu0 %v1016
        %1246 = vmatprep.subr.bf16.mxu0 %v1021
        %1247 = vmatpush1.bf16.msra.mxu0 %v1020
        %1248 = vmatprep.mubr.bf16.mxu0 %v569
        %1249 = vmatmul.mubr.bf16.gmra.mrb[0].mxu0 %v562
        %v1250 = vpop.f32.mrb[0].mxu0
        %v1251 = vadd.f32 %v530, %v1250
        %v1252 = vpop.f32.mrb[0].mxu0
        %v1253 = vadd.f32 %v534, %v1252
        %v1254 = vpop.f32.mrb[0].mxu0
        %v1255 = vpop.f32.mrb[0].mxu0
        %1256 = vdwg.mxu0
        %1257 = vmatprep.subr.bf16.mxu0 %v1025
        %1258 = vmatpush1.bf16.msra.mxu0 %v1024
        %1259 = vmatprep.subr.bf16.mxu0 %v1029
        %1260 = vmatpush1.bf16.msra.mxu0 %v1028
        %1261 = vmatprep.subr.bf16.mxu0 %v1033
        %1262 = vmatpush1.bf16.msra.mxu0 %v1032
        %1263 = vmatprep.subr.bf16.mxu0 %v1037
        %1264 = vmatpush1.bf16.msra.mxu0 %v1036
        %1265 = vmatprep.subr.bf16.mxu0 %v1041
        %1266 = vmatpush1.bf16.msra.mxu0 %v1040
        %1267 = vmatprep.subr.bf16.mxu0 %v1045
        %1268 = vmatpush1.bf16.msra.mxu0 %v1044
        %1269 = vmatprep.subr.bf16.mxu0 %v1049
        %1270 = vmatpush1.bf16.msra.mxu0 %v1048
        %1271 = vmatprep.subr.bf16.mxu0 %v1053
        %1272 = vmatpush1.bf16.msra.mxu0 %v1052
        %1273 = vmatprep.subr.bf16.mxu0 %v1057
        %1274 = vmatpush1.bf16.msra.mxu0 %v1056
        %1275 = vmatprep.subr.bf16.mxu0 %v1061
        %1276 = vmatpush1.bf16.msra.mxu0 %v1060
        %1277 = vmatprep.subr.bf16.mxu0 %v1065
        %1278 = vmatpush1.bf16.msra.mxu0 %v1064
        %1279 = vmatprep.subr.bf16.mxu0 %v1069
        %1280 = vmatpush1.bf16.msra.mxu0 %v1068
        %1281 = vmatprep.subr.bf16.mxu0 %v1073
        %1282 = vmatpush1.bf16.msra.mxu0 %v1072
        %1283 = vmatprep.subr.bf16.mxu0 %v1077
        %1284 = vmatpush1.bf16.msra.mxu0 %v1076
        %1285 = vmatprep.subr.bf16.mxu0 %v1081
        %1286 = vmatpush1.bf16.msra.mxu0 %v1080
        %1287 = vmatprep.subr.bf16.mxu0 %v1085
        %1288 = vmatpush1.bf16.msra.mxu0 %v1084
        %1289 = vmatprep.mubr.bf16.mxu0 %v571
        %1290 = vmatmul.mubr.bf16.gmra.mrb[0].mxu0 %v570
        %v1291 = vpop.f32.mrb[0].mxu0
        %v1292 = vadd.f32 %v1251, %v1291
        %v1293 = vpop.f32.mrb[0].mxu0
        %v1294 = vadd.f32 %v1253, %v1293
        %v1295 = vpop.f32.mrb[0].mxu0
        %v1296 = vpop.f32.mrb[0].mxu0
        %1297 = vdwg.mxu0
        %1298 = vmatprep.subr.bf16.mxu0 %v963
        %1299 = vmatpush1.bf16.msra.mxu0 %v962
        %1300 = vmatprep.subr.bf16.mxu0 %v967
        %1301 = vmatpush1.bf16.msra.mxu0 %v966
        %1302 = vmatprep.subr.bf16.mxu0 %v971
        %1303 = vmatpush1.bf16.msra.mxu0 %v970
        %1304 = vmatprep.subr.bf16.mxu0 %v975
        %1305 = vmatpush1.bf16.msra.mxu0 %v974
        %1306 = vmatprep.subr.bf16.mxu0 %v979
        %1307 = vmatpush1.bf16.msra.mxu0 %v978
        %1308 = vmatprep.subr.bf16.mxu0 %v983
        %1309 = vmatpush1.bf16.msra.mxu0 %v982
        %1310 = vmatprep.subr.bf16.mxu0 %v987
        %1311 = vmatpush1.bf16.msra.mxu0 %v986
        %1312 = vmatprep.subr.bf16.mxu0 %v991
        %1313 = vmatpush1.bf16.msra.mxu0 %v990
        %1314 = vmatprep.subr.bf16.mxu0 %v995
        %1315 = vmatpush1.bf16.msra.mxu0 %v994
        %1316 = vmatprep.subr.bf16.mxu0 %v999
        %1317 = vmatpush1.bf16.msra.mxu0 %v998
        %1318 = vmatprep.subr.bf16.mxu0 %v1003
        %1319 = vmatpush1.bf16.msra.mxu0 %v1002
        %1320 = vmatprep.subr.bf16.mxu0 %v1007
        %1321 = vmatpush1.bf16.msra.mxu0 %v1006
        %1322 = vmatprep.subr.bf16.mxu0 %v1011
        %1323 = vmatpush1.bf16.msra.mxu0 %v1010
        %1324 = vmatprep.subr.bf16.mxu0 %v1015
        %1325 = vmatpush1.bf16.msra.mxu0 %v1014
        %1326 = vmatprep.subr.bf16.mxu0 %v1019
        %1327 = vmatpush1.bf16.msra.mxu0 %v1018
        %1328 = vmatprep.subr.bf16.mxu0 %v1023
        %1329 = vmatpush1.bf16.msra.mxu0 %v1022
        %1330 = vmatprep.mubr.bf16.mxu0 %v569
        %1331 = vmatmul.mubr.bf16.gmra.mrb[0].mxu0 %v562
        %v1332 = vpop.f32.mrb[0].mxu0
        %v1333 = vadd.f32 %v538, %v1332
        %v1334 = vpop.f32.mrb[0].mxu0
        %v1335 = vadd.f32 %v542, %v1334
        %v1336 = vpop.f32.mrb[0].mxu0
        %v1337 = vpop.f32.mrb[0].mxu0
        %1338 = vdwg.mxu0
        %1339 = vmatprep.subr.bf16.mxu0 %v1027
        %1340 = vmatpush1.bf16.msra.mxu0 %v1026
        %1341 = vmatprep.subr.bf16.mxu0 %v1031
        %1342 = vmatpush1.bf16.msra.mxu0 %v1030
        %1343 = vmatprep.subr.bf16.mxu0 %v1035
        %1344 = vmatpush1.bf16.msra.mxu0 %v1034
        %1345 = vmatprep.subr.bf16.mxu0 %v1039
        %1346 = vmatpush1.bf16.msra.mxu0 %v1038
        %1347 = vmatprep.subr.bf16.mxu0 %v1043
        %1348 = vmatpush1.bf16.msra.mxu0 %v1042
        %1349 = vmatprep.subr.bf16.mxu0 %v1047
        %1350 = vmatpush1.bf16.msra.mxu0 %v1046
        %1351 = vmatprep.subr.bf16.mxu0 %v1051
        %1352 = vmatpush1.bf16.msra.mxu0 %v1050
        %1353 = vmatprep.subr.bf16.mxu0 %v1055
        %1354 = vmatpush1.bf16.msra.mxu0 %v1054
        %1355 = vmatprep.subr.bf16.mxu0 %v1059
        %1356 = vmatpush1.bf16.msra.mxu0 %v1058
        %1357 = vmatprep.subr.bf16.mxu0 %v1063
        %1358 = vmatpush1.bf16.msra.mxu0 %v1062
        %1359 = vmatprep.subr.bf16.mxu0 %v1067
        %1360 = vmatpush1.bf16.msra.mxu0 %v1066
        %1361 = vmatprep.subr.bf16.mxu0 %v1071
        %1362 = vmatpush1.bf16.msra.mxu0 %v1070
        %1363 = vmatprep.subr.bf16.mxu0 %v1075
        %1364 = vmatpush1.bf16.msra.mxu0 %v1074
        %1365 = vmatprep.subr.bf16.mxu0 %v1079
        %1366 = vmatpush1.bf16.msra.mxu0 %v1078
        %1367 = vmatprep.subr.bf16.mxu0 %v1083
        %1368 = vmatpush1.bf16.msra.mxu0 %v1082
        %1369 = vmatprep.subr.bf16.mxu0 %v1087
        %1370 = vmatpush1.bf16.msra.mxu0 %v1086
        %1371 = vmatprep.mubr.bf16.mxu0 %v571
        %1372 = vmatmul.mubr.bf16.gmra.mrb[0].mxu0 %v570
        %v1373 = vpop.f32.mrb[0].mxu0
        %v1374 = vadd.f32 %v1333, %v1373
        %v1375 = vpop.f32.mrb[0].mxu0
        %v1376 = vadd.f32 %v1335, %v1375
        %v1377 = vpop.f32.mrb[0].mxu0
        %v1378 = vpop.f32.mrb[0].mxu0
        %1379 = vdwg.mxu0
        %v1380 = vld [vmem:[#allocation2] sm:$0xff]
        %v1381 = vld [vmem:[#allocation2 + $0x8] sm:$0xff]
        %v1382 = vpack.c.bf16 %v1292, %v1292
        %v1383 = vpack.c.bf16 %v1294, %v1294
        %v1384 = vpack.c.bf16 %v1374, %v1374
        %v1385 = vpack.c.bf16 %v1376, %v1376
        %v1386 = vld [vmem:[%s342] sm:$0xff]
        %v1387 = vld [vmem:[%s342 + $0x8] sm:$0xff]
        %v1388 = vld [vmem:[%s342 + $0x10] sm:$0xff]
        %v1389 = vld [vmem:[%s342 + $0x18] sm:$0xff]
        %v1390 = vld [vmem:[%s342 + $0x20] sm:$0xff]
        %v1391 = vld [vmem:[%s342 + $0x28] sm:$0xff]
        %v1392 = vld [vmem:[%s342 + $0x30] sm:$0xff]
        %v1393 = vld [vmem:[%s342 + $0x38] sm:$0xff]
        %v1394 = vld [vmem:[%s342 + $0x40] sm:$0xff]
        %v1395 = vld [vmem:[%s342 + $0x48] sm:$0xff]
        %v1396 = vld [vmem:[%s342 + $0x50] sm:$0xff]
        %v1397 = vld [vmem:[%s342 + $0x58] sm:$0xff]
        %v1398 = vld [vmem:[%s342 + $0x60] sm:$0xff]
        %v1399 = vld [vmem:[%s342 + $0x68] sm:$0xff]
        %v1400 = vld [vmem:[%s342 + $0x70] sm:$0xff]
        %v1401 = vld [vmem:[%s342 + $0x78] sm:$0xff]
        %v1402 = vld [vmem:[%s342 + $0x80] sm:$0xff]
        %v1403 = vld [vmem:[%s342 + $0x88] sm:$0xff]
        %v1404 = vld [vmem:[%s342 + $0x90] sm:$0xff]
        %v1405 = vld [vmem:[%s342 + $0x98] sm:$0xff]
        %v1406 = vld [vmem:[%s342 + $0xa0] sm:$0xff]
        %v1407 = vld [vmem:[%s342 + $0xa8] sm:$0xff]
        %v1408 = vld [vmem:[%s342 + $0xb0] sm:$0xff]
        %v1409 = vld [vmem:[%s342 + $0xb8] sm:$0xff]
        %v1410 = vld [vmem:[%s342 + $0xc0] sm:$0xff]
        %v1411 = vld [vmem:[%s342 + $0xc8] sm:$0xff]
        %v1412 = vld [vmem:[%s342 + $0xd0] sm:$0xff]
        %v1413 = vld [vmem:[%s342 + $0xd8] sm:$0xff]
        %v1414 = vld [vmem:[%s342 + $0xe0] sm:$0xff]
        %v1415 = vld [vmem:[%s342 + $0xe8] sm:$0xff]
        %v1416 = vld [vmem:[%s342 + $0xf0] sm:$0xff]
        %v1417 = vld [vmem:[%s342 + $0xf8] sm:$0xff]
        %v1418 = vld [vmem:[%s342 + $0x100] sm:$0xff]
        %v1419 = vld [vmem:[%s342 + $0x108] sm:$0xff]
        %v1420 = vld [vmem:[%s342 + $0x110] sm:$0xff]
        %v1421 = vld [vmem:[%s342 + $0x118] sm:$0xff]
        %v1422 = vld [vmem:[%s342 + $0x120] sm:$0xff]
        %v1423 = vld [vmem:[%s342 + $0x128] sm:$0xff]
        %v1424 = vld [vmem:[%s342 + $0x130] sm:$0xff]
        %v1425 = vld [vmem:[%s342 + $0x138] sm:$0xff]
        %v1426 = vld [vmem:[%s342 + $0x140] sm:$0xff]
        %v1427 = vld [vmem:[%s342 + $0x148] sm:$0xff]
        %v1428 = vld [vmem:[%s342 + $0x150] sm:$0xff]
        %v1429 = vld [vmem:[%s342 + $0x158] sm:$0xff]
        %v1430 = vld [vmem:[%s342 + $0x160] sm:$0xff]
        %v1431 = vld [vmem:[%s342 + $0x168] sm:$0xff]
        %v1432 = vld [vmem:[%s342 + $0x170] sm:$0xff]
        %v1433 = vld [vmem:[%s342 + $0x178] sm:$0xff]
        %v1434 = vld [vmem:[%s342 + $0x180] sm:$0xff]
        %v1435 = vld [vmem:[%s342 + $0x188] sm:$0xff]
        %v1436 = vld [vmem:[%s342 + $0x190] sm:$0xff]
        %v1437 = vld [vmem:[%s342 + $0x198] sm:$0xff]
        %v1438 = vld [vmem:[%s342 + $0x1a0] sm:$0xff]
        %v1439 = vld [vmem:[%s342 + $0x1a8] sm:$0xff]
        %v1440 = vld [vmem:[%s342 + $0x1b0] sm:$0xff]
        %v1441 = vld [vmem:[%s342 + $0x1b8] sm:$0xff]
        %v1442 = vld [vmem:[%s342 + $0x1c0] sm:$0xff]
        %v1443 = vld [vmem:[%s342 + $0x1c8] sm:$0xff]
        %v1444 = vld [vmem:[%s342 + $0x1d0] sm:$0xff]
        %v1445 = vld [vmem:[%s342 + $0x1d8] sm:$0xff]
        %v1446 = vld [vmem:[%s342 + $0x1e0] sm:$0xff]
        %v1447 = vld [vmem:[%s342 + $0x1e8] sm:$0xff]
        %v1448 = vld [vmem:[%s342 + $0x1f0] sm:$0xff]
        %v1449 = vld [vmem:[%s342 + $0x1f8] sm:$0xff]
        %v1450 = vld [vmem:[%s342 + $0x200] sm:$0xff]
        %v1451 = vld [vmem:[%s342 + $0x208] sm:$0xff]
        %v1452 = vld [vmem:[%s342 + $0x210] sm:$0xff]
        %v1453 = vld [vmem:[%s342 + $0x218] sm:$0xff]
        %v1454 = vld [vmem:[%s342 + $0x220] sm:$0xff]
        %v1455 = vld [vmem:[%s342 + $0x228] sm:$0xff]
        %v1456 = vld [vmem:[%s342 + $0x230] sm:$0xff]
        %v1457 = vld [vmem:[%s342 + $0x238] sm:$0xff]
        %v1458 = vld [vmem:[%s342 + $0x240] sm:$0xff]
        %v1459 = vld [vmem:[%s342 + $0x248] sm:$0xff]
        %v1460 = vld [vmem:[%s342 + $0x250] sm:$0xff]
        %v1461 = vld [vmem:[%s342 + $0x258] sm:$0xff]
        %v1462 = vld [vmem:[%s342 + $0x260] sm:$0xff]
        %v1463 = vld [vmem:[%s342 + $0x268] sm:$0xff]
        %v1464 = vld [vmem:[%s342 + $0x270] sm:$0xff]
        %v1465 = vld [vmem:[%s342 + $0x278] sm:$0xff]
        %v1466 = vld [vmem:[%s342 + $0x280] sm:$0xff]
        %v1467 = vld [vmem:[%s342 + $0x288] sm:$0xff]
        %v1468 = vld [vmem:[%s342 + $0x290] sm:$0xff]
        %v1469 = vld [vmem:[%s342 + $0x298] sm:$0xff]
        %v1470 = vld [vmem:[%s342 + $0x2a0] sm:$0xff]
        %v1471 = vld [vmem:[%s342 + $0x2a8] sm:$0xff]
        %v1472 = vld [vmem:[%s342 + $0x2b0] sm:$0xff]
        %v1473 = vld [vmem:[%s342 + $0x2b8] sm:$0xff]
        %v1474 = vld [vmem:[%s342 + $0x2c0] sm:$0xff]
        %v1475 = vld [vmem:[%s342 + $0x2c8] sm:$0xff]
        %v1476 = vld [vmem:[%s342 + $0x2d0] sm:$0xff]
        %v1477 = vld [vmem:[%s342 + $0x2d8] sm:$0xff]
        %v1478 = vld [vmem:[%s342 + $0x2e0] sm:$0xff]
        %v1479 = vld [vmem:[%s342 + $0x2e8] sm:$0xff]
        %v1480 = vld [vmem:[%s342 + $0x2f0] sm:$0xff]
        %v1481 = vld [vmem:[%s342 + $0x2f8] sm:$0xff]
        %v1482 = vld [vmem:[%s342 + $0x300] sm:$0xff]
        %v1483 = vld [vmem:[%s342 + $0x308] sm:$0xff]
        %v1484 = vld [vmem:[%s342 + $0x310] sm:$0xff]
        %v1485 = vld [vmem:[%s342 + $0x318] sm:$0xff]
        %v1486 = vld [vmem:[%s342 + $0x320] sm:$0xff]
        %v1487 = vld [vmem:[%s342 + $0x328] sm:$0xff]
        %v1488 = vld [vmem:[%s342 + $0x330] sm:$0xff]
        %v1489 = vld [vmem:[%s342 + $0x338] sm:$0xff]
        %v1490 = vld [vmem:[%s342 + $0x340] sm:$0xff]
        %v1491 = vld [vmem:[%s342 + $0x348] sm:$0xff]
        %v1492 = vld [vmem:[%s342 + $0x350] sm:$0xff]
        %v1493 = vld [vmem:[%s342 + $0x358] sm:$0xff]
        %v1494 = vld [vmem:[%s342 + $0x360] sm:$0xff]
        %v1495 = vld [vmem:[%s342 + $0x368] sm:$0xff]
        %v1496 = vld [vmem:[%s342 + $0x370] sm:$0xff]
        %v1497 = vld [vmem:[%s342 + $0x378] sm:$0xff]
        %v1498 = vld [vmem:[%s342 + $0x380] sm:$0xff]
        %v1499 = vld [vmem:[%s342 + $0x388] sm:$0xff]
        %v1500 = vld [vmem:[%s342 + $0x390] sm:$0xff]
        %v1501 = vld [vmem:[%s342 + $0x398] sm:$0xff]
        %v1502 = vld [vmem:[%s342 + $0x3a0] sm:$0xff]
        %v1503 = vld [vmem:[%s342 + $0x3a8] sm:$0xff]
        %v1504 = vld [vmem:[%s342 + $0x3b0] sm:$0xff]
        %v1505 = vld [vmem:[%s342 + $0x3b8] sm:$0xff]
        %v1506 = vld [vmem:[%s342 + $0x3c0] sm:$0xff]
        %v1507 = vld [vmem:[%s342 + $0x3c8] sm:$0xff]
        %v1508 = vld [vmem:[%s342 + $0x3d0] sm:$0xff]
        %v1509 = vld [vmem:[%s342 + $0x3d8] sm:$0xff]
        %v1510 = vld [vmem:[%s342 + $0x3e0] sm:$0xff]
        %v1511 = vld [vmem:[%s342 + $0x3e8] sm:$0xff]
        %v1512 = vld [vmem:[%s342 + $0x3f0] sm:$0xff]
        %v1513 = vld [vmem:[%s342 + $0x3f8] sm:$0xff]
        %v1514 = vld [vmem:[%s342 + $0x400] sm:$0xff]
        %v1515 = vld [vmem:[%s342 + $0x408] sm:$0xff]
        %v1516 = vld [vmem:[%s342 + $0x410] sm:$0xff]
        %v1517 = vld [vmem:[%s342 + $0x418] sm:$0xff]
        %v1518 = vld [vmem:[%s342 + $0x420] sm:$0xff]
        %v1519 = vld [vmem:[%s342 + $0x428] sm:$0xff]
        %v1520 = vld [vmem:[%s342 + $0x430] sm:$0xff]
        %v1521 = vld [vmem:[%s342 + $0x438] sm:$0xff]
        %v1522 = vld [vmem:[%s342 + $0x440] sm:$0xff]
        %v1523 = vld [vmem:[%s342 + $0x448] sm:$0xff]
        %v1524 = vld [vmem:[%s342 + $0x450] sm:$0xff]
        %v1525 = vld [vmem:[%s342 + $0x458] sm:$0xff]
        %v1526 = vld [vmem:[%s342 + $0x460] sm:$0xff]
        %v1527 = vld [vmem:[%s342 + $0x468] sm:$0xff]
        %v1528 = vld [vmem:[%s342 + $0x470] sm:$0xff]
        %v1529 = vld [vmem:[%s342 + $0x478] sm:$0xff]
        %v1530 = vld [vmem:[%s342 + $0x480] sm:$0xff]
        %v1531 = vld [vmem:[%s342 + $0x488] sm:$0xff]
        %v1532 = vld [vmem:[%s342 + $0x490] sm:$0xff]
        %v1533 = vld [vmem:[%s342 + $0x498] sm:$0xff]
        %v1534 = vld [vmem:[%s342 + $0x4a0] sm:$0xff]
        %v1535 = vld [vmem:[%s342 + $0x4a8] sm:$0xff]
        %v1536 = vld [vmem:[%s342 + $0x4b0] sm:$0xff]
        %v1537 = vld [vmem:[%s342 + $0x4b8] sm:$0xff]
        %v1538 = vld [vmem:[%s342 + $0x4c0] sm:$0xff]
        %v1539 = vld [vmem:[%s342 + $0x4c8] sm:$0xff]
        %v1540 = vld [vmem:[%s342 + $0x4d0] sm:$0xff]
        %v1541 = vld [vmem:[%s342 + $0x4d8] sm:$0xff]
        %v1542 = vld [vmem:[%s342 + $0x4e0] sm:$0xff]
        %v1543 = vld [vmem:[%s342 + $0x4e8] sm:$0xff]
        %v1544 = vld [vmem:[%s342 + $0x4f0] sm:$0xff]
        %v1545 = vld [vmem:[%s342 + $0x4f8] sm:$0xff]
        %v1546 = vld [vmem:[%s342 + $0x500] sm:$0xff]
        %v1547 = vld [vmem:[%s342 + $0x508] sm:$0xff]
        %v1548 = vld [vmem:[%s342 + $0x510] sm:$0xff]
        %v1549 = vld [vmem:[%s342 + $0x518] sm:$0xff]
        %v1550 = vld [vmem:[%s342 + $0x520] sm:$0xff]
        %v1551 = vld [vmem:[%s342 + $0x528] sm:$0xff]
        %v1552 = vld [vmem:[%s342 + $0x530] sm:$0xff]
        %v1553 = vld [vmem:[%s342 + $0x538] sm:$0xff]
        %v1554 = vld [vmem:[%s342 + $0x540] sm:$0xff]
        %v1555 = vld [vmem:[%s342 + $0x548] sm:$0xff]
        %v1556 = vld [vmem:[%s342 + $0x550] sm:$0xff]
        %v1557 = vld [vmem:[%s342 + $0x558] sm:$0xff]
        %v1558 = vld [vmem:[%s342 + $0x560] sm:$0xff]
        %v1559 = vld [vmem:[%s342 + $0x568] sm:$0xff]
        %v1560 = vld [vmem:[%s342 + $0x570] sm:$0xff]
        %v1561 = vld [vmem:[%s342 + $0x578] sm:$0xff]
        %v1562 = vld [vmem:[%s342 + $0x580] sm:$0xff]
        %v1563 = vld [vmem:[%s342 + $0x588] sm:$0xff]
        %v1564 = vld [vmem:[%s342 + $0x590] sm:$0xff]
        %v1565 = vld [vmem:[%s342 + $0x598] sm:$0xff]
        %v1566 = vld [vmem:[%s342 + $0x5a0] sm:$0xff]
        %v1567 = vld [vmem:[%s342 + $0x5a8] sm:$0xff]
        %v1568 = vld [vmem:[%s342 + $0x5b0] sm:$0xff]
        %v1569 = vld [vmem:[%s342 + $0x5b8] sm:$0xff]
        %v1570 = vld [vmem:[%s342 + $0x5c0] sm:$0xff]
        %v1571 = vld [vmem:[%s342 + $0x5c8] sm:$0xff]
        %v1572 = vld [vmem:[%s342 + $0x5d0] sm:$0xff]
        %v1573 = vld [vmem:[%s342 + $0x5d8] sm:$0xff]
        %v1574 = vld [vmem:[%s342 + $0x5e0] sm:$0xff]
        %v1575 = vld [vmem:[%s342 + $0x5e8] sm:$0xff]
        %v1576 = vld [vmem:[%s342 + $0x5f0] sm:$0xff]
        %v1577 = vld [vmem:[%s342 + $0x5f8] sm:$0xff]
        %v1578 = vld [vmem:[%s342 + $0x600] sm:$0xff]
        %v1579 = vld [vmem:[%s342 + $0x608] sm:$0xff]
        %v1580 = vld [vmem:[%s342 + $0x610] sm:$0xff]
        %v1581 = vld [vmem:[%s342 + $0x618] sm:$0xff]
        %v1582 = vld [vmem:[%s342 + $0x620] sm:$0xff]
        %v1583 = vld [vmem:[%s342 + $0x628] sm:$0xff]
        %v1584 = vld [vmem:[%s342 + $0x630] sm:$0xff]
        %v1585 = vld [vmem:[%s342 + $0x638] sm:$0xff]
        %v1586 = vld [vmem:[%s342 + $0x640] sm:$0xff]
        %v1587 = vld [vmem:[%s342 + $0x648] sm:$0xff]
        %v1588 = vld [vmem:[%s342 + $0x650] sm:$0xff]
        %v1589 = vld [vmem:[%s342 + $0x658] sm:$0xff]
        %v1590 = vld [vmem:[%s342 + $0x660] sm:$0xff]
        %v1591 = vld [vmem:[%s342 + $0x668] sm:$0xff]
        %v1592 = vld [vmem:[%s342 + $0x670] sm:$0xff]
        %v1593 = vld [vmem:[%s342 + $0x678] sm:$0xff]
        %v1594 = vld [vmem:[%s342 + $0x680] sm:$0xff]
        %v1595 = vld [vmem:[%s342 + $0x688] sm:$0xff]
        %v1596 = vld [vmem:[%s342 + $0x690] sm:$0xff]
        %v1597 = vld [vmem:[%s342 + $0x698] sm:$0xff]
        %v1598 = vld [vmem:[%s342 + $0x6a0] sm:$0xff]
        %v1599 = vld [vmem:[%s342 + $0x6a8] sm:$0xff]
        %v1600 = vld [vmem:[%s342 + $0x6b0] sm:$0xff]
        %v1601 = vld [vmem:[%s342 + $0x6b8] sm:$0xff]
        %v1602 = vld [vmem:[%s342 + $0x6c0] sm:$0xff]
        %v1603 = vld [vmem:[%s342 + $0x6c8] sm:$0xff]
        %v1604 = vld [vmem:[%s342 + $0x6d0] sm:$0xff]
        %v1605 = vld [vmem:[%s342 + $0x6d8] sm:$0xff]
        %v1606 = vld [vmem:[%s342 + $0x6e0] sm:$0xff]
        %v1607 = vld [vmem:[%s342 + $0x6e8] sm:$0xff]
        %v1608 = vld [vmem:[%s342 + $0x6f0] sm:$0xff]
        %v1609 = vld [vmem:[%s342 + $0x6f8] sm:$0xff]
        %v1610 = vld [vmem:[%s342 + $0x700] sm:$0xff]
        %v1611 = vld [vmem:[%s342 + $0x708] sm:$0xff]
        %v1612 = vld [vmem:[%s342 + $0x710] sm:$0xff]
        %v1613 = vld [vmem:[%s342 + $0x718] sm:$0xff]
        %v1614 = vld [vmem:[%s342 + $0x720] sm:$0xff]
        %v1615 = vld [vmem:[%s342 + $0x728] sm:$0xff]
        %v1616 = vld [vmem:[%s342 + $0x730] sm:$0xff]
        %v1617 = vld [vmem:[%s342 + $0x738] sm:$0xff]
        %v1618 = vld [vmem:[%s342 + $0x740] sm:$0xff]
        %v1619 = vld [vmem:[%s342 + $0x748] sm:$0xff]
        %v1620 = vld [vmem:[%s342 + $0x750] sm:$0xff]
        %v1621 = vld [vmem:[%s342 + $0x758] sm:$0xff]
        %v1622 = vld [vmem:[%s342 + $0x760] sm:$0xff]
        %v1623 = vld [vmem:[%s342 + $0x768] sm:$0xff]
        %v1624 = vld [vmem:[%s342 + $0x770] sm:$0xff]
        %v1625 = vld [vmem:[%s342 + $0x778] sm:$0xff]
        %v1626 = vld [vmem:[%s342 + $0x780] sm:$0xff]
        %v1627 = vld [vmem:[%s342 + $0x788] sm:$0xff]
        %v1628 = vld [vmem:[%s342 + $0x790] sm:$0xff]
        %v1629 = vld [vmem:[%s342 + $0x798] sm:$0xff]
        %v1630 = vld [vmem:[%s342 + $0x7a0] sm:$0xff]
        %v1631 = vld [vmem:[%s342 + $0x7a8] sm:$0xff]
        %v1632 = vld [vmem:[%s342 + $0x7b0] sm:$0xff]
        %v1633 = vld [vmem:[%s342 + $0x7b8] sm:$0xff]
        %v1634 = vld [vmem:[%s342 + $0x7c0] sm:$0xff]
        %v1635 = vld [vmem:[%s342 + $0x7c8] sm:$0xff]
        %v1636 = vld [vmem:[%s342 + $0x7d0] sm:$0xff]
        %v1637 = vld [vmem:[%s342 + $0x7d8] sm:$0xff]
        %v1638 = vld [vmem:[%s342 + $0x7e0] sm:$0xff]
        %v1639 = vld [vmem:[%s342 + $0x7e8] sm:$0xff]
        %v1640 = vld [vmem:[%s342 + $0x7f0] sm:$0xff]
        %v1641 = vld [vmem:[%s342 + $0x7f8] sm:$0xff]
        %v1898 = vunpack.c.l.b16 %v1386
        %v1899 = vunpack.c.h.b16 %v1386
        %v1900 = vunpack.c.l.b16 %v1387
        %v1901 = vunpack.c.h.b16 %v1387
        %v1902 = vunpack.c.l.b16 %v1388
        %v1903 = vunpack.c.h.b16 %v1388
        %v1904 = vunpack.c.l.b16 %v1389
        %v1905 = vunpack.c.h.b16 %v1389
        %v1906 = vunpack.c.l.b16 %v1390
        %v1907 = vunpack.c.h.b16 %v1390
        %v1908 = vunpack.c.l.b16 %v1391
        %v1909 = vunpack.c.h.b16 %v1391
        %v1910 = vunpack.c.l.b16 %v1392
        %v1911 = vunpack.c.h.b16 %v1392
        %v1912 = vunpack.c.l.b16 %v1393
        %v1913 = vunpack.c.h.b16 %v1393
        %v1914 = vunpack.c.l.b16 %v1394
        %v1915 = vunpack.c.h.b16 %v1394
        %v1916 = vunpack.c.l.b16 %v1395
        %v1917 = vunpack.c.h.b16 %v1395
        %v1918 = vunpack.c.l.b16 %v1396
        %v1919 = vunpack.c.h.b16 %v1396
        %v1920 = vunpack.c.l.b16 %v1397
        %v1921 = vunpack.c.h.b16 %v1397
        %v1922 = vunpack.c.l.b16 %v1398
        %v1923 = vunpack.c.h.b16 %v1398
        %v1924 = vunpack.c.l.b16 %v1399
        %v1925 = vunpack.c.h.b16 %v1399
        %v1926 = vunpack.c.l.b16 %v1400
        %v1927 = vunpack.c.h.b16 %v1400
        %v1928 = vunpack.c.l.b16 %v1401
        %v1929 = vunpack.c.h.b16 %v1401
        %v1930 = vunpack.c.l.b16 %v1402
        %v1931 = vunpack.c.h.b16 %v1402
        %v1932 = vunpack.c.l.b16 %v1403
        %v1933 = vunpack.c.h.b16 %v1403
        %v1934 = vunpack.c.l.b16 %v1404
        %v1935 = vunpack.c.h.b16 %v1404
        %v1936 = vunpack.c.l.b16 %v1405
        %v1937 = vunpack.c.h.b16 %v1405
        %v1938 = vunpack.c.l.b16 %v1406
        %v1939 = vunpack.c.h.b16 %v1406
        %v1940 = vunpack.c.l.b16 %v1407
        %v1941 = vunpack.c.h.b16 %v1407
        %v1942 = vunpack.c.l.b16 %v1408
        %v1943 = vunpack.c.h.b16 %v1408
        %v1944 = vunpack.c.l.b16 %v1409
        %v1945 = vunpack.c.h.b16 %v1409
        %v1946 = vunpack.c.l.b16 %v1410
        %v1947 = vunpack.c.h.b16 %v1410
        %v1948 = vunpack.c.l.b16 %v1411
        %v1949 = vunpack.c.h.b16 %v1411
        %v1950 = vunpack.c.l.b16 %v1412
        %v1951 = vunpack.c.h.b16 %v1412
        %v1952 = vunpack.c.l.b16 %v1413
        %v1953 = vunpack.c.h.b16 %v1413
        %v1954 = vunpack.c.l.b16 %v1414
        %v1955 = vunpack.c.h.b16 %v1414
        %v1956 = vunpack.c.l.b16 %v1415
        %v1957 = vunpack.c.h.b16 %v1415
        %v1958 = vunpack.c.l.b16 %v1416
        %v1959 = vunpack.c.h.b16 %v1416
        %v1960 = vunpack.c.l.b16 %v1417
        %v1961 = vunpack.c.h.b16 %v1417
        %v1962 = vunpack.c.l.b16 %v1418
        %v1963 = vunpack.c.h.b16 %v1418
        %v1964 = vunpack.c.l.b16 %v1419
        %v1965 = vunpack.c.h.b16 %v1419
        %v1966 = vunpack.c.l.b16 %v1420
        %v1967 = vunpack.c.h.b16 %v1420
        %v1968 = vunpack.c.l.b16 %v1421
        %v1969 = vunpack.c.h.b16 %v1421
        %v1970 = vunpack.c.l.b16 %v1422
        %v1971 = vunpack.c.h.b16 %v1422
        %v1972 = vunpack.c.l.b16 %v1423
        %v1973 = vunpack.c.h.b16 %v1423
        %v1974 = vunpack.c.l.b16 %v1424
        %v1975 = vunpack.c.h.b16 %v1424
        %v1976 = vunpack.c.l.b16 %v1425
        %v1977 = vunpack.c.h.b16 %v1425
        %v1978 = vunpack.c.l.b16 %v1426
        %v1979 = vunpack.c.h.b16 %v1426
        %v1980 = vunpack.c.l.b16 %v1427
        %v1981 = vunpack.c.h.b16 %v1427
        %v1982 = vunpack.c.l.b16 %v1428
        %v1983 = vunpack.c.h.b16 %v1428
        %v1984 = vunpack.c.l.b16 %v1429
        %v1985 = vunpack.c.h.b16 %v1429
        %v1986 = vunpack.c.l.b16 %v1430
        %v1987 = vunpack.c.h.b16 %v1430
        %v1988 = vunpack.c.l.b16 %v1431
        %v1989 = vunpack.c.h.b16 %v1431
        %v1990 = vunpack.c.l.b16 %v1432
        %v1991 = vunpack.c.h.b16 %v1432
        %v1992 = vunpack.c.l.b16 %v1433
        %v1993 = vunpack.c.h.b16 %v1433
        %v1994 = vunpack.c.l.b16 %v1434
        %v1995 = vunpack.c.h.b16 %v1434
        %v1996 = vunpack.c.l.b16 %v1435
        %v1997 = vunpack.c.h.b16 %v1435
        %v1998 = vunpack.c.l.b16 %v1436
        %v1999 = vunpack.c.h.b16 %v1436
        %v2000 = vunpack.c.l.b16 %v1437
        %v2001 = vunpack.c.h.b16 %v1437
        %v2002 = vunpack.c.l.b16 %v1438
        %v2003 = vunpack.c.h.b16 %v1438
        %v2004 = vunpack.c.l.b16 %v1439
        %v2005 = vunpack.c.h.b16 %v1439
        %v2006 = vunpack.c.l.b16 %v1440
        %v2007 = vunpack.c.h.b16 %v1440
        %v2008 = vunpack.c.l.b16 %v1441
        %v2009 = vunpack.c.h.b16 %v1441
        %v2010 = vunpack.c.l.b16 %v1442
        %v2011 = vunpack.c.h.b16 %v1442
        %v2012 = vunpack.c.l.b16 %v1443
        %v2013 = vunpack.c.h.b16 %v1443
        %v2014 = vunpack.c.l.b16 %v1444
        %v2015 = vunpack.c.h.b16 %v1444
        %v2016 = vunpack.c.l.b16 %v1445
        %v2017 = vunpack.c.h.b16 %v1445
        %v2018 = vunpack.c.l.b16 %v1446
        %v2019 = vunpack.c.h.b16 %v1446
        %v2020 = vunpack.c.l.b16 %v1447
        %v2021 = vunpack.c.h.b16 %v1447
        %v2022 = vunpack.c.l.b16 %v1448
        %v2023 = vunpack.c.h.b16 %v1448
        %v2024 = vunpack.c.l.b16 %v1449
        %v2025 = vunpack.c.h.b16 %v1449
        %v2026 = vunpack.c.l.b16 %v1450
        %v2027 = vunpack.c.h.b16 %v1450
        %v2028 = vunpack.c.l.b16 %v1451
        %v2029 = vunpack.c.h.b16 %v1451
        %v2030 = vunpack.c.l.b16 %v1452
        %v2031 = vunpack.c.h.b16 %v1452
        %v2032 = vunpack.c.l.b16 %v1453
        %v2033 = vunpack.c.h.b16 %v1453
        %v2034 = vunpack.c.l.b16 %v1454
        %v2035 = vunpack.c.h.b16 %v1454
        %v2036 = vunpack.c.l.b16 %v1455
        %v2037 = vunpack.c.h.b16 %v1455
        %v2038 = vunpack.c.l.b16 %v1456
        %v2039 = vunpack.c.h.b16 %v1456
        %v2040 = vunpack.c.l.b16 %v1457
        %v2041 = vunpack.c.h.b16 %v1457
        %v2042 = vunpack.c.l.b16 %v1458
        %v2043 = vunpack.c.h.b16 %v1458
        %v2044 = vunpack.c.l.b16 %v1459
        %v2045 = vunpack.c.h.b16 %v1459
        %v2046 = vunpack.c.l.b16 %v1460
        %v2047 = vunpack.c.h.b16 %v1460
        %v2048 = vunpack.c.l.b16 %v1461
        %v2049 = vunpack.c.h.b16 %v1461
        %v2050 = vunpack.c.l.b16 %v1462
        %v2051 = vunpack.c.h.b16 %v1462
        %v2052 = vunpack.c.l.b16 %v1463
        %v2053 = vunpack.c.h.b16 %v1463
        %v2054 = vunpack.c.l.b16 %v1464
        %v2055 = vunpack.c.h.b16 %v1464
        %v2056 = vunpack.c.l.b16 %v1465
        %v2057 = vunpack.c.h.b16 %v1465
        %v2058 = vunpack.c.l.b16 %v1466
        %v2059 = vunpack.c.h.b16 %v1466
        %v2060 = vunpack.c.l.b16 %v1467
        %v2061 = vunpack.c.h.b16 %v1467
        %v2062 = vunpack.c.l.b16 %v1468
        %v2063 = vunpack.c.h.b16 %v1468
        %v2064 = vunpack.c.l.b16 %v1469
        %v2065 = vunpack.c.h.b16 %v1469
        %v2066 = vunpack.c.l.b16 %v1470
        %v2067 = vunpack.c.h.b16 %v1470
        %v2068 = vunpack.c.l.b16 %v1471
        %v2069 = vunpack.c.h.b16 %v1471
        %v2070 = vunpack.c.l.b16 %v1472
        %v2071 = vunpack.c.h.b16 %v1472
        %v2072 = vunpack.c.l.b16 %v1473
        %v2073 = vunpack.c.h.b16 %v1473
        %v2074 = vunpack.c.l.b16 %v1474
        %v2075 = vunpack.c.h.b16 %v1474
        %v2076 = vunpack.c.l.b16 %v1475
        %v2077 = vunpack.c.h.b16 %v1475
        %v2078 = vunpack.c.l.b16 %v1476
        %v2079 = vunpack.c.h.b16 %v1476
        %v2080 = vunpack.c.l.b16 %v1477
        %v2081 = vunpack.c.h.b16 %v1477
        %v2082 = vunpack.c.l.b16 %v1478
        %v2083 = vunpack.c.h.b16 %v1478
        %v2084 = vunpack.c.l.b16 %v1479
        %v2085 = vunpack.c.h.b16 %v1479
        %v2086 = vunpack.c.l.b16 %v1480
        %v2087 = vunpack.c.h.b16 %v1480
        %v2088 = vunpack.c.l.b16 %v1481
        %v2089 = vunpack.c.h.b16 %v1481
        %v2090 = vunpack.c.l.b16 %v1482
        %v2091 = vunpack.c.h.b16 %v1482
        %v2092 = vunpack.c.l.b16 %v1483
        %v2093 = vunpack.c.h.b16 %v1483
        %v2094 = vunpack.c.l.b16 %v1484
        %v2095 = vunpack.c.h.b16 %v1484
        %v2096 = vunpack.c.l.b16 %v1485
        %v2097 = vunpack.c.h.b16 %v1485
        %v2098 = vunpack.c.l.b16 %v1486
        %v2099 = vunpack.c.h.b16 %v1486
        %v2100 = vunpack.c.l.b16 %v1487
        %v2101 = vunpack.c.h.b16 %v1487
        %v2102 = vunpack.c.l.b16 %v1488
        %v2103 = vunpack.c.h.b16 %v1488
        %v2104 = vunpack.c.l.b16 %v1489
        %v2105 = vunpack.c.h.b16 %v1489
        %v2106 = vunpack.c.l.b16 %v1490
        %v2107 = vunpack.c.h.b16 %v1490
        %v2108 = vunpack.c.l.b16 %v1491
        %v2109 = vunpack.c.h.b16 %v1491
        %v2110 = vunpack.c.l.b16 %v1492
        %v2111 = vunpack.c.h.b16 %v1492
        %v2112 = vunpack.c.l.b16 %v1493
        %v2113 = vunpack.c.h.b16 %v1493
        %v2114 = vunpack.c.l.b16 %v1494
        %v2115 = vunpack.c.h.b16 %v1494
        %v2116 = vunpack.c.l.b16 %v1495
        %v2117 = vunpack.c.h.b16 %v1495
        %v2118 = vunpack.c.l.b16 %v1496
        %v2119 = vunpack.c.h.b16 %v1496
        %v2120 = vunpack.c.l.b16 %v1497
        %v2121 = vunpack.c.h.b16 %v1497
        %v2122 = vunpack.c.l.b16 %v1498
        %v2123 = vunpack.c.h.b16 %v1498
        %v2124 = vunpack.c.l.b16 %v1499
        %v2125 = vunpack.c.h.b16 %v1499
        %v2126 = vunpack.c.l.b16 %v1500
        %v2127 = vunpack.c.h.b16 %v1500
        %v2128 = vunpack.c.l.b16 %v1501
        %v2129 = vunpack.c.h.b16 %v1501
        %v2130 = vunpack.c.l.b16 %v1502
        %v2131 = vunpack.c.h.b16 %v1502
        %v2132 = vunpack.c.l.b16 %v1503
        %v2133 = vunpack.c.h.b16 %v1503
        %v2134 = vunpack.c.l.b16 %v1504
        %v2135 = vunpack.c.h.b16 %v1504
        %v2136 = vunpack.c.l.b16 %v1505
        %v2137 = vunpack.c.h.b16 %v1505
        %v2138 = vunpack.c.l.b16 %v1506
        %v2139 = vunpack.c.h.b16 %v1506
        %v2140 = vunpack.c.l.b16 %v1507
        %v2141 = vunpack.c.h.b16 %v1507
        %v2142 = vunpack.c.l.b16 %v1508
        %v2143 = vunpack.c.h.b16 %v1508
        %v2144 = vunpack.c.l.b16 %v1509
        %v2145 = vunpack.c.h.b16 %v1509
        %v2146 = vunpack.c.l.b16 %v1510
        %v2147 = vunpack.c.h.b16 %v1510
        %v2148 = vunpack.c.l.b16 %v1511
        %v2149 = vunpack.c.h.b16 %v1511
        %v2150 = vunpack.c.l.b16 %v1512
        %v2151 = vunpack.c.h.b16 %v1512
        %v2152 = vunpack.c.l.b16 %v1513
        %v2153 = vunpack.c.h.b16 %v1513
        %v2154 = vunpack.c.l.b16 %v1514
        %v2155 = vunpack.c.h.b16 %v1514
        %v2156 = vunpack.c.l.b16 %v1515
        %v2157 = vunpack.c.h.b16 %v1515
        %v2158 = vunpack.c.l.b16 %v1516
        %v2159 = vunpack.c.h.b16 %v1516
        %v2160 = vunpack.c.l.b16 %v1517
        %v2161 = vunpack.c.h.b16 %v1517
        %v2162 = vunpack.c.l.b16 %v1518
        %v2163 = vunpack.c.h.b16 %v1518
        %v2164 = vunpack.c.l.b16 %v1519
        %v2165 = vunpack.c.h.b16 %v1519
        %v2166 = vunpack.c.l.b16 %v1520
        %v2167 = vunpack.c.h.b16 %v1520
        %v2168 = vunpack.c.l.b16 %v1521
        %v2169 = vunpack.c.h.b16 %v1521
        %v2170 = vunpack.c.l.b16 %v1522
        %v2171 = vunpack.c.h.b16 %v1522
        %v2172 = vunpack.c.l.b16 %v1523
        %v2173 = vunpack.c.h.b16 %v1523
        %v2174 = vunpack.c.l.b16 %v1524
        %v2175 = vunpack.c.h.b16 %v1524
        %v2176 = vunpack.c.l.b16 %v1525
        %v2177 = vunpack.c.h.b16 %v1525
        %v2178 = vunpack.c.l.b16 %v1526
        %v2179 = vunpack.c.h.b16 %v1526
        %v2180 = vunpack.c.l.b16 %v1527
        %v2181 = vunpack.c.h.b16 %v1527
        %v2182 = vunpack.c.l.b16 %v1528
        %v2183 = vunpack.c.h.b16 %v1528
        %v2184 = vunpack.c.l.b16 %v1529
        %v2185 = vunpack.c.h.b16 %v1529
        %v2186 = vunpack.c.l.b16 %v1530
        %v2187 = vunpack.c.h.b16 %v1530
        %v2188 = vunpack.c.l.b16 %v1531
        %v2189 = vunpack.c.h.b16 %v1531
        %v2190 = vunpack.c.l.b16 %v1532
        %v2191 = vunpack.c.h.b16 %v1532
        %v2192 = vunpack.c.l.b16 %v1533
        %v2193 = vunpack.c.h.b16 %v1533
        %v2194 = vunpack.c.l.b16 %v1534
        %v2195 = vunpack.c.h.b16 %v1534
        %v2196 = vunpack.c.l.b16 %v1535
        %v2197 = vunpack.c.h.b16 %v1535
        %v2198 = vunpack.c.l.b16 %v1536
        %v2199 = vunpack.c.h.b16 %v1536
        %v2200 = vunpack.c.l.b16 %v1537
        %v2201 = vunpack.c.h.b16 %v1537
        %v2202 = vunpack.c.l.b16 %v1538
        %v2203 = vunpack.c.h.b16 %v1538
        %v2204 = vunpack.c.l.b16 %v1539
        %v2205 = vunpack.c.h.b16 %v1539
        %v2206 = vunpack.c.l.b16 %v1540
        %v2207 = vunpack.c.h.b16 %v1540
        %v2208 = vunpack.c.l.b16 %v1541
        %v2209 = vunpack.c.h.b16 %v1541
        %v2210 = vunpack.c.l.b16 %v1542
        %v2211 = vunpack.c.h.b16 %v1542
        %v2212 = vunpack.c.l.b16 %v1543
        %v2213 = vunpack.c.h.b16 %v1543
        %v2214 = vunpack.c.l.b16 %v1544
        %v2215 = vunpack.c.h.b16 %v1544
        %v2216 = vunpack.c.l.b16 %v1545
        %v2217 = vunpack.c.h.b16 %v1545
        %v2218 = vunpack.c.l.b16 %v1546
        %v2219 = vunpack.c.h.b16 %v1546
        %v2220 = vunpack.c.l.b16 %v1547
        %v2221 = vunpack.c.h.b16 %v1547
        %v2222 = vunpack.c.l.b16 %v1548
        %v2223 = vunpack.c.h.b16 %v1548
        %v2224 = vunpack.c.l.b16 %v1549
        %v2225 = vunpack.c.h.b16 %v1549
        %v2226 = vunpack.c.l.b16 %v1550
        %v2227 = vunpack.c.h.b16 %v1550
        %v2228 = vunpack.c.l.b16 %v1551
        %v2229 = vunpack.c.h.b16 %v1551
        %v2230 = vunpack.c.l.b16 %v1552
        %v2231 = vunpack.c.h.b16 %v1552
        %v2232 = vunpack.c.l.b16 %v1553
        %v2233 = vunpack.c.h.b16 %v1553
        %v2234 = vunpack.c.l.b16 %v1554
        %v2235 = vunpack.c.h.b16 %v1554
        %v2236 = vunpack.c.l.b16 %v1555
        %v2237 = vunpack.c.h.b16 %v1555
        %v2238 = vunpack.c.l.b16 %v1556
        %v2239 = vunpack.c.h.b16 %v1556
        %v2240 = vunpack.c.l.b16 %v1557
        %v2241 = vunpack.c.h.b16 %v1557
        %v2242 = vunpack.c.l.b16 %v1558
        %v2243 = vunpack.c.h.b16 %v1558
        %v2244 = vunpack.c.l.b16 %v1559
        %v2245 = vunpack.c.h.b16 %v1559
        %v2246 = vunpack.c.l.b16 %v1560
        %v2247 = vunpack.c.h.b16 %v1560
        %v2248 = vunpack.c.l.b16 %v1561
        %v2249 = vunpack.c.h.b16 %v1561
        %v2250 = vunpack.c.l.b16 %v1562
        %v2251 = vunpack.c.h.b16 %v1562
        %v2252 = vunpack.c.l.b16 %v1563
        %v2253 = vunpack.c.h.b16 %v1563
        %v2254 = vunpack.c.l.b16 %v1564
        %v2255 = vunpack.c.h.b16 %v1564
        %v2256 = vunpack.c.l.b16 %v1565
        %v2257 = vunpack.c.h.b16 %v1565
        %v2258 = vunpack.c.l.b16 %v1566
        %v2259 = vunpack.c.h.b16 %v1566
        %v2260 = vunpack.c.l.b16 %v1567
        %v2261 = vunpack.c.h.b16 %v1567
        %v2262 = vunpack.c.l.b16 %v1568
        %v2263 = vunpack.c.h.b16 %v1568
        %v2264 = vunpack.c.l.b16 %v1569
        %v2265 = vunpack.c.h.b16 %v1569
        %v2266 = vunpack.c.l.b16 %v1570
        %v2267 = vunpack.c.h.b16 %v1570
        %v2268 = vunpack.c.l.b16 %v1571
        %v2269 = vunpack.c.h.b16 %v1571
        %v2270 = vunpack.c.l.b16 %v1572
        %v2271 = vunpack.c.h.b16 %v1572
        %v2272 = vunpack.c.l.b16 %v1573
        %v2273 = vunpack.c.h.b16 %v1573
        %v2274 = vunpack.c.l.b16 %v1574
        %v2275 = vunpack.c.h.b16 %v1574
        %v2276 = vunpack.c.l.b16 %v1575
        %v2277 = vunpack.c.h.b16 %v1575
        %v2278 = vunpack.c.l.b16 %v1576
        %v2279 = vunpack.c.h.b16 %v1576
        %v2280 = vunpack.c.l.b16 %v1577
        %v2281 = vunpack.c.h.b16 %v1577
        %v2282 = vunpack.c.l.b16 %v1578
        %v2283 = vunpack.c.h.b16 %v1578
        %v2284 = vunpack.c.l.b16 %v1579
        %v2285 = vunpack.c.h.b16 %v1579
        %v2286 = vunpack.c.l.b16 %v1580
        %v2287 = vunpack.c.h.b16 %v1580
        %v2288 = vunpack.c.l.b16 %v1581
        %v2289 = vunpack.c.h.b16 %v1581
        %v2290 = vunpack.c.l.b16 %v1582
        %v2291 = vunpack.c.h.b16 %v1582
        %v2292 = vunpack.c.l.b16 %v1583
        %v2293 = vunpack.c.h.b16 %v1583
        %v2294 = vunpack.c.l.b16 %v1584
        %v2295 = vunpack.c.h.b16 %v1584
        %v2296 = vunpack.c.l.b16 %v1585
        %v2297 = vunpack.c.h.b16 %v1585
        %v2298 = vunpack.c.l.b16 %v1586
        %v2299 = vunpack.c.h.b16 %v1586
        %v2300 = vunpack.c.l.b16 %v1587
        %v2301 = vunpack.c.h.b16 %v1587
        %v2302 = vunpack.c.l.b16 %v1588
        %v2303 = vunpack.c.h.b16 %v1588
        %v2304 = vunpack.c.l.b16 %v1589
        %v2305 = vunpack.c.h.b16 %v1589
        %v2306 = vunpack.c.l.b16 %v1590
        %v2307 = vunpack.c.h.b16 %v1590
        %v2308 = vunpack.c.l.b16 %v1591
        %v2309 = vunpack.c.h.b16 %v1591
        %v2310 = vunpack.c.l.b16 %v1592
        %v2311 = vunpack.c.h.b16 %v1592
        %v2312 = vunpack.c.l.b16 %v1593
        %v2313 = vunpack.c.h.b16 %v1593
        %v2314 = vunpack.c.l.b16 %v1594
        %v2315 = vunpack.c.h.b16 %v1594
        %v2316 = vunpack.c.l.b16 %v1595
        %v2317 = vunpack.c.h.b16 %v1595
        %v2318 = vunpack.c.l.b16 %v1596
        %v2319 = vunpack.c.h.b16 %v1596
        %v2320 = vunpack.c.l.b16 %v1597
        %v2321 = vunpack.c.h.b16 %v1597
        %v2322 = vunpack.c.l.b16 %v1598
        %v2323 = vunpack.c.h.b16 %v1598
        %v2324 = vunpack.c.l.b16 %v1599
        %v2325 = vunpack.c.h.b16 %v1599
        %v2326 = vunpack.c.l.b16 %v1600
        %v2327 = vunpack.c.h.b16 %v1600
        %v2328 = vunpack.c.l.b16 %v1601
        %v2329 = vunpack.c.h.b16 %v1601
        %v2330 = vunpack.c.l.b16 %v1602
        %v2331 = vunpack.c.h.b16 %v1602
        %v2332 = vunpack.c.l.b16 %v1603
        %v2333 = vunpack.c.h.b16 %v1603
        %v2334 = vunpack.c.l.b16 %v1604
        %v2335 = vunpack.c.h.b16 %v1604
        %v2336 = vunpack.c.l.b16 %v1605
        %v2337 = vunpack.c.h.b16 %v1605
        %v2338 = vunpack.c.l.b16 %v1606
        %v2339 = vunpack.c.h.b16 %v1606
        %v2340 = vunpack.c.l.b16 %v1607
        %v2341 = vunpack.c.h.b16 %v1607
        %v2342 = vunpack.c.l.b16 %v1608
        %v2343 = vunpack.c.h.b16 %v1608
        %v2344 = vunpack.c.l.b16 %v1609
        %v2345 = vunpack.c.h.b16 %v1609
        %v2346 = vunpack.c.l.b16 %v1610
        %v2347 = vunpack.c.h.b16 %v1610
        %v2348 = vunpack.c.l.b16 %v1611
        %v2349 = vunpack.c.h.b16 %v1611
        %v2350 = vunpack.c.l.b16 %v1612
        %v2351 = vunpack.c.h.b16 %v1612
        %v2352 = vunpack.c.l.b16 %v1613
        %v2353 = vunpack.c.h.b16 %v1613
        %v2354 = vunpack.c.l.b16 %v1614
        %v2355 = vunpack.c.h.b16 %v1614
        %v2356 = vunpack.c.l.b16 %v1615
        %v2357 = vunpack.c.h.b16 %v1615
        %v2358 = vunpack.c.l.b16 %v1616
        %v2359 = vunpack.c.h.b16 %v1616
        %v2360 = vunpack.c.l.b16 %v1617
        %v2361 = vunpack.c.h.b16 %v1617
        %v2362 = vunpack.c.l.b16 %v1618
        %v2363 = vunpack.c.h.b16 %v1618
        %v2364 = vunpack.c.l.b16 %v1619
        %v2365 = vunpack.c.h.b16 %v1619
        %v2366 = vunpack.c.l.b16 %v1620
        %v2367 = vunpack.c.h.b16 %v1620
        %v2368 = vunpack.c.l.b16 %v1621
        %v2369 = vunpack.c.h.b16 %v1621
        %v2370 = vunpack.c.l.b16 %v1622
        %v2371 = vunpack.c.h.b16 %v1622
        %v2372 = vunpack.c.l.b16 %v1623
        %v2373 = vunpack.c.h.b16 %v1623
        %v2374 = vunpack.c.l.b16 %v1624
        %v2375 = vunpack.c.h.b16 %v1624
        %v2376 = vunpack.c.l.b16 %v1625
        %v2377 = vunpack.c.h.b16 %v1625
        %v2378 = vunpack.c.l.b16 %v1626
        %v2379 = vunpack.c.h.b16 %v1626
        %v2380 = vunpack.c.l.b16 %v1627
        %v2381 = vunpack.c.h.b16 %v1627
        %v2382 = vunpack.c.l.b16 %v1628
        %v2383 = vunpack.c.h.b16 %v1628
        %v2384 = vunpack.c.l.b16 %v1629
        %v2385 = vunpack.c.h.b16 %v1629
        %v2386 = vunpack.c.l.b16 %v1630
        %v2387 = vunpack.c.h.b16 %v1630
        %v2388 = vunpack.c.l.b16 %v1631
        %v2389 = vunpack.c.h.b16 %v1631
        %v2390 = vunpack.c.l.b16 %v1632
        %v2391 = vunpack.c.h.b16 %v1632
        %v2392 = vunpack.c.l.b16 %v1633
        %v2393 = vunpack.c.h.b16 %v1633
        %v2394 = vunpack.c.l.b16 %v1634
        %v2395 = vunpack.c.h.b16 %v1634
        %v2396 = vunpack.c.l.b16 %v1635
        %v2397 = vunpack.c.h.b16 %v1635
        %v2398 = vunpack.c.l.b16 %v1636
        %v2399 = vunpack.c.h.b16 %v1636
        %v2400 = vunpack.c.l.b16 %v1637
        %v2401 = vunpack.c.h.b16 %v1637
        %v2402 = vunpack.c.l.b16 %v1638
        %v2403 = vunpack.c.h.b16 %v1638
        %v2404 = vunpack.c.l.b16 %v1639
        %v2405 = vunpack.c.h.b16 %v1639
        %v2406 = vunpack.c.l.b16 %v1640
        %v2407 = vunpack.c.h.b16 %v1640
        %v2408 = vunpack.c.l.b16 %v1641
        %v2409 = vunpack.c.h.b16 %v1641
        %v2410 = vpack.c.b16 %v1906, %v1898
        %v2411 = vpack.c.b16 %v1907, %v1899
        %v2412 = vpack.c.b16 %v1908, %v1900
        %v2413 = vpack.c.b16 %v1909, %v1901
        %v2414 = vpack.c.b16 %v1910, %v1902
        %v2415 = vpack.c.b16 %v1911, %v1903
        %v2416 = vpack.c.b16 %v1912, %v1904
        %v2417 = vpack.c.b16 %v1913, %v1905
        %v2418 = vpack.c.b16 %v1922, %v1914
        %v2419 = vpack.c.b16 %v1923, %v1915
        %v2420 = vpack.c.b16 %v1924, %v1916
        %v2421 = vpack.c.b16 %v1925, %v1917
        %v2422 = vpack.c.b16 %v1926, %v1918
        %v2423 = vpack.c.b16 %v1927, %v1919
        %v2424 = vpack.c.b16 %v1928, %v1920
        %v2425 = vpack.c.b16 %v1929, %v1921
        %v2426 = vpack.c.b16 %v1938, %v1930
        %v2427 = vpack.c.b16 %v1939, %v1931
        %v2428 = vpack.c.b16 %v1940, %v1932
        %v2429 = vpack.c.b16 %v1941, %v1933
        %v2430 = vpack.c.b16 %v1942, %v1934
        %v2431 = vpack.c.b16 %v1943, %v1935
        %v2432 = vpack.c.b16 %v1944, %v1936
        %v2433 = vpack.c.b16 %v1945, %v1937
        %v2434 = vpack.c.b16 %v1954, %v1946
        %v2435 = vpack.c.b16 %v1955, %v1947
        %v2436 = vpack.c.b16 %v1956, %v1948
        %v2437 = vpack.c.b16 %v1957, %v1949
        %v2438 = vpack.c.b16 %v1958, %v1950
        %v2439 = vpack.c.b16 %v1959, %v1951
        %v2440 = vpack.c.b16 %v1960, %v1952
        %v2441 = vpack.c.b16 %v1961, %v1953
        %v2442 = vpack.c.b16 %v1970, %v1962
        %v2443 = vpack.c.b16 %v1971, %v1963
        %v2444 = vpack.c.b16 %v1972, %v1964
        %v2445 = vpack.c.b16 %v1973, %v1965
        %v2446 = vpack.c.b16 %v1974, %v1966
        %v2447 = vpack.c.b16 %v1975, %v1967
        %v2448 = vpack.c.b16 %v1976, %v1968
        %v2449 = vpack.c.b16 %v1977, %v1969
        %v2450 = vpack.c.b16 %v1986, %v1978
        %v2451 = vpack.c.b16 %v1987, %v1979
        %v2452 = vpack.c.b16 %v1988, %v1980
        %v2453 = vpack.c.b16 %v1989, %v1981
        %v2454 = vpack.c.b16 %v1990, %v1982
        %v2455 = vpack.c.b16 %v1991, %v1983
        %v2456 = vpack.c.b16 %v1992, %v1984
        %v2457 = vpack.c.b16 %v1993, %v1985
        %v2458 = vpack.c.b16 %v2002, %v1994
        %v2459 = vpack.c.b16 %v2003, %v1995
        %v2460 = vpack.c.b16 %v2004, %v1996
        %v2461 = vpack.c.b16 %v2005, %v1997
        %v2462 = vpack.c.b16 %v2006, %v1998
        %v2463 = vpack.c.b16 %v2007, %v1999
        %v2464 = vpack.c.b16 %v2008, %v2000
        %v2465 = vpack.c.b16 %v2009, %v2001
        %v2466 = vpack.c.b16 %v2018, %v2010
        %v2467 = vpack.c.b16 %v2019, %v2011
        %v2468 = vpack.c.b16 %v2020, %v2012
        %v2469 = vpack.c.b16 %v2021, %v2013
        %v2470 = vpack.c.b16 %v2022, %v2014
        %v2471 = vpack.c.b16 %v2023, %v2015
        %v2472 = vpack.c.b16 %v2024, %v2016
        %v2473 = vpack.c.b16 %v2025, %v2017
        %v2474 = vpack.c.b16 %v2034, %v2026
        %v2475 = vpack.c.b16 %v2035, %v2027
        %v2476 = vpack.c.b16 %v2036, %v2028
        %v2477 = vpack.c.b16 %v2037, %v2029
        %v2478 = vpack.c.b16 %v2038, %v2030
        %v2479 = vpack.c.b16 %v2039, %v2031
        %v2480 = vpack.c.b16 %v2040, %v2032
        %v2481 = vpack.c.b16 %v2041, %v2033
        %v2482 = vpack.c.b16 %v2050, %v2042
        %v2483 = vpack.c.b16 %v2051, %v2043
        %v2484 = vpack.c.b16 %v2052, %v2044
        %v2485 = vpack.c.b16 %v2053, %v2045
        %v2486 = vpack.c.b16 %v2054, %v2046
        %v2487 = vpack.c.b16 %v2055, %v2047
        %v2488 = vpack.c.b16 %v2056, %v2048
        %v2489 = vpack.c.b16 %v2057, %v2049
        %v2490 = vpack.c.b16 %v2066, %v2058
        %v2491 = vpack.c.b16 %v2067, %v2059
        %v2492 = vpack.c.b16 %v2068, %v2060
        %v2493 = vpack.c.b16 %v2069, %v2061
        %v2494 = vpack.c.b16 %v2070, %v2062
        %v2495 = vpack.c.b16 %v2071, %v2063
        %v2496 = vpack.c.b16 %v2072, %v2064
        %v2497 = vpack.c.b16 %v2073, %v2065
        %v2498 = vpack.c.b16 %v2082, %v2074
        %v2499 = vpack.c.b16 %v2083, %v2075
        %v2500 = vpack.c.b16 %v2084, %v2076
        %v2501 = vpack.c.b16 %v2085, %v2077
        %v2502 = vpack.c.b16 %v2086, %v2078
        %v2503 = vpack.c.b16 %v2087, %v2079
        %v2504 = vpack.c.b16 %v2088, %v2080
        %v2505 = vpack.c.b16 %v2089, %v2081
        %v2506 = vpack.c.b16 %v2098, %v2090
        %v2507 = vpack.c.b16 %v2099, %v2091
        %v2508 = vpack.c.b16 %v2100, %v2092
        %v2509 = vpack.c.b16 %v2101, %v2093
        %v2510 = vpack.c.b16 %v2102, %v2094
        %v2511 = vpack.c.b16 %v2103, %v2095
        %v2512 = vpack.c.b16 %v2104, %v2096
        %v2513 = vpack.c.b16 %v2105, %v2097
        %v2514 = vpack.c.b16 %v2114, %v2106
        %v2515 = vpack.c.b16 %v2115, %v2107
        %v2516 = vpack.c.b16 %v2116, %v2108
        %v2517 = vpack.c.b16 %v2117, %v2109
        %v2518 = vpack.c.b16 %v2118, %v2110
        %v2519 = vpack.c.b16 %v2119, %v2111
        %v2520 = vpack.c.b16 %v2120, %v2112
        %v2521 = vpack.c.b16 %v2121, %v2113
        %v2522 = vpack.c.b16 %v2130, %v2122
        %v2523 = vpack.c.b16 %v2131, %v2123
        %v2524 = vpack.c.b16 %v2132, %v2124
        %v2525 = vpack.c.b16 %v2133, %v2125
        %v2526 = vpack.c.b16 %v2134, %v2126
        %v2527 = vpack.c.b16 %v2135, %v2127
        %v2528 = vpack.c.b16 %v2136, %v2128
        %v2529 = vpack.c.b16 %v2137, %v2129
        %v2530 = vpack.c.b16 %v2146, %v2138
        %v2531 = vpack.c.b16 %v2147, %v2139
        %v2532 = vpack.c.b16 %v2148, %v2140
        %v2533 = vpack.c.b16 %v2149, %v2141
        %v2534 = vpack.c.b16 %v2150, %v2142
        %v2535 = vpack.c.b16 %v2151, %v2143
        %v2536 = vpack.c.b16 %v2152, %v2144
        %v2537 = vpack.c.b16 %v2153, %v2145
        %v2538 = vpack.c.b16 %v2162, %v2154
        %v2539 = vpack.c.b16 %v2163, %v2155
        %v2540 = vpack.c.b16 %v2164, %v2156
        %v2541 = vpack.c.b16 %v2165, %v2157
        %v2542 = vpack.c.b16 %v2166, %v2158
        %v2543 = vpack.c.b16 %v2167, %v2159
        %v2544 = vpack.c.b16 %v2168, %v2160
        %v2545 = vpack.c.b16 %v2169, %v2161
        %v2546 = vpack.c.b16 %v2178, %v2170
        %v2547 = vpack.c.b16 %v2179, %v2171
        %v2548 = vpack.c.b16 %v2180, %v2172
        %v2549 = vpack.c.b16 %v2181, %v2173
        %v2550 = vpack.c.b16 %v2182, %v2174
        %v2551 = vpack.c.b16 %v2183, %v2175
        %v2552 = vpack.c.b16 %v2184, %v2176
        %v2553 = vpack.c.b16 %v2185, %v2177
        %v2554 = vpack.c.b16 %v2194, %v2186
        %v2555 = vpack.c.b16 %v2195, %v2187
        %v2556 = vpack.c.b16 %v2196, %v2188
        %v2557 = vpack.c.b16 %v2197, %v2189
        %v2558 = vpack.c.b16 %v2198, %v2190
        %v2559 = vpack.c.b16 %v2199, %v2191
        %v2560 = vpack.c.b16 %v2200, %v2192
        %v2561 = vpack.c.b16 %v2201, %v2193
        %v2562 = vpack.c.b16 %v2210, %v2202
        %v2563 = vpack.c.b16 %v2211, %v2203
        %v2564 = vpack.c.b16 %v2212, %v2204
        %v2565 = vpack.c.b16 %v2213, %v2205
        %v2566 = vpack.c.b16 %v2214, %v2206
        %v2567 = vpack.c.b16 %v2215, %v2207
        %v2568 = vpack.c.b16 %v2216, %v2208
        %v2569 = vpack.c.b16 %v2217, %v2209
        %v2570 = vpack.c.b16 %v2226, %v2218
        %v2571 = vpack.c.b16 %v2227, %v2219
        %v2572 = vpack.c.b16 %v2228, %v2220
        %v2573 = vpack.c.b16 %v2229, %v2221
        %v2574 = vpack.c.b16 %v2230, %v2222
        %v2575 = vpack.c.b16 %v2231, %v2223
        %v2576 = vpack.c.b16 %v2232, %v2224
        %v2577 = vpack.c.b16 %v2233, %v2225
        %v2578 = vpack.c.b16 %v2242, %v2234
        %v2579 = vpack.c.b16 %v2243, %v2235
        %v2580 = vpack.c.b16 %v2244, %v2236
        %v2581 = vpack.c.b16 %v2245, %v2237
        %v2582 = vpack.c.b16 %v2246, %v2238
        %v2583 = vpack.c.b16 %v2247, %v2239
        %v2584 = vpack.c.b16 %v2248, %v2240
        %v2585 = vpack.c.b16 %v2249, %v2241
        %v2586 = vpack.c.b16 %v2258, %v2250
        %v2587 = vpack.c.b16 %v2259, %v2251
        %v2588 = vpack.c.b16 %v2260, %v2252
        %v2589 = vpack.c.b16 %v2261, %v2253
        %v2590 = vpack.c.b16 %v2262, %v2254
        %v2591 = vpack.c.b16 %v2263, %v2255
        %v2592 = vpack.c.b16 %v2264, %v2256
        %v2593 = vpack.c.b16 %v2265, %v2257
        %v2594 = vpack.c.b16 %v2274, %v2266
        %v2595 = vpack.c.b16 %v2275, %v2267
        %v2596 = vpack.c.b16 %v2276, %v2268
        %v2597 = vpack.c.b16 %v2277, %v2269
        %v2598 = vpack.c.b16 %v2278, %v2270
        %v2599 = vpack.c.b16 %v2279, %v2271
        %v2600 = vpack.c.b16 %v2280, %v2272
        %v2601 = vpack.c.b16 %v2281, %v2273
        %v2602 = vpack.c.b16 %v2290, %v2282
        %v2603 = vpack.c.b16 %v2291, %v2283
        %v2604 = vpack.c.b16 %v2292, %v2284
        %v2605 = vpack.c.b16 %v2293, %v2285
        %v2606 = vpack.c.b16 %v2294, %v2286
        %v2607 = vpack.c.b16 %v2295, %v2287
        %v2608 = vpack.c.b16 %v2296, %v2288
        %v2609 = vpack.c.b16 %v2297, %v2289
        %v2610 = vpack.c.b16 %v2306, %v2298
        %v2611 = vpack.c.b16 %v2307, %v2299
        %v2612 = vpack.c.b16 %v2308, %v2300
        %v2613 = vpack.c.b16 %v2309, %v2301
        %v2614 = vpack.c.b16 %v2310, %v2302
        %v2615 = vpack.c.b16 %v2311, %v2303
        %v2616 = vpack.c.b16 %v2312, %v2304
        %v2617 = vpack.c.b16 %v2313, %v2305
        %v2618 = vpack.c.b16 %v2322, %v2314
        %v2619 = vpack.c.b16 %v2323, %v2315
        %v2620 = vpack.c.b16 %v2324, %v2316
        %v2621 = vpack.c.b16 %v2325, %v2317
        %v2622 = vpack.c.b16 %v2326, %v2318
        %v2623 = vpack.c.b16 %v2327, %v2319
        %v2624 = vpack.c.b16 %v2328, %v2320
        %v2625 = vpack.c.b16 %v2329, %v2321
        %v2626 = vpack.c.b16 %v2338, %v2330
        %v2627 = vpack.c.b16 %v2339, %v2331
        %v2628 = vpack.c.b16 %v2340, %v2332
        %v2629 = vpack.c.b16 %v2341, %v2333
        %v2630 = vpack.c.b16 %v2342, %v2334
        %v2631 = vpack.c.b16 %v2343, %v2335
        %v2632 = vpack.c.b16 %v2344, %v2336
        %v2633 = vpack.c.b16 %v2345, %v2337
        %v2634 = vpack.c.b16 %v2354, %v2346
        %v2635 = vpack.c.b16 %v2355, %v2347
        %v2636 = vpack.c.b16 %v2356, %v2348
        %v2637 = vpack.c.b16 %v2357, %v2349
        %v2638 = vpack.c.b16 %v2358, %v2350
        %v2639 = vpack.c.b16 %v2359, %v2351
        %v2640 = vpack.c.b16 %v2360, %v2352
        %v2641 = vpack.c.b16 %v2361, %v2353
        %v2642 = vpack.c.b16 %v2370, %v2362
        %v2643 = vpack.c.b16 %v2371, %v2363
        %v2644 = vpack.c.b16 %v2372, %v2364
        %v2645 = vpack.c.b16 %v2373, %v2365
        %v2646 = vpack.c.b16 %v2374, %v2366
        %v2647 = vpack.c.b16 %v2375, %v2367
        %v2648 = vpack.c.b16 %v2376, %v2368
        %v2649 = vpack.c.b16 %v2377, %v2369
        %v2650 = vpack.c.b16 %v2386, %v2378
        %v2651 = vpack.c.b16 %v2387, %v2379
        %v2652 = vpack.c.b16 %v2388, %v2380
        %v2653 = vpack.c.b16 %v2389, %v2381
        %v2654 = vpack.c.b16 %v2390, %v2382
        %v2655 = vpack.c.b16 %v2391, %v2383
        %v2656 = vpack.c.b16 %v2392, %v2384
        %v2657 = vpack.c.b16 %v2393, %v2385
        %v2658 = vpack.c.b16 %v2402, %v2394
        %v2659 = vpack.c.b16 %v2403, %v2395
        %v2660 = vpack.c.b16 %v2404, %v2396
        %v2661 = vpack.c.b16 %v2405, %v2397
        %v2662 = vpack.c.b16 %v2406, %v2398
        %v2663 = vpack.c.b16 %v2407, %v2399
        %v2664 = vpack.c.b16 %v2408, %v2400
        %v2665 = vpack.c.b16 %v2409, %v2401
        %2922 = vmatprep.subr.bf16.mxu0 %v2411
        %2923 = vmatpush1.bf16.msra.mxu0 %v2410
        %2924 = vmatprep.subr.bf16.mxu0 %v2419
        %2925 = vmatpush1.bf16.msra.mxu0 %v2418
        %2926 = vmatprep.subr.bf16.mxu0 %v2427
        %2927 = vmatpush1.bf16.msra.mxu0 %v2426
        %2928 = vmatprep.subr.bf16.mxu0 %v2435
        %2929 = vmatpush1.bf16.msra.mxu0 %v2434
        %2930 = vmatprep.subr.bf16.mxu0 %v2443
        %2931 = vmatpush1.bf16.msra.mxu0 %v2442
        %2932 = vmatprep.subr.bf16.mxu0 %v2451
        %2933 = vmatpush1.bf16.msra.mxu0 %v2450
        %2934 = vmatprep.subr.bf16.mxu0 %v2459
        %2935 = vmatpush1.bf16.msra.mxu0 %v2458
        %2936 = vmatprep.subr.bf16.mxu0 %v2467
        %2937 = vmatpush1.bf16.msra.mxu0 %v2466
        %2938 = vmatprep.subr.bf16.mxu0 %v2475
        %2939 = vmatpush1.bf16.msra.mxu0 %v2474
        %2940 = vmatprep.subr.bf16.mxu0 %v2483
        %2941 = vmatpush1.bf16.msra.mxu0 %v2482
        %2942 = vmatprep.subr.bf16.mxu0 %v2491
        %2943 = vmatpush1.bf16.msra.mxu0 %v2490
        %2944 = vmatprep.subr.bf16.mxu0 %v2499
        %2945 = vmatpush1.bf16.msra.mxu0 %v2498
        %2946 = vmatprep.subr.bf16.mxu0 %v2507
        %2947 = vmatpush1.bf16.msra.mxu0 %v2506
        %2948 = vmatprep.subr.bf16.mxu0 %v2515
        %2949 = vmatpush1.bf16.msra.mxu0 %v2514
        %2950 = vmatprep.subr.bf16.mxu0 %v2523
        %2951 = vmatpush1.bf16.msra.mxu0 %v2522
        %2952 = vmatprep.subr.bf16.mxu0 %v2531
        %2953 = vmatpush1.bf16.msra.mxu0 %v2530
        %2954 = vmatprep.mubr.bf16.mxu0 %v1383
        %2955 = vmatmul.mubr.bf16.gmra.mrb[0].mxu0 %v1382
        %v2956 = vpop.f32.mrb[0].mxu0
        %v2957 = vadd.f32 0.0, %v2956
        %v2958 = vpop.f32.mrb[0].mxu0
        %v2959 = vadd.f32 0.0, %v2958
        %v2960 = vpop.f32.mrb[0].mxu0
        %v2961 = vpop.f32.mrb[0].mxu0
        %2962 = vdwg.mxu0
        %2963 = vmatprep.subr.bf16.mxu0 %v2539
        %2964 = vmatpush1.bf16.msra.mxu0 %v2538
        %2965 = vmatprep.subr.bf16.mxu0 %v2547
        %2966 = vmatpush1.bf16.msra.mxu0 %v2546
        %2967 = vmatprep.subr.bf16.mxu0 %v2555
        %2968 = vmatpush1.bf16.msra.mxu0 %v2554
        %2969 = vmatprep.subr.bf16.mxu0 %v2563
        %2970 = vmatpush1.bf16.msra.mxu0 %v2562
        %2971 = vmatprep.subr.bf16.mxu0 %v2571
        %2972 = vmatpush1.bf16.msra.mxu0 %v2570
        %2973 = vmatprep.subr.bf16.mxu0 %v2579
        %2974 = vmatpush1.bf16.msra.mxu0 %v2578
        %2975 = vmatprep.subr.bf16.mxu0 %v2587
        %2976 = vmatpush1.bf16.msra.mxu0 %v2586
        %2977 = vmatprep.subr.bf16.mxu0 %v2595
        %2978 = vmatpush1.bf16.msra.mxu0 %v2594
        %2979 = vmatprep.subr.bf16.mxu0 %v2603
        %2980 = vmatpush1.bf16.msra.mxu0 %v2602
        %2981 = vmatprep.subr.bf16.mxu0 %v2611
        %2982 = vmatpush1.bf16.msra.mxu0 %v2610
        %2983 = vmatprep.subr.bf16.mxu0 %v2619
        %2984 = vmatpush1.bf16.msra.mxu0 %v2618
        %2985 = vmatprep.subr.bf16.mxu0 %v2627
        %2986 = vmatpush1.bf16.msra.mxu0 %v2626
        %2987 = vmatprep.subr.bf16.mxu0 %v2635
        %2988 = vmatpush1.bf16.msra.mxu0 %v2634
        %2989 = vmatprep.subr.bf16.mxu0 %v2643
        %2990 = vmatpush1.bf16.msra.mxu0 %v2642
        %2991 = vmatprep.subr.bf16.mxu0 %v2651
        %2992 = vmatpush1.bf16.msra.mxu0 %v2650
        %2993 = vmatprep.subr.bf16.mxu0 %v2659
        %2994 = vmatpush1.bf16.msra.mxu0 %v2658
        %2995 = vmatprep.mubr.bf16.mxu0 %v1385
        %2996 = vmatmul.mubr.bf16.gmra.mrb[0].mxu0 %v1384
        %v2997 = vpop.f32.mrb[0].mxu0
        %v2998 = vadd.f32 %v2957, %v2997
        %v2999 = vpop.f32.mrb[0].mxu0
        %v3000 = vadd.f32 %v2959, %v2999
        %v3001 = vpop.f32.mrb[0].mxu0
        %v3002 = vpop.f32.mrb[0].mxu0
        %3003 = vdwg.mxu0
        %3004 = vmatprep.subr.bf16.mxu0 %v2413
        %3005 = vmatpush1.bf16.msra.mxu0 %v2412
        %3006 = vmatprep.subr.bf16.mxu0 %v2421
        %3007 = vmatpush1.bf16.msra.mxu0 %v2420
        %3008 = vmatprep.subr.bf16.mxu0 %v2429
        %3009 = vmatpush1.bf16.msra.mxu0 %v2428
        %3010 = vmatprep.subr.bf16.mxu0 %v2437
        %3011 = vmatpush1.bf16.msra.mxu0 %v2436
        %3012 = vmatprep.subr.bf16.mxu0 %v2445
        %3013 = vmatpush1.bf16.msra.mxu0 %v2444
        %3014 = vmatprep.subr.bf16.mxu0 %v2453
        %3015 = vmatpush1.bf16.msra.mxu0 %v2452
        %3016 = vmatprep.subr.bf16.mxu0 %v2461
        %3017 = vmatpush1.bf16.msra.mxu0 %v2460
        %3018 = vmatprep.subr.bf16.mxu0 %v2469
        %3019 = vmatpush1.bf16.msra.mxu0 %v2468
        %3020 = vmatprep.subr.bf16.mxu0 %v2477
        %3021 = vmatpush1.bf16.msra.mxu0 %v2476
        %3022 = vmatprep.subr.bf16.mxu0 %v2485
        %3023 = vmatpush1.bf16.msra.mxu0 %v2484
        %3024 = vmatprep.subr.bf16.mxu0 %v2493
        %3025 = vmatpush1.bf16.msra.mxu0 %v2492
        %3026 = vmatprep.subr.bf16.mxu0 %v2501
        %3027 = vmatpush1.bf16.msra.mxu0 %v2500
        %3028 = vmatprep.subr.bf16.mxu0 %v2509
        %3029 = vmatpush1.bf16.msra.mxu0 %v2508
        %3030 = vmatprep.subr.bf16.mxu0 %v2517
        %3031 = vmatpush1.bf16.msra.mxu0 %v2516
        %3032 = vmatprep.subr.bf16.mxu0 %v2525
        %3033 = vmatpush1.bf16.msra.mxu0 %v2524
        %3034 = vmatprep.subr.bf16.mxu0 %v2533
        %3035 = vmatpush1.bf16.msra.mxu0 %v2532
        %3036 = vmatprep.mubr.bf16.mxu0 %v1383
        %3037 = vmatmul.mubr.bf16.gmra.mrb[0].mxu0 %v1382
        %v3038 = vpop.f32.mrb[0].mxu0
        %v3039 = vadd.f32 0.0, %v3038
        %v3040 = vpop.f32.mrb[0].mxu0
        %v3041 = vadd.f32 0.0, %v3040
        %v3042 = vpop.f32.mrb[0].mxu0
        %v3043 = vpop.f32.mrb[0].mxu0
        %3044 = vdwg.mxu0
        %3045 = vmatprep.subr.bf16.mxu0 %v2541
        %3046 = vmatpush1.bf16.msra.mxu0 %v2540
        %3047 = vmatprep.subr.bf16.mxu0 %v2549
        %3048 = vmatpush1.bf16.msra.mxu0 %v2548
        %3049 = vmatprep.subr.bf16.mxu0 %v2557
        %3050 = vmatpush1.bf16.msra.mxu0 %v2556
        %3051 = vmatprep.subr.bf16.mxu0 %v2565
        %3052 = vmatpush1.bf16.msra.mxu0 %v2564
        %3053 = vmatprep.subr.bf16.mxu0 %v2573
        %3054 = vmatpush1.bf16.msra.mxu0 %v2572
        %3055 = vmatprep.subr.bf16.mxu0 %v2581
        %3056 = vmatpush1.bf16.msra.mxu0 %v2580
        %3057 = vmatprep.subr.bf16.mxu0 %v2589
        %3058 = vmatpush1.bf16.msra.mxu0 %v2588
        %3059 = vmatprep.subr.bf16.mxu0 %v2597
        %3060 = vmatpush1.bf16.msra.mxu0 %v2596
        %3061 = vmatprep.subr.bf16.mxu0 %v2605
        %3062 = vmatpush1.bf16.msra.mxu0 %v2604
        %3063 = vmatprep.subr.bf16.mxu0 %v2613
        %3064 = vmatpush1.bf16.msra.mxu0 %v2612
        %3065 = vmatprep.subr.bf16.mxu0 %v2621
        %3066 = vmatpush1.bf16.msra.mxu0 %v2620
        %3067 = vmatprep.subr.bf16.mxu0 %v2629
        %3068 = vmatpush1.bf16.msra.mxu0 %v2628
        %3069 = vmatprep.subr.bf16.mxu0 %v2637
        %3070 = vmatpush1.bf16.msra.mxu0 %v2636
        %3071 = vmatprep.subr.bf16.mxu0 %v2645
        %3072 = vmatpush1.bf16.msra.mxu0 %v2644
        %3073 = vmatprep.subr.bf16.mxu0 %v2653
        %3074 = vmatpush1.bf16.msra.mxu0 %v2652
        %3075 = vmatprep.subr.bf16.mxu0 %v2661
        %3076 = vmatpush1.bf16.msra.mxu0 %v2660
        %3077 = vmatprep.mubr.bf16.mxu0 %v1385
        %3078 = vmatmul.mubr.bf16.gmra.mrb[0].mxu0 %v1384
        %v3079 = vpop.f32.mrb[0].mxu0
        %v3080 = vadd.f32 %v3039, %v3079
        %v3081 = vpop.f32.mrb[0].mxu0
        %v3082 = vadd.f32 %v3041, %v3081
        %v3083 = vpop.f32.mrb[0].mxu0
        %v3084 = vpop.f32.mrb[0].mxu0
        %3085 = vdwg.mxu0
        %3086 = vmatprep.subr.bf16.mxu0 %v2415
        %3087 = vmatpush1.bf16.msra.mxu0 %v2414
        %3088 = vmatprep.subr.bf16.mxu0 %v2423
        %3089 = vmatpush1.bf16.msra.mxu0 %v2422
        %3090 = vmatprep.subr.bf16.mxu0 %v2431
        %3091 = vmatpush1.bf16.msra.mxu0 %v2430
        %3092 = vmatprep.subr.bf16.mxu0 %v2439
        %3093 = vmatpush1.bf16.msra.mxu0 %v2438
        %3094 = vmatprep.subr.bf16.mxu0 %v2447
        %3095 = vmatpush1.bf16.msra.mxu0 %v2446
        %3096 = vmatprep.subr.bf16.mxu0 %v2455
        %3097 = vmatpush1.bf16.msra.mxu0 %v2454
        %3098 = vmatprep.subr.bf16.mxu0 %v2463
        %3099 = vmatpush1.bf16.msra.mxu0 %v2462
        %3100 = vmatprep.subr.bf16.mxu0 %v2471
        %3101 = vmatpush1.bf16.msra.mxu0 %v2470
        %3102 = vmatprep.subr.bf16.mxu0 %v2479
        %3103 = vmatpush1.bf16.msra.mxu0 %v2478
        %3104 = vmatprep.subr.bf16.mxu0 %v2487
        %3105 = vmatpush1.bf16.msra.mxu0 %v2486
        %3106 = vmatprep.subr.bf16.mxu0 %v2495
        %3107 = vmatpush1.bf16.msra.mxu0 %v2494
        %3108 = vmatprep.subr.bf16.mxu0 %v2503
        %3109 = vmatpush1.bf16.msra.mxu0 %v2502
        %3110 = vmatprep.subr.bf16.mxu0 %v2511
        %3111 = vmatpush1.bf16.msra.mxu0 %v2510
        %3112 = vmatprep.subr.bf16.mxu0 %v2519
        %3113 = vmatpush1.bf16.msra.mxu0 %v2518
        %3114 = vmatprep.subr.bf16.mxu0 %v2527
        %3115 = vmatpush1.bf16.msra.mxu0 %v2526
        %3116 = vmatprep.subr.bf16.mxu0 %v2535
        %3117 = vmatpush1.bf16.msra.mxu0 %v2534
        %3118 = vmatprep.mubr.bf16.mxu0 %v1383
        %3119 = vmatmul.mubr.bf16.gmra.mrb[0].mxu0 %v1382
        %v3120 = vpop.f32.mrb[0].mxu0
        %v3121 = vadd.f32 0.0, %v3120
        %v3122 = vpop.f32.mrb[0].mxu0
        %v3123 = vadd.f32 0.0, %v3122
        %v3124 = vpop.f32.mrb[0].mxu0
        %v3125 = vpop.f32.mrb[0].mxu0
        %3126 = vdwg.mxu0
        %3127 = vmatprep.subr.bf16.mxu0 %v2543
        %3128 = vmatpush1.bf16.msra.mxu0 %v2542
        %3129 = vmatprep.subr.bf16.mxu0 %v2551
        %3130 = vmatpush1.bf16.msra.mxu0 %v2550
        %3131 = vmatprep.subr.bf16.mxu0 %v2559
        %3132 = vmatpush1.bf16.msra.mxu0 %v2558
        %3133 = vmatprep.subr.bf16.mxu0 %v2567
        %3134 = vmatpush1.bf16.msra.mxu0 %v2566
        %3135 = vmatprep.subr.bf16.mxu0 %v2575
        %3136 = vmatpush1.bf16.msra.mxu0 %v2574
        %3137 = vmatprep.subr.bf16.mxu0 %v2583
        %3138 = vmatpush1.bf16.msra.mxu0 %v2582
        %3139 = vmatprep.subr.bf16.mxu0 %v2591
        %3140 = vmatpush1.bf16.msra.mxu0 %v2590
        %3141 = vmatprep.subr.bf16.mxu0 %v2599
        %3142 = vmatpush1.bf16.msra.mxu0 %v2598
        %3143 = vmatprep.subr.bf16.mxu0 %v2607
        %3144 = vmatpush1.bf16.msra.mxu0 %v2606
        %3145 = vmatprep.subr.bf16.mxu0 %v2615
        %3146 = vmatpush1.bf16.msra.mxu0 %v2614
        %3147 = vmatprep.subr.bf16.mxu0 %v2623
        %3148 = vmatpush1.bf16.msra.mxu0 %v2622
        %3149 = vmatprep.subr.bf16.mxu0 %v2631
        %3150 = vmatpush1.bf16.msra.mxu0 %v2630
        %3151 = vmatprep.subr.bf16.mxu0 %v2639
        %3152 = vmatpush1.bf16.msra.mxu0 %v2638
        %3153 = vmatprep.subr.bf16.mxu0 %v2647
        %3154 = vmatpush1.bf16.msra.mxu0 %v2646
        %3155 = vmatprep.subr.bf16.mxu0 %v2655
        %3156 = vmatpush1.bf16.msra.mxu0 %v2654
        %3157 = vmatprep.subr.bf16.mxu0 %v2663
        %3158 = vmatpush1.bf16.msra.mxu0 %v2662
        %3159 = vmatprep.mubr.bf16.mxu0 %v1385
        %3160 = vmatmul.mubr.bf16.gmra.mrb[0].mxu0 %v1384
        %v3161 = vpop.f32.mrb[0].mxu0
        %v3162 = vadd.f32 %v3121, %v3161
        %v3163 = vpop.f32.mrb[0].mxu0
        %v3164 = vadd.f32 %v3123, %v3163
        %v3165 = vpop.f32.mrb[0].mxu0
        %v3166 = vpop.f32.mrb[0].mxu0
        %3167 = vdwg.mxu0
        %3168 = vmatprep.subr.bf16.mxu0 %v2417
        %3169 = vmatpush1.bf16.msra.mxu0 %v2416
        %3170 = vmatprep.subr.bf16.mxu0 %v2425
        %3171 = vmatpush1.bf16.msra.mxu0 %v2424
        %3172 = vmatprep.subr.bf16.mxu0 %v2433
        %3173 = vmatpush1.bf16.msra.mxu0 %v2432
        %3174 = vmatprep.subr.bf16.mxu0 %v2441
        %3175 = vmatpush1.bf16.msra.mxu0 %v2440
        %3176 = vmatprep.subr.bf16.mxu0 %v2449
        %3177 = vmatpush1.bf16.msra.mxu0 %v2448
        %3178 = vmatprep.subr.bf16.mxu0 %v2457
        %3179 = vmatpush1.bf16.msra.mxu0 %v2456
        %3180 = vmatprep.subr.bf16.mxu0 %v2465
        %3181 = vmatpush1.bf16.msra.mxu0 %v2464
        %3182 = vmatprep.subr.bf16.mxu0 %v2473
        %3183 = vmatpush1.bf16.msra.mxu0 %v2472
        %3184 = vmatprep.subr.bf16.mxu0 %v2481
        %3185 = vmatpush1.bf16.msra.mxu0 %v2480
        %3186 = vmatprep.subr.bf16.mxu0 %v2489
        %3187 = vmatpush1.bf16.msra.mxu0 %v2488
        %3188 = vmatprep.subr.bf16.mxu0 %v2497
        %3189 = vmatpush1.bf16.msra.mxu0 %v2496
        %3190 = vmatprep.subr.bf16.mxu0 %v2505
        %3191 = vmatpush1.bf16.msra.mxu0 %v2504
        %3192 = vmatprep.subr.bf16.mxu0 %v2513
        %3193 = vmatpush1.bf16.msra.mxu0 %v2512
        %3194 = vmatprep.subr.bf16.mxu0 %v2521
        %3195 = vmatpush1.bf16.msra.mxu0 %v2520
        %3196 = vmatprep.subr.bf16.mxu0 %v2529
        %3197 = vmatpush1.bf16.msra.mxu0 %v2528
        %3198 = vmatprep.subr.bf16.mxu0 %v2537
        %3199 = vmatpush1.bf16.msra.mxu0 %v2536
        %3200 = vmatprep.mubr.bf16.mxu0 %v1383
        %3201 = vmatmul.mubr.bf16.gmra.mrb[0].mxu0 %v1382
        %v3202 = vpop.f32.mrb[0].mxu0
        %v3203 = vadd.f32 0.0, %v3202
        %v3204 = vpop.f32.mrb[0].mxu0
        %v3205 = vadd.f32 0.0, %v3204
        %v3206 = vpop.f32.mrb[0].mxu0
        %v3207 = vpop.f32.mrb[0].mxu0
        %3208 = vdwg.mxu0
        %3209 = vmatprep.subr.bf16.mxu0 %v2545
        %3210 = vmatpush1.bf16.msra.mxu0 %v2544
        %3211 = vmatprep.subr.bf16.mxu0 %v2553
        %3212 = vmatpush1.bf16.msra.mxu0 %v2552
        %3213 = vmatprep.subr.bf16.mxu0 %v2561
        %3214 = vmatpush1.bf16.msra.mxu0 %v2560
        %3215 = vmatprep.subr.bf16.mxu0 %v2569
        %3216 = vmatpush1.bf16.msra.mxu0 %v2568
        %3217 = vmatprep.subr.bf16.mxu0 %v2577
        %3218 = vmatpush1.bf16.msra.mxu0 %v2576
        %3219 = vmatprep.subr.bf16.mxu0 %v2585
        %3220 = vmatpush1.bf16.msra.mxu0 %v2584
        %3221 = vmatprep.subr.bf16.mxu0 %v2593
        %3222 = vmatpush1.bf16.msra.mxu0 %v2592
        %3223 = vmatprep.subr.bf16.mxu0 %v2601
        %3224 = vmatpush1.bf16.msra.mxu0 %v2600
        %3225 = vmatprep.subr.bf16.mxu0 %v2609
        %3226 = vmatpush1.bf16.msra.mxu0 %v2608
        %3227 = vmatprep.subr.bf16.mxu0 %v2617
        %3228 = vmatpush1.bf16.msra.mxu0 %v2616
        %3229 = vmatprep.subr.bf16.mxu0 %v2625
        %3230 = vmatpush1.bf16.msra.mxu0 %v2624
        %3231 = vmatprep.subr.bf16.mxu0 %v2633
        %3232 = vmatpush1.bf16.msra.mxu0 %v2632
        %3233 = vmatprep.subr.bf16.mxu0 %v2641
        %3234 = vmatpush1.bf16.msra.mxu0 %v2640
        %3235 = vmatprep.subr.bf16.mxu0 %v2649
        %3236 = vmatpush1.bf16.msra.mxu0 %v2648
        %3237 = vmatprep.subr.bf16.mxu0 %v2657
        %3238 = vmatpush1.bf16.msra.mxu0 %v2656
        %3239 = vmatprep.subr.bf16.mxu0 %v2665
        %3240 = vmatpush1.bf16.msra.mxu0 %v2664
        %3241 = vmatprep.mubr.bf16.mxu0 %v1385
        %3242 = vmatmul.mubr.bf16.gmra.mrb[0].mxu0 %v1384
        %v3243 = vpop.f32.mrb[0].mxu0
        %v3244 = vadd.f32 %v3203, %v3243
        %v3245 = vpop.f32.mrb[0].mxu0
        %v3246 = vadd.f32 %v3205, %v3245
        %v3247 = vpop.f32.mrb[0].mxu0
        %v3248 = vpop.f32.mrb[0].mxu0
        %3249 = vdwg.mxu0
        %v3258 = vcombine.low %v2998, %v3000
        %v3259 = vcombine.low %v3080, %v3082
        %v3261 = vunpack.c.l.s4 1983009808
        %v3262 = vunpack.c.0.s8 %v3261
        %v3263 = vlaneseq
        %v3264 = vshrl.u32 %v3263, 7
        %v3265 = vsub.s32 %v3262, %v3264
        %v3266 = vrot.slane %v3258, %v3265
        %v3268 = vunpack.c.l.s4 1983009808
        %v3269 = vunpack.c.0.s8 %v3268
        %v3270 = vlaneseq
        %v3271 = vshrl.u32 %v3270, 7
        %v3272 = vsub.s32 %v3269, %v3271
        %v3273 = vrot.slane %v3259, %v3272
        %v3274 = vcombine.low %v3266, %v3273
        %v3275 = vcombine.low %v3162, %v3164
        %v3276 = vcombine.low %v3244, %v3246
        %v3278 = vunpack.c.l.s4 1983009808
        %v3279 = vunpack.c.0.s8 %v3278
        %v3280 = vlaneseq
        %v3281 = vshrl.u32 %v3280, 7
        %v3282 = vsub.s32 %v3279, %v3281
        %v3283 = vrot.slane %v3275, %v3282
        %v3285 = vunpack.c.l.s4 1983009808
        %v3286 = vunpack.c.0.s8 %v3285
        %v3287 = vlaneseq
        %v3288 = vshrl.u32 %v3287, 7
        %v3289 = vsub.s32 %v3286, %v3288
        %v3290 = vrot.slane %v3276, %v3289
        %v3291 = vcombine.low %v3283, %v3290
        %v3294 = vadd.f32 %v1380, %v3274
        %v3295 = vadd.f32 %v1381, %v3291
        %3296 = vst [vmem:[#allocation2] sm:$0xff] %v3294
        %3297 = vst [vmem:[#allocation2 + $0x8] sm:$0xff] %v3295
        %p3298 = scmp.eq.s32.totalorder %s26, 7
        // Predicated region
        $region73: #{dqn_forward.7} parent=47 // pred_check
          %p3299 = pneg %p3298
        $region74: #{dqn_forward.7} parent=47 // pred_check_branch
          %3301 = sbr.rel (%p3299) target = $region76
        $region75: #{dqn_forward.7} parent=47 // pred_region
          %v3302 = vld [vmem:[#allocation2] sm:$0xff]
          %v3303 = vld [vmem:[#allocation2 + $0x8] sm:$0xff]
          %v3304 = vld [vmem:[#allocation9] sm:$0xff]
          %v3306 = vlaneseq
          %v3307 = vshrl.u32 %v3306, 7
          %v3308 = vsub.s32 0, %v3307
          %v3309 = vrot.slane %v3304, %v3308
          %v3310 = vlaneseq
          %v3311 = vshrl.u32 %v3310, 7
          %v3312 = vsub.s32 1, %v3311
          %v3313 = vrot.slane %v3304, %v3312
          %v3314 = vlaneseq
          %v3315 = vshrl.u32 %v3314, 7
          %v3316 = vsub.s32 2, %v3315
          %v3317 = vrot.slane %v3304, %v3316
          %v3318 = vlaneseq
          %v3319 = vshrl.u32 %v3318, 7
          %v3320 = vsub.s32 3, %v3319
          %v3321 = vrot.slane %v3304, %v3320
          %v3322 = vlaneseq
          %v3323 = vshrl.u32 %v3322, 7
          %v3324 = vsub.s32 4, %v3323
          %v3325 = vrot.slane %v3304, %v3324
          %v3326 = vlaneseq
          %v3327 = vshrl.u32 %v3326, 7
          %v3328 = vsub.s32 5, %v3327
          %v3329 = vrot.slane %v3304, %v3328
          %v3330 = vlaneseq
          %v3331 = vshrl.u32 %v3330, 7
          %v3332 = vsub.s32 6, %v3331
          %v3333 = vrot.slane %v3304, %v3332
          %v3334 = vlaneseq
          %v3335 = vshrl.u32 %v3334, 7
          %v3336 = vsub.s32 7, %v3335
          %v3337 = vrot.slane %v3304, %v3336
          %v3338 = vcombine.low %v3309, %v3313
          %v3339 = vcombine.low %v3317, %v3321
          %v3341 = vunpack.c.l.s4 1983009808
          %v3342 = vunpack.c.0.s8 %v3341
          %v3343 = vlaneseq
          %v3344 = vshrl.u32 %v3343, 7
          %v3345 = vsub.s32 %v3342, %v3344
          %v3346 = vrot.slane %v3338, %v3345
          %v3348 = vunpack.c.l.s4 1983009808
          %v3349 = vunpack.c.0.s8 %v3348
          %v3350 = vlaneseq
          %v3351 = vshrl.u32 %v3350, 7
          %v3352 = vsub.s32 %v3349, %v3351
          %v3353 = vrot.slane %v3339, %v3352
          %v3354 = vcombine.low %v3346, %v3353
          %v3355 = vcombine.low %v3325, %v3329
          %v3356 = vcombine.low %v3333, %v3337
          %v3358 = vunpack.c.l.s4 1983009808
          %v3359 = vunpack.c.0.s8 %v3358
          %v3360 = vlaneseq
          %v3361 = vshrl.u32 %v3360, 7
          %v3362 = vsub.s32 %v3359, %v3361
          %v3363 = vrot.slane %v3355, %v3362
          %v3365 = vunpack.c.l.s4 1983009808
          %v3366 = vunpack.c.0.s8 %v3365
          %v3367 = vlaneseq
          %v3368 = vshrl.u32 %v3367, 7
          %v3369 = vsub.s32 %v3366, %v3368
          %v3370 = vrot.slane %v3356, %v3369
          %v3371 = vcombine.low %v3363, %v3370
          %v3374 = vadd.f32 %v3302, %v3354
          %v3375 = vadd.f32 %v3303, %v3371
          %v3378 = vcombine.high %v3374, %v3374
          %v3380 = vunpack.c.l.s4 1983009808
          %v3381 = vunpack.c.0.s8 %v3380
          %v3382 = vlaneseq
          %v3383 = vshrl.u32 %v3382, 7
          %v3384 = vsub.s32 %v3381, %v3383
          %v3385 = vrot.slane %v3374, %v3384
          %v3387 = vunpack.c.l.s4 1983009808
          %v3388 = vunpack.c.0.s8 %v3387
          %v3389 = vlaneseq
          %v3390 = vshrl.u32 %v3389, 7
          %v3391 = vsub.s32 %v3388, %v3390
          %v3392 = vrot.slane %v3378, %v3391
          %v3393 = vcombine.high %v3385, %v3385
          %v3394 = vcombine.high %v3392, %v3392
          %v3395 = vcombine.high %v3375, %v3375
          %v3397 = vunpack.c.l.s4 1983009808
          %v3398 = vunpack.c.0.s8 %v3397
          %v3399 = vlaneseq
          %v3400 = vshrl.u32 %v3399, 7
          %v3401 = vsub.s32 %v3398, %v3400
          %v3402 = vrot.slane %v3375, %v3401
          %v3404 = vunpack.c.l.s4 1983009808
          %v3405 = vunpack.c.0.s8 %v3404
          %v3406 = vlaneseq
          %v3407 = vshrl.u32 %v3406, 7
          %v3408 = vsub.s32 %v3405, %v3407
          %v3409 = vrot.slane %v3395, %v3408
          %v3410 = vcombine.high %v3402, %v3402
          %v3411 = vcombine.high %v3409, %v3409
          %v3420 = vpack.c.bf16 %v3385, %v3385
          %v3421 = vpack.c.bf16 %v3393, %v3393
          %v3422 = vpack.c.bf16 %v3392, %v3392
          %v3423 = vpack.c.bf16 %v3394, %v3394
          %v3424 = vpack.c.bf16 %v3402, %v3402
          %v3425 = vpack.c.bf16 %v3410, %v3410
          %v3426 = vpack.c.bf16 %v3409, %v3409
          %v3427 = vpack.c.bf16 %v3411, %v3411
          %v3428 = vld [vmem:[%s5] sm:$0xf]
          %v3429 = vld [vmem:[%s5 + $0x4] sm:$0xf]
          %v3430 = vld [vmem:[%s5 + $0x8] sm:$0xf]
          %v3431 = vld [vmem:[%s5 + $0xc] sm:$0xf]
          %v3432 = vld [vmem:[%s5 + $0x10] sm:$0xf]
          %v3433 = vld [vmem:[%s5 + $0x14] sm:$0xf]
          %v3434 = vld [vmem:[%s5 + $0x18] sm:$0xf]
          %v3435 = vld [vmem:[%s5 + $0x1c] sm:$0xf]
          %v3436 = vld [vmem:[%s5 + $0x20] sm:$0xf]
          %v3437 = vld [vmem:[%s5 + $0x24] sm:$0xf]
          %v3438 = vld [vmem:[%s5 + $0x28] sm:$0xf]
          %v3439 = vld [vmem:[%s5 + $0x2c] sm:$0xf]
          %v3440 = vld [vmem:[%s5 + $0x30] sm:$0xf]
          %v3441 = vld [vmem:[%s5 + $0x34] sm:$0xf]
          %v3442 = vld [vmem:[%s5 + $0x38] sm:$0xf]
          %v3443 = vld [vmem:[%s5 + $0x3c] sm:$0xf]
          %v3444 = vld [vmem:[%s5 + $0x40] sm:$0xf]
          %v3445 = vld [vmem:[%s5 + $0x44] sm:$0xf]
          %v3446 = vld [vmem:[%s5 + $0x48] sm:$0xf]
          %v3447 = vld [vmem:[%s5 + $0x4c] sm:$0xf]
          %v3448 = vld [vmem:[%s5 + $0x50] sm:$0xf]
          %v3449 = vld [vmem:[%s5 + $0x54] sm:$0xf]
          %v3450 = vld [vmem:[%s5 + $0x58] sm:$0xf]
          %v3451 = vld [vmem:[%s5 + $0x5c] sm:$0xf]
          %v3452 = vld [vmem:[%s5 + $0x60] sm:$0xf]
          %v3453 = vld [vmem:[%s5 + $0x64] sm:$0xf]
          %v3454 = vld [vmem:[%s5 + $0x68] sm:$0xf]
          %v3455 = vld [vmem:[%s5 + $0x6c] sm:$0xf]
          %v3456 = vld [vmem:[%s5 + $0x70] sm:$0xf]
          %v3457 = vld [vmem:[%s5 + $0x74] sm:$0xf]
          %v3458 = vld [vmem:[%s5 + $0x78] sm:$0xf]
          %v3459 = vld [vmem:[%s5 + $0x7c] sm:$0xf]
          %v3460 = vld [vmem:[%s5 + $0x80] sm:$0xf]
          %v3461 = vld [vmem:[%s5 + $0x84] sm:$0xf]
          %v3462 = vld [vmem:[%s5 + $0x88] sm:$0xf]
          %v3463 = vld [vmem:[%s5 + $0x8c] sm:$0xf]
          %v3464 = vld [vmem:[%s5 + $0x90] sm:$0xf]
          %v3465 = vld [vmem:[%s5 + $0x94] sm:$0xf]
          %v3466 = vld [vmem:[%s5 + $0x98] sm:$0xf]
          %v3467 = vld [vmem:[%s5 + $0x9c] sm:$0xf]
          %v3468 = vld [vmem:[%s5 + $0xa0] sm:$0xf]
          %v3469 = vld [vmem:[%s5 + $0xa4] sm:$0xf]
          %v3470 = vld [vmem:[%s5 + $0xa8] sm:$0xf]
          %v3471 = vld [vmem:[%s5 + $0xac] sm:$0xf]
          %v3472 = vld [vmem:[%s5 + $0xb0] sm:$0xf]
          %v3473 = vld [vmem:[%s5 + $0xb4] sm:$0xf]
          %v3474 = vld [vmem:[%s5 + $0xb8] sm:$0xf]
          %v3475 = vld [vmem:[%s5 + $0xbc] sm:$0xf]
          %v3476 = vld [vmem:[%s5 + $0xc0] sm:$0xf]
          %v3477 = vld [vmem:[%s5 + $0xc4] sm:$0xf]
          %v3478 = vld [vmem:[%s5 + $0xc8] sm:$0xf]
          %v3479 = vld [vmem:[%s5 + $0xcc] sm:$0xf]
          %v3480 = vld [vmem:[%s5 + $0xd0] sm:$0xf]
          %v3481 = vld [vmem:[%s5 + $0xd4] sm:$0xf]
          %v3482 = vld [vmem:[%s5 + $0xd8] sm:$0xf]
          %v3483 = vld [vmem:[%s5 + $0xdc] sm:$0xf]
          %v3484 = vld [vmem:[%s5 + $0xe0] sm:$0xf]
          %v3485 = vld [vmem:[%s5 + $0xe4] sm:$0xf]
          %v3486 = vld [vmem:[%s5 + $0xe8] sm:$0xf]
          %v3487 = vld [vmem:[%s5 + $0xec] sm:$0xf]
          %v3488 = vld [vmem:[%s5 + $0xf0] sm:$0xf]
          %v3489 = vld [vmem:[%s5 + $0xf4] sm:$0xf]
          %v3490 = vld [vmem:[%s5 + $0xf8] sm:$0xf]
          %v3491 = vld [vmem:[%s5 + $0xfc] sm:$0xf]
          %v3492 = vld [vmem:[%s5 + $0x100] sm:$0xf]
          %v3493 = vld [vmem:[%s5 + $0x104] sm:$0xf]
          %v3494 = vld [vmem:[%s5 + $0x108] sm:$0xf]
          %v3495 = vld [vmem:[%s5 + $0x10c] sm:$0xf]
          %v3496 = vld [vmem:[%s5 + $0x110] sm:$0xf]
          %v3497 = vld [vmem:[%s5 + $0x114] sm:$0xf]
          %v3498 = vld [vmem:[%s5 + $0x118] sm:$0xf]
          %v3499 = vld [vmem:[%s5 + $0x11c] sm:$0xf]
          %v3500 = vld [vmem:[%s5 + $0x120] sm:$0xf]
          %v3501 = vld [vmem:[%s5 + $0x124] sm:$0xf]
          %v3502 = vld [vmem:[%s5 + $0x128] sm:$0xf]
          %v3503 = vld [vmem:[%s5 + $0x12c] sm:$0xf]
          %v3504 = vld [vmem:[%s5 + $0x130] sm:$0xf]
          %v3505 = vld [vmem:[%s5 + $0x134] sm:$0xf]
          %v3506 = vld [vmem:[%s5 + $0x138] sm:$0xf]
          %v3507 = vld [vmem:[%s5 + $0x13c] sm:$0xf]
          %v3508 = vld [vmem:[%s5 + $0x140] sm:$0xf]
          %v3509 = vld [vmem:[%s5 + $0x144] sm:$0xf]
          %v3510 = vld [vmem:[%s5 + $0x148] sm:$0xf]
          %v3511 = vld [vmem:[%s5 + $0x14c] sm:$0xf]
          %v3512 = vld [vmem:[%s5 + $0x150] sm:$0xf]
          %v3513 = vld [vmem:[%s5 + $0x154] sm:$0xf]
          %v3514 = vld [vmem:[%s5 + $0x158] sm:$0xf]
          %v3515 = vld [vmem:[%s5 + $0x15c] sm:$0xf]
          %v3516 = vld [vmem:[%s5 + $0x160] sm:$0xf]
          %v3517 = vld [vmem:[%s5 + $0x164] sm:$0xf]
          %v3518 = vld [vmem:[%s5 + $0x168] sm:$0xf]
          %v3519 = vld [vmem:[%s5 + $0x16c] sm:$0xf]
          %v3520 = vld [vmem:[%s5 + $0x170] sm:$0xf]
          %v3521 = vld [vmem:[%s5 + $0x174] sm:$0xf]
          %v3522 = vld [vmem:[%s5 + $0x178] sm:$0xf]
          %v3523 = vld [vmem:[%s5 + $0x17c] sm:$0xf]
          %v3524 = vld [vmem:[%s5 + $0x180] sm:$0xf]
          %v3525 = vld [vmem:[%s5 + $0x184] sm:$0xf]
          %v3526 = vld [vmem:[%s5 + $0x188] sm:$0xf]
          %v3527 = vld [vmem:[%s5 + $0x18c] sm:$0xf]
          %v3528 = vld [vmem:[%s5 + $0x190] sm:$0xf]
          %v3529 = vld [vmem:[%s5 + $0x194] sm:$0xf]
          %v3530 = vld [vmem:[%s5 + $0x198] sm:$0xf]
          %v3531 = vld [vmem:[%s5 + $0x19c] sm:$0xf]
          %v3532 = vld [vmem:[%s5 + $0x1a0] sm:$0xf]
          %v3533 = vld [vmem:[%s5 + $0x1a4] sm:$0xf]
          %v3534 = vld [vmem:[%s5 + $0x1a8] sm:$0xf]
          %v3535 = vld [vmem:[%s5 + $0x1ac] sm:$0xf]
          %v3536 = vld [vmem:[%s5 + $0x1b0] sm:$0xf]
          %v3537 = vld [vmem:[%s5 + $0x1b4] sm:$0xf]
          %v3538 = vld [vmem:[%s5 + $0x1b8] sm:$0xf]
          %v3539 = vld [vmem:[%s5 + $0x1bc] sm:$0xf]
          %v3540 = vld [vmem:[%s5 + $0x1c0] sm:$0xf]
          %v3541 = vld [vmem:[%s5 + $0x1c4] sm:$0xf]
          %v3542 = vld [vmem:[%s5 + $0x1c8] sm:$0xf]
          %v3543 = vld [vmem:[%s5 + $0x1cc] sm:$0xf]
          %v3544 = vld [vmem:[%s5 + $0x1d0] sm:$0xf]
          %v3545 = vld [vmem:[%s5 + $0x1d4] sm:$0xf]
          %v3546 = vld [vmem:[%s5 + $0x1d8] sm:$0xf]
          %v3547 = vld [vmem:[%s5 + $0x1dc] sm:$0xf]
          %v3548 = vld [vmem:[%s5 + $0x1e0] sm:$0xf]
          %v3549 = vld [vmem:[%s5 + $0x1e4] sm:$0xf]
          %v3550 = vld [vmem:[%s5 + $0x1e8] sm:$0xf]
          %v3551 = vld [vmem:[%s5 + $0x1ec] sm:$0xf]
          %v3552 = vld [vmem:[%s5 + $0x1f0] sm:$0xf]
          %v3553 = vld [vmem:[%s5 + $0x1f4] sm:$0xf]
          %v3554 = vld [vmem:[%s5 + $0x1f8] sm:$0xf]
          %v3555 = vld [vmem:[%s5 + $0x1fc] sm:$0xf]
          %v3556 = vld [vmem:[#allocation11] sm:$0x1]
          %v3558 = vlaneseq
          %v3559 = vshrl.u32 %v3558, 7
          %v3560 = vsub.s32 0, %v3559
          %v3561 = vrot.slane %v3556, %v3560
          %v3691 = vunpack.c.l.b16 %v3428
          %v3692 = vunpack.c.l.b16 %v3429
          %v3693 = vunpack.c.l.b16 %v3430
          %v3694 = vunpack.c.l.b16 %v3431
          %v3695 = vunpack.c.l.b16 %v3432
          %v3696 = vunpack.c.l.b16 %v3433
          %v3697 = vunpack.c.l.b16 %v3434
          %v3698 = vunpack.c.l.b16 %v3435
          %v3699 = vunpack.c.l.b16 %v3436
          %v3700 = vunpack.c.l.b16 %v3437
          %v3701 = vunpack.c.l.b16 %v3438
          %v3702 = vunpack.c.l.b16 %v3439
          %v3703 = vunpack.c.l.b16 %v3440
          %v3704 = vunpack.c.l.b16 %v3441
          %v3705 = vunpack.c.l.b16 %v3442
          %v3706 = vunpack.c.l.b16 %v3443
          %v3707 = vunpack.c.l.b16 %v3444
          %v3708 = vunpack.c.l.b16 %v3445
          %v3709 = vunpack.c.l.b16 %v3446
          %v3710 = vunpack.c.l.b16 %v3447
          %v3711 = vunpack.c.l.b16 %v3448
          %v3712 = vunpack.c.l.b16 %v3449
          %v3713 = vunpack.c.l.b16 %v3450
          %v3714 = vunpack.c.l.b16 %v3451
          %v3715 = vunpack.c.l.b16 %v3452
          %v3716 = vunpack.c.l.b16 %v3453
          %v3717 = vunpack.c.l.b16 %v3454
          %v3718 = vunpack.c.l.b16 %v3455
          %v3719 = vunpack.c.l.b16 %v3456
          %v3720 = vunpack.c.l.b16 %v3457
          %v3721 = vunpack.c.l.b16 %v3458
          %v3722 = vunpack.c.l.b16 %v3459
          %v3723 = vunpack.c.l.b16 %v3460
          %v3724 = vunpack.c.l.b16 %v3461
          %v3725 = vunpack.c.l.b16 %v3462
          %v3726 = vunpack.c.l.b16 %v3463
          %v3727 = vunpack.c.l.b16 %v3464
          %v3728 = vunpack.c.l.b16 %v3465
          %v3729 = vunpack.c.l.b16 %v3466
          %v3730 = vunpack.c.l.b16 %v3467
          %v3731 = vunpack.c.l.b16 %v3468
          %v3732 = vunpack.c.l.b16 %v3469
          %v3733 = vunpack.c.l.b16 %v3470
          %v3734 = vunpack.c.l.b16 %v3471
          %v3735 = vunpack.c.l.b16 %v3472
          %v3736 = vunpack.c.l.b16 %v3473
          %v3737 = vunpack.c.l.b16 %v3474
          %v3738 = vunpack.c.l.b16 %v3475
          %v3739 = vunpack.c.l.b16 %v3476
          %v3740 = vunpack.c.l.b16 %v3477
          %v3741 = vunpack.c.l.b16 %v3478
          %v3742 = vunpack.c.l.b16 %v3479
          %v3743 = vunpack.c.l.b16 %v3480
          %v3744 = vunpack.c.l.b16 %v3481
          %v3745 = vunpack.c.l.b16 %v3482
          %v3746 = vunpack.c.l.b16 %v3483
          %v3747 = vunpack.c.l.b16 %v3484
          %v3748 = vunpack.c.l.b16 %v3485
          %v3749 = vunpack.c.l.b16 %v3486
          %v3750 = vunpack.c.l.b16 %v3487
          %v3751 = vunpack.c.l.b16 %v3488
          %v3752 = vunpack.c.l.b16 %v3489
          %v3753 = vunpack.c.l.b16 %v3490
          %v3754 = vunpack.c.l.b16 %v3491
          %v3755 = vunpack.c.l.b16 %v3492
          %v3756 = vunpack.c.l.b16 %v3493
          %v3757 = vunpack.c.l.b16 %v3494
          %v3758 = vunpack.c.l.b16 %v3495
          %v3759 = vunpack.c.l.b16 %v3496
          %v3760 = vunpack.c.l.b16 %v3497
          %v3761 = vunpack.c.l.b16 %v3498
          %v3762 = vunpack.c.l.b16 %v3499
          %v3763 = vunpack.c.l.b16 %v3500
          %v3764 = vunpack.c.l.b16 %v3501
          %v3765 = vunpack.c.l.b16 %v3502
          %v3766 = vunpack.c.l.b16 %v3503
          %v3767 = vunpack.c.l.b16 %v3504
          %v3768 = vunpack.c.l.b16 %v3505
          %v3769 = vunpack.c.l.b16 %v3506
          %v3770 = vunpack.c.l.b16 %v3507
          %v3771 = vunpack.c.l.b16 %v3508
          %v3772 = vunpack.c.l.b16 %v3509
          %v3773 = vunpack.c.l.b16 %v3510
          %v3774 = vunpack.c.l.b16 %v3511
          %v3775 = vunpack.c.l.b16 %v3512
          %v3776 = vunpack.c.l.b16 %v3513
          %v3777 = vunpack.c.l.b16 %v3514
          %v3778 = vunpack.c.l.b16 %v3515
          %v3779 = vunpack.c.l.b16 %v3516
          %v3780 = vunpack.c.l.b16 %v3517
          %v3781 = vunpack.c.l.b16 %v3518
          %v3782 = vunpack.c.l.b16 %v3519
          %v3783 = vunpack.c.l.b16 %v3520
          %v3784 = vunpack.c.l.b16 %v3521
          %v3785 = vunpack.c.l.b16 %v3522
          %v3786 = vunpack.c.l.b16 %v3523
          %v3787 = vunpack.c.l.b16 %v3524
          %v3788 = vunpack.c.l.b16 %v3525
          %v3789 = vunpack.c.l.b16 %v3526
          %v3790 = vunpack.c.l.b16 %v3527
          %v3791 = vunpack.c.l.b16 %v3528
          %v3792 = vunpack.c.l.b16 %v3529
          %v3793 = vunpack.c.l.b16 %v3530
          %v3794 = vunpack.c.l.b16 %v3531
          %v3795 = vunpack.c.l.b16 %v3532
          %v3796 = vunpack.c.l.b16 %v3533
          %v3797 = vunpack.c.l.b16 %v3534
          %v3798 = vunpack.c.l.b16 %v3535
          %v3799 = vunpack.c.l.b16 %v3536
          %v3800 = vunpack.c.l.b16 %v3537
          %v3801 = vunpack.c.l.b16 %v3538
          %v3802 = vunpack.c.l.b16 %v3539
          %v3803 = vunpack.c.l.b16 %v3540
          %v3804 = vunpack.c.l.b16 %v3541
          %v3805 = vunpack.c.l.b16 %v3542
          %v3806 = vunpack.c.l.b16 %v3543
          %v3807 = vunpack.c.l.b16 %v3544
          %v3808 = vunpack.c.l.b16 %v3545
          %v3809 = vunpack.c.l.b16 %v3546
          %v3810 = vunpack.c.l.b16 %v3547
          %v3811 = vunpack.c.l.b16 %v3548
          %v3812 = vunpack.c.l.b16 %v3549
          %v3813 = vunpack.c.l.b16 %v3550
          %v3814 = vunpack.c.l.b16 %v3551
          %v3815 = vunpack.c.l.b16 %v3552
          %v3816 = vunpack.c.l.b16 %v3553
          %v3817 = vunpack.c.l.b16 %v3554
          %v3818 = vunpack.c.l.b16 %v3555
          %v3819 = vpack.c.b16 %v3692, %v3691
          %v3820 = vpack.c.b16 %v3694, %v3693
          %v3821 = vpack.c.b16 %v3696, %v3695
          %v3822 = vpack.c.b16 %v3698, %v3697
          %v3823 = vpack.c.b16 %v3700, %v3699
          %v3824 = vpack.c.b16 %v3702, %v3701
          %v3825 = vpack.c.b16 %v3704, %v3703
          %v3826 = vpack.c.b16 %v3706, %v3705
          %v3827 = vpack.c.b16 %v3708, %v3707
          %v3828 = vpack.c.b16 %v3710, %v3709
          %v3829 = vpack.c.b16 %v3712, %v3711
          %v3830 = vpack.c.b16 %v3714, %v3713
          %v3831 = vpack.c.b16 %v3716, %v3715
          %v3832 = vpack.c.b16 %v3718, %v3717
          %v3833 = vpack.c.b16 %v3720, %v3719
          %v3834 = vpack.c.b16 %v3722, %v3721
          %v3835 = vpack.c.b16 %v3724, %v3723
          %v3836 = vpack.c.b16 %v3726, %v3725
          %v3837 = vpack.c.b16 %v3728, %v3727
          %v3838 = vpack.c.b16 %v3730, %v3729
          %v3839 = vpack.c.b16 %v3732, %v3731
          %v3840 = vpack.c.b16 %v3734, %v3733
          %v3841 = vpack.c.b16 %v3736, %v3735
          %v3842 = vpack.c.b16 %v3738, %v3737
          %v3843 = vpack.c.b16 %v3740, %v3739
          %v3844 = vpack.c.b16 %v3742, %v3741
          %v3845 = vpack.c.b16 %v3744, %v3743
          %v3846 = vpack.c.b16 %v3746, %v3745
          %v3847 = vpack.c.b16 %v3748, %v3747
          %v3848 = vpack.c.b16 %v3750, %v3749
          %v3849 = vpack.c.b16 %v3752, %v3751
          %v3850 = vpack.c.b16 %v3754, %v3753
          %v3851 = vpack.c.b16 %v3756, %v3755
          %v3852 = vpack.c.b16 %v3758, %v3757
          %v3853 = vpack.c.b16 %v3760, %v3759
          %v3854 = vpack.c.b16 %v3762, %v3761
          %v3855 = vpack.c.b16 %v3764, %v3763
          %v3856 = vpack.c.b16 %v3766, %v3765
          %v3857 = vpack.c.b16 %v3768, %v3767
          %v3858 = vpack.c.b16 %v3770, %v3769
          %v3859 = vpack.c.b16 %v3772, %v3771
          %v3860 = vpack.c.b16 %v3774, %v3773
          %v3861 = vpack.c.b16 %v3776, %v3775
          %v3862 = vpack.c.b16 %v3778, %v3777
          %v3863 = vpack.c.b16 %v3780, %v3779
          %v3864 = vpack.c.b16 %v3782, %v3781
          %v3865 = vpack.c.b16 %v3784, %v3783
          %v3866 = vpack.c.b16 %v3786, %v3785
          %v3867 = vpack.c.b16 %v3788, %v3787
          %v3868 = vpack.c.b16 %v3790, %v3789
          %v3869 = vpack.c.b16 %v3792, %v3791
          %v3870 = vpack.c.b16 %v3794, %v3793
          %v3871 = vpack.c.b16 %v3796, %v3795
          %v3872 = vpack.c.b16 %v3798, %v3797
          %v3873 = vpack.c.b16 %v3800, %v3799
          %v3874 = vpack.c.b16 %v3802, %v3801
          %v3875 = vpack.c.b16 %v3804, %v3803
          %v3876 = vpack.c.b16 %v3806, %v3805
          %v3877 = vpack.c.b16 %v3808, %v3807
          %v3878 = vpack.c.b16 %v3810, %v3809
          %v3879 = vpack.c.b16 %v3812, %v3811
          %v3880 = vpack.c.b16 %v3814, %v3813
          %v3881 = vpack.c.b16 %v3816, %v3815
          %v3882 = vpack.c.b16 %v3818, %v3817
          %3947 = vmatprep.subr.bf16.mxu0 0
          %3948 = vmatpush1.bf16.msra.mxu0 %v3819
          %3949 = vmatprep.subr.bf16.mxu0 0
          %3950 = vmatpush1.bf16.msra.mxu0 %v3820
          %3951 = vmatprep.subr.bf16.mxu0 0
          %3952 = vmatpush1.bf16.msra.mxu0 %v3821
          %3953 = vmatprep.subr.bf16.mxu0 0
          %3954 = vmatpush1.bf16.msra.mxu0 %v3822
          %3955 = vmatprep.subr.bf16.mxu0 0
          %3956 = vmatpush1.bf16.msra.mxu0 %v3823
          %3957 = vmatprep.subr.bf16.mxu0 0
          %3958 = vmatpush1.bf16.msra.mxu0 %v3824
          %3959 = vmatprep.subr.bf16.mxu0 0
          %3960 = vmatpush1.bf16.msra.mxu0 %v3825
          %3961 = vmatprep.subr.bf16.mxu0 0
          %3962 = vmatpush1.bf16.msra.mxu0 %v3826
          %3963 = vmatprep.subr.bf16.mxu0 0
          %3964 = vmatpush1.bf16.msra.mxu0 %v3827
          %3965 = vmatprep.subr.bf16.mxu0 0
          %3966 = vmatpush1.bf16.msra.mxu0 %v3828
          %3967 = vmatprep.subr.bf16.mxu0 0
          %3968 = vmatpush1.bf16.msra.mxu0 %v3829
          %3969 = vmatprep.subr.bf16.mxu0 0
          %3970 = vmatpush1.bf16.msra.mxu0 %v3830
          %3971 = vmatprep.subr.bf16.mxu0 0
          %3972 = vmatpush1.bf16.msra.mxu0 %v3831
          %3973 = vmatprep.subr.bf16.mxu0 0
          %3974 = vmatpush1.bf16.msra.mxu0 %v3832
          %3975 = vmatprep.subr.bf16.mxu0 0
          %3976 = vmatpush1.bf16.msra.mxu0 %v3833
          %3977 = vmatprep.subr.bf16.mxu0 0
          %3978 = vmatpush1.bf16.msra.mxu0 %v3834
          %3979 = vmatprep.mubr.bf16.mxu0 %v3421
          %3980 = vmatmul.mubr.bf16.gmra.mrb[0].mxu0 %v3420
          %v3981 = vpop.f32.mrb[0].mxu0
          %v3982 = vadd.f32 %v3561, %v3981
          %v3983 = vpop.f32.mrb[0].mxu0
          %v3984 = vpop.f32.mrb[0].mxu0
          %v3985 = vpop.f32.mrb[0].mxu0
          %3986 = vdwg.mxu0
          %3987 = vmatprep.subr.bf16.mxu0 0
          %3988 = vmatpush1.bf16.msra.mxu0 %v3835
          %3989 = vmatprep.subr.bf16.mxu0 0
          %3990 = vmatpush1.bf16.msra.mxu0 %v3836
          %3991 = vmatprep.subr.bf16.mxu0 0
          %3992 = vmatpush1.bf16.msra.mxu0 %v3837
          %3993 = vmatprep.subr.bf16.mxu0 0
          %3994 = vmatpush1.bf16.msra.mxu0 %v3838
          %3995 = vmatprep.subr.bf16.mxu0 0
          %3996 = vmatpush1.bf16.msra.mxu0 %v3839
          %3997 = vmatprep.subr.bf16.mxu0 0
          %3998 = vmatpush1.bf16.msra.mxu0 %v3840
          %3999 = vmatprep.subr.bf16.mxu0 0
          %4000 = vmatpush1.bf16.msra.mxu0 %v3841
          %4001 = vmatprep.subr.bf16.mxu0 0
          %4002 = vmatpush1.bf16.msra.mxu0 %v3842
          %4003 = vmatprep.subr.bf16.mxu0 0
          %4004 = vmatpush1.bf16.msra.mxu0 %v3843
          %4005 = vmatprep.subr.bf16.mxu0 0
          %4006 = vmatpush1.bf16.msra.mxu0 %v3844
          %4007 = vmatprep.subr.bf16.mxu0 0
          %4008 = vmatpush1.bf16.msra.mxu0 %v3845
          %4009 = vmatprep.subr.bf16.mxu0 0
          %4010 = vmatpush1.bf16.msra.mxu0 %v3846
          %4011 = vmatprep.subr.bf16.mxu0 0
          %4012 = vmatpush1.bf16.msra.mxu0 %v3847
          %4013 = vmatprep.subr.bf16.mxu0 0
          %4014 = vmatpush1.bf16.msra.mxu0 %v3848
          %4015 = vmatprep.subr.bf16.mxu0 0
          %4016 = vmatpush1.bf16.msra.mxu0 %v3849
          %4017 = vmatprep.subr.bf16.mxu0 0
          %4018 = vmatpush1.bf16.msra.mxu0 %v3850
          %4019 = vmatprep.mubr.bf16.mxu0 %v3423
          %4020 = vmatmul.mubr.bf16.gmra.mrb[0].mxu0 %v3422
          %v4021 = vpop.f32.mrb[0].mxu0
          %v4022 = vadd.f32 %v3982, %v4021
          %v4023 = vpop.f32.mrb[0].mxu0
          %v4024 = vpop.f32.mrb[0].mxu0
          %v4025 = vpop.f32.mrb[0].mxu0
          %4026 = vdwg.mxu0
          %4027 = vmatprep.subr.bf16.mxu0 0
          %4028 = vmatpush1.bf16.msra.mxu0 %v3851
          %4029 = vmatprep.subr.bf16.mxu0 0
          %4030 = vmatpush1.bf16.msra.mxu0 %v3852
          %4031 = vmatprep.subr.bf16.mxu0 0
          %4032 = vmatpush1.bf16.msra.mxu0 %v3853
          %4033 = vmatprep.subr.bf16.mxu0 0
          %4034 = vmatpush1.bf16.msra.mxu0 %v3854
          %4035 = vmatprep.subr.bf16.mxu0 0
          %4036 = vmatpush1.bf16.msra.mxu0 %v3855
          %4037 = vmatprep.subr.bf16.mxu0 0
          %4038 = vmatpush1.bf16.msra.mxu0 %v3856
          %4039 = vmatprep.subr.bf16.mxu0 0
          %4040 = vmatpush1.bf16.msra.mxu0 %v3857
          %4041 = vmatprep.subr.bf16.mxu0 0
          %4042 = vmatpush1.bf16.msra.mxu0 %v3858
          %4043 = vmatprep.subr.bf16.mxu0 0
          %4044 = vmatpush1.bf16.msra.mxu0 %v3859
          %4045 = vmatprep.subr.bf16.mxu0 0
          %4046 = vmatpush1.bf16.msra.mxu0 %v3860
          %4047 = vmatprep.subr.bf16.mxu0 0
          %4048 = vmatpush1.bf16.msra.mxu0 %v3861
          %4049 = vmatprep.subr.bf16.mxu0 0
          %4050 = vmatpush1.bf16.msra.mxu0 %v3862
          %4051 = vmatprep.subr.bf16.mxu0 0
          %4052 = vmatpush1.bf16.msra.mxu0 %v3863
          %4053 = vmatprep.subr.bf16.mxu0 0
          %4054 = vmatpush1.bf16.msra.mxu0 %v3864
          %4055 = vmatprep.subr.bf16.mxu0 0
          %4056 = vmatpush1.bf16.msra.mxu0 %v3865
          %4057 = vmatprep.subr.bf16.mxu0 0
          %4058 = vmatpush1.bf16.msra.mxu0 %v3866
          %4059 = vmatprep.mubr.bf16.mxu0 %v3425
          %4060 = vmatmul.mubr.bf16.gmra.mrb[0].mxu0 %v3424
          %v4061 = vpop.f32.mrb[0].mxu0
          %v4062 = vadd.f32 %v4022, %v4061
          %v4063 = vpop.f32.mrb[0].mxu0
          %v4064 = vpop.f32.mrb[0].mxu0
          %v4065 = vpop.f32.mrb[0].mxu0
          %4066 = vdwg.mxu0
          %4067 = vmatprep.subr.bf16.mxu0 0
          %4068 = vmatpush1.bf16.msra.mxu0 %v3867
          %4069 = vmatprep.subr.bf16.mxu0 0
          %4070 = vmatpush1.bf16.msra.mxu0 %v3868
          %4071 = vmatprep.subr.bf16.mxu0 0
          %4072 = vmatpush1.bf16.msra.mxu0 %v3869
          %4073 = vmatprep.subr.bf16.mxu0 0
          %4074 = vmatpush1.bf16.msra.mxu0 %v3870
          %4075 = vmatprep.subr.bf16.mxu0 0
          %4076 = vmatpush1.bf16.msra.mxu0 %v3871
          %4077 = vmatprep.subr.bf16.mxu0 0
          %4078 = vmatpush1.bf16.msra.mxu0 %v3872
          %4079 = vmatprep.subr.bf16.mxu0 0
          %4080 = vmatpush1.bf16.msra.mxu0 %v3873
          %4081 = vmatprep.subr.bf16.mxu0 0
          %4082 = vmatpush1.bf16.msra.mxu0 %v3874
          %4083 = vmatprep.subr.bf16.mxu0 0
          %4084 = vmatpush1.bf16.msra.mxu0 %v3875
          %4085 = vmatprep.subr.bf16.mxu0 0
          %4086 = vmatpush1.bf16.msra.mxu0 %v3876
          %4087 = vmatprep.subr.bf16.mxu0 0
          %4088 = vmatpush1.bf16.msra.mxu0 %v3877
          %4089 = vmatprep.subr.bf16.mxu0 0
          %4090 = vmatpush1.bf16.msra.mxu0 %v3878
          %4091 = vmatprep.subr.bf16.mxu0 0
          %4092 = vmatpush1.bf16.msra.mxu0 %v3879
          %4093 = vmatprep.subr.bf16.mxu0 0
          %4094 = vmatpush1.bf16.msra.mxu0 %v3880
          %4095 = vmatprep.subr.bf16.mxu0 0
          %4096 = vmatpush1.bf16.msra.mxu0 %v3881
          %4097 = vmatprep.subr.bf16.mxu0 0
          %4098 = vmatpush1.bf16.msra.mxu0 %v3882
          %4099 = vmatprep.mubr.bf16.mxu0 %v3427
          %4100 = vmatmul.mubr.bf16.gmra.mrb[0].mxu0 %v3426
          %v4101 = vpop.f32.mrb[0].mxu0
          %v4102 = vadd.f32 %v4062, %v4101
          %v4103 = vpop.f32.mrb[0].mxu0
          %v4104 = vpop.f32.mrb[0].mxu0
          %v4105 = vpop.f32.mrb[0].mxu0
          %4106 = vdwg.mxu0
          %vm4107 = vcmask 25600
          %4108 = vst.msk [vmem:[#allocation12] sm:$0x3] %vm4107, %v4102
        $region76: #{dqn_forward.7} parent=47 // pred_fallthru
          _
        // Predicated region
        $region77: #{dqn_forward.7} parent=47 // pred_check
          %p4109 = pneg %p201
        $region78: #{dqn_forward.7} parent=47 // pred_check_branch
          %4111 = sbr.rel (%p4109) target = $region80
        $region79: #{dqn_forward.7} parent=47 // pred_region
          %s4113 = ssub.s32 32, 32
          %4114 = vsyncadd [#allocation5], %s4113
          %s4116 = sshll.u32 [#allocation12], 4
          %s4117 = int_to_ptr.vmem [resolvable:$true] %s4116
          %4119 = dma.vmem_to_hbm [thread:$0]  %s4117, 32, %s7, [#allocation5]
        $region80: #{dqn_forward.7} parent=47 // pred_fallthru
          _
        // Predicated region
        $region81: #{dqn_forward.7} parent=47 // pred_check
          %p4120 = pneg %p201
        $region82: #{dqn_forward.7} parent=47 // pred_check_branch
          %4122 = sbr.rel (%p4120) target = $region84
        $region83: #{dqn_forward.7} parent=47 // pred_region
          %4123 = dma.done [#allocation5], 32
        $region84: #{dqn_forward.7} parent=47 // pred_fallthru
          _
      $region48: #{dqn_forward.7} parent=5 // pred_fallthru
        _
      %p4124 = scmp.le.s32.totalorder 2, %s21
      // Predicated region
      $region85: #{dqn_forward.7} parent=5 // pred_check
        %p4125 = pneg %p4124
      $region86: #{dqn_forward.7} parent=5 // pred_check_branch
        %4127 = sbr.rel (%p4125) target = $region88
      $region87: #{dqn_forward.7} parent=5 // pred_region
        %s4128 = ssub.s32 %s21, 2
      $region88: #{dqn_forward.7} parent=5 // pred_fallthru
        _
    $region6: #{dqn_forward.7} parent=1 // loop_footer
      %s25 = sadd.s32 1, %s21
    $region7: #{dqn_forward.7} parent=1 // loop_footer_branch
      %20 = sbr.rel target = $region3
    $region8: #{dqn_forward.7} parent=1 // loop_exit
      _
    %4129 = vsyncpa [#allocation4], 1
    %s4130 = scalar_lea.sflag [#allocation4], 1
    %4131 = vsyncpa %s4130, 1
    %4132 = vsyncpa [#allocation7], 1
    %s4133 = scalar_lea.sflag [#allocation7], 1
    %4134 = vsyncpa %s4133, 1
    %4135 = vsyncpa [#allocation10], 1
    %4136 = vsyncpa [#allocation5], 1
    %s4137 = scalar_lea.sflag [#allocation5], 1
    %4138 = vsyncpa %s4137, 1

</llo_original>
